<compile_context>
chip_gen: v7x
topology: tpu7x:2x2x1
jax: 0.10.0
libtpu: 0.0.40
codegen_flags: <defaults>
</compile_context>

<pallas_src>
import math
import numpy as np
import jax
import jax.numpy as jnp
from jax.experimental import pallas as pl
from jax.experimental.pallas import tpu as pltpu

# ---------------- mini-BERT config (synthetic stand-in for from_pretrained) ----
VOCAB = 128      # "len(tokenizer)" after resize_token_embeddings
B, S, H = 2, 8, 32
NH, HD = 2, 16   # heads, head_dim (NH * HD == H)
FF = 64          # intermediate (FFN) size
NLAYERS = 2
LN_EPS = 1e-12   # BERT LayerNorm eps

PACK_W = 128                 # lane width of both packed parameter slabs
WROWS = 3 * H + FF           # weight-slab rows per layer: wqkv(H)+wo(H)+w1(H)+w2(FF)
VROWS = 8                    # vector-slab rows per layer


def _layernorm_ref(x, gamma, beta):
    mu = jnp.mean(x, axis=-1, keepdims=True)
    var = jnp.mean((x - mu) ** 2, axis=-1, keepdims=True)
    return (x - mu) * jax.lax.rsqrt(var + LN_EPS) * gamma + beta


# ------------------------------- fused Pallas kernel ---------------------------

def fused_encoder_kernel(x_ref, mask_ref, vec_ref, w_ref, o_ref):
    # x_ref:    (B*S, H)            embedded tokens (tok + pos + type), pre-LayerNorm
    # mask_ref: (B, S)              1 = keep, 0 = pad
    # vec_ref:  (2 + 8*L, 128)      rows: [emb_g, emb_b] + per layer
    #                               [bqkv, bo, g1, be1, b1, b2, g2, be2] (lane-padded)
    # w_ref:    (L*160, 128)        per layer row blocks [wqkv(H), wo(H), w1(H), w2(FF)]
    # o_ref:    (B, H)              mean over the sequence axis
    ones_col = jnp.ones((H, 1), jnp.float32)          # created once, reused by every LN
    inv_h = 1.0 / H

    def layernorm(t, gamma, beta):
        # Row mean / variance as matmuls against a ones column: the cross-lane
        # reductions run on the (otherwise idle) MXU instead of the XLU.
        mu = jnp.dot(t, ones_col, preferred_element_type=jnp.float32) * inv_h
        tc = t - mu
        var = jnp.dot(tc * tc, ones_col, preferred_element_type=jnp.float32) * inv_h
        return tc * jax.lax.rsqrt(var + LN_EPS) * gamma + beta

    x = layernorm(x_ref[...], vec_ref[0:1, 0:H], vec_ref[1:2, 0:H])      # (B*S, H)

    # additive attention mask, shared by all layers/heads; batch index = h*B + b
    neg = (1.0 - mask_ref[...]) * -1e9                                   # (B, S)
    mask_add = jnp.concatenate([neg] * NH, axis=0)[:, None, :]           # (NH*B, 1, S)

    scale = 1.0 / math.sqrt(HD)

    for l in range(NLAYERS):                           # static, fully unrolled
        wb = l * WROWS
        vb = 2 + l * VROWS
        # weight slices: lane offset 0, sublane offsets multiples of 8 -> no relayout
        wqkv = w_ref[wb:wb + H, 0:3 * H]               # (H, 3H)  cols head-major per q/k/v
        wo   = w_ref[wb + H:wb + 2 * H, 0:H]           # (H, H)
        w1   = w_ref[wb + 2 * H:wb + 3 * H, 0:FF]      # (H, FF)
        w2   = w_ref[wb + 3 * H:wb + 3 * H + FF, 0:H]  # (FF, H)
        bqkv = vec_ref[vb + 0:vb + 1, 0:3 * H]
        bo   = vec_ref[vb + 1:vb + 2, 0:H]
        g1   = vec_ref[vb + 2:vb + 3, 0:H]
        be1  = vec_ref[vb + 3:vb + 4, 0:H]
        b1   = vec_ref[vb + 4:vb + 5, 0:FF]
        b2   = vec_ref[vb + 5:vb + 6, 0:H]
        g2   = vec_ref[vb + 6:vb + 7, 0:H]
        be2  = vec_ref[vb + 7:vb + 8, 0:H]

        # ---- attention: one packed QKV matmul, all heads in one batched einsum
        qkv = jnp.dot(x, wqkv, preferred_element_type=jnp.float32) + bqkv   # (B*S, 3H)

        def head_batch(col):
            # column block [col, col+H) -> (NH*B, S, HD), batch index = h*B + b
            parts = [qkv[:, col + h * HD: col + (h + 1) * HD] for h in range(NH)]
            return jnp.concatenate(parts, axis=0).reshape(NH * B, S, HD)

        q = head_batch(0 * H)
        k = head_batch(1 * H)
        v = head_batch(2 * H)

        s = jnp.einsum('bqd,bkd->bqk', q, k,
                       preferred_element_type=jnp.float32) * scale + mask_add
        m = jnp.max(s, axis=-1, keepdims=True)
        p = jnp.exp(s - m)
        p = p / jnp.sum(p, axis=-1, keepdims=True)                 # exact softmax
        ctx = jnp.einsum('bqk,bkd->bqd', p, v,
                         preferred_element_type=jnp.float32)       # (NH*B, S, HD)

        # back to (B*S, H) with heads on the lane axis, then ONE output projection
        ctx = jnp.concatenate([ctx[h * B:(h + 1) * B] for h in range(NH)],
                              axis=-1).reshape(B * S, H)
        attn = jnp.dot(ctx, wo, preferred_element_type=jnp.float32) + bo

        x = layernorm(x + attn, g1, be1)

        # ---- feed-forward
        h1 = jnp.dot(x, w1, preferred_element_type=jnp.float32) + b1
        h1 = jax.nn.gelu(h1, approximate=True)
        ff = jnp.dot(h1, w2, preferred_element_type=jnp.float32) + b2
        x = layernorm(x + ff, g2, be2)

    # mean pool over the sequence axis  (== hidden_repr.mean(dim=1))
    o_ref[...] = jnp.mean(x.reshape(B, S, H), axis=1)


# ------------------------------- wrappers ---------------------------------------

def fused_encoder(x_flat, mask, packed):
    vmem = lambda: pl.BlockSpec(memory_space=pltpu.MemorySpace.VMEM)
    # TODO(synk): at real BERT sizes, stream layers via a grid axis / emit_pipeline
    # (v7x has only 64 MiB VMEM) and add a parallel batch grid for the 2nd TC;
    # at this toy size the single resident invocation is faster.
    return pl.pallas_call(
        fused_encoder_kernel,
        out_shape=jax.ShapeDtypeStruct((B, H), jnp.float32),
        in_specs=[vmem(), vmem(), vmem(), vmem()],
        out_specs=vmem(),
    )(x_flat, mask, packed["vecs"], packed["weights"])


def pack_params(params):
    layers = params["layers"]

    def vrow(v):
        v = jnp.asarray(v, jnp.float32).reshape(1, -1)
        return jnp.pad(v, ((0, 0), (0, PACK_W - v.shape[1])))

    def wpad(w):
        w = jnp.asarray(w, jnp.float32)
        return jnp.pad(w, ((0, 0), (0, PACK_W - w.shape[1])))

    vec_rows = [vrow(params["emb_ln_g"]), vrow(params["emb_ln_b"])]
    w_rows = []
    for l in layers:
        # head-major packed QKV columns: [q_h0 | q_h1 | k_h0 | k_h1 | v_h0 | v_h1]
        wqkv = jnp.concatenate([l["wq"], l["wk"], l["wv"]], axis=1)        # (H, 3H)
        bqkv = jnp.concatenate([l["bq"], l["bk"], l["bv"]], axis=1)        # (1, 3H)
        vec_rows += [vrow(bqkv), vrow(l["bo"]), vrow(l["g1"]), vrow(l["be1"]),
                     vrow(l["b1"]), vrow(l["b2"]), vrow(l["g2"]), vrow(l["be2"])]
        w_rows += [wpad(wqkv), wpad(l["wo"]), wpad(l["w1"]), wpad(l["w2"])]

    return {
        "tok_emb": params["tok_emb"],
        "pos_emb": params["pos_emb"],
        "type_emb": params["type_emb"],
        "vecs": jnp.concatenate(vec_rows, axis=0),    # (2 + 8*L, 128)
        "weights": jnp.concatenate(w_rows, axis=0),   # (L*160, 128)
    }


def context_encoder_forward(packed, input_ids, attn_mask):
    # TODO(synk): the integer embedding gather is glue (no clean tiny-Pallas
    # equivalent) -> stays in plain JAX, everything after it is one fused kernel.
    x = (packed["tok_emb"][input_ids]
         + packed["pos_emb"][None, :, :]
         + packed["type_emb"][None, :, :]).astype(jnp.float32)
    x_flat = x.reshape(B * S, H)
    mask = attn_mask.astype(jnp.float32)           # (B, S)
    return fused_encoder(x_flat, mask, packed)     # (B, H)


# ------------------------------- params & reference -----------------------------

def init_params(key):
    keys = iter(jax.random.split(key, 8 + NLAYERS * 8))

    def nrm(shape):
        return (0.02 * jax.random.normal(next(keys), shape)).astype(jnp.float32)

    params = {
        "tok_emb": nrm((VOCAB, H)),
        "pos_emb": nrm((S, H)),
        "type_emb": nrm((1, H)),
        "emb_ln_g": jnp.ones((1, H), jnp.float32),
        "emb_ln_b": jnp.zeros((1, H), jnp.float32),
        "layers": [],
    }
    for _ in range(NLAYERS):
        params["layers"].append(dict(
            wq=nrm((H, H)), bq=jnp.zeros((1, H), jnp.float32),
            wk=nrm((H, H)), bk=jnp.zeros((1, H), jnp.float32),
            wv=nrm((H, H)), bv=jnp.zeros((1, H), jnp.float32),
            wo=nrm((H, H)), bo=jnp.zeros((1, H), jnp.float32),
            g1=jnp.ones((1, H), jnp.float32), be1=jnp.zeros((1, H), jnp.float32),
            w1=nrm((H, FF)), b1=jnp.zeros((1, FF), jnp.float32),
            w2=nrm((FF, H)), b2=jnp.zeros((1, H), jnp.float32),
            g2=jnp.ones((1, H), jnp.float32), be2=jnp.zeros((1, H), jnp.float32),
        ))
    return params


def reference_forward(params, input_ids, attn_mask):
    x = (params["tok_emb"][input_ids]
         + params["pos_emb"][None] + params["type_emb"][None])
    x = _layernorm_ref(x, params["emb_ln_g"], params["emb_ln_b"])
    mask_add = (1.0 - attn_mask.astype(jnp.float32))[:, None, None, :] * -1e9
    for lyr in params["layers"]:
        q = x @ lyr["wq"] + lyr["bq"]
        k = x @ lyr["wk"] + lyr["bk"]
        v = x @ lyr["wv"] + lyr["bv"]
        split = lambda t: t.reshape(B, S, NH, HD).transpose(0, 2, 1, 3)
        qh, kh, vh = split(q), split(k), split(v)
        scores = jnp.einsum("bhqd,bhkd->bhqk", qh, kh) / math.sqrt(HD) + mask_add
        p = jax.nn.softmax(scores, axis=-1)
        ctx = jnp.einsum("bhqk,bhkd->bhqd", p, vh).transpose(0, 2, 1, 3).reshape(B, S, H)
        x = _layernorm_ref(x + ctx @ lyr["wo"] + lyr["bo"], lyr["g1"], lyr["be1"])
        h1 = jax.nn.gelu(x @ lyr["w1"] + lyr["b1"], approximate=True)
        x = _layernorm_ref(x + h1 @ lyr["w2"] + lyr["b2"], lyr["g2"], lyr["be2"])
    return x.mean(axis=1)


if __name__ == "__main__":
    key = jax.random.PRNGKey(0)
    pkey, ikey = jax.random.split(key)
    params = init_params(pkey)
    packed = pack_params(params)

    input_ids = jax.random.randint(ikey, (B, S), 0, VOCAB, dtype=jnp.int32)
    attn_mask = jnp.ones((B, S), jnp.int32).at[1, 6:].set(0)   # pad tail of sample 1

    out = context_encoder_forward(packed, input_ids, attn_mask)
    out = jax.block_until_ready(out)
    assert out.shape == (B, H)

    ref = reference_forward(params, input_ids, attn_mask)
    assert np.allclose(np.asarray(out), np.asarray(ref), atol=1e-4, rtol=1e-4), \
        float(np.max(np.abs(np.asarray(out) - np.asarray(ref))))

    # TODO(synk): mean pooling intentionally divides by S including padded
    # positions, matching `hidden_repr.mean(dim=1)` in the PyTorch spec.
    print("KERNEL_OK")
</pallas_src>

<mosaic_0001>
module attributes {stable_mosaic.version = 11 : i64} {
  func.func @fused_encoder_kernel(%arg0: memref<16x32xf32, #tpu.memory_space<vmem>>, %arg1: memref<2x8xf32, #tpu.memory_space<vmem>>, %arg2: memref<18x128xf32, #tpu.memory_space<vmem>>, %arg3: memref<320x128xf32, #tpu.memory_space<vmem>>, %arg4: memref<2x32xf32, #tpu.memory_space<vmem>>) attributes {dimension_semantics = [], scalar_prefetch = 0 : i64, scratch_operands = 0 : i64, tpu.core_type = #tpu.core_type<tc>} {
    %cst = arith.constant 1.000000e+00 : f32
    %0 = vector.broadcast %cst : f32 to vector<32x1xf32>
    %c0 = arith.constant 0 : index
    %c0_0 = arith.constant 0 : index
    %1 = vector.load %arg0[%c0, %c0_0] : memref<16x32xf32, #tpu.memory_space<vmem>>, vector<16x32xf32>
    %c0_1 = arith.constant 0 : index
    %c0_2 = arith.constant 0 : index
    %2 = vector.load %arg2[%c0_1, %c0_2] : memref<18x128xf32, #tpu.memory_space<vmem>>, vector<1x32xf32>
    %c1 = arith.constant 1 : index
    %c0_3 = arith.constant 0 : index
    %3 = vector.load %arg2[%c1, %c0_3] : memref<18x128xf32, #tpu.memory_space<vmem>>, vector<1x32xf32>
    %cst_4 = arith.constant dense<0.000000e+00> : vector<16x1xf32>
    %4 = tpu.matmul %1, %0, %cst_4 {dimension_numbers = #tpu.dot_dimension_numbers<[1], [0], [0], [1], [0, 0, 1, 1], [], []>} : vector<16x32xf32>, vector<32x1xf32>, vector<16x1xf32> -> vector<16x1xf32>
    %cst_5 = arith.constant 3.125000e-02 : f32
    %5 = vector.broadcast %cst_5 : f32 to vector<16x1xf32>
    %6 = arith.mulf %4, %5 : vector<16x1xf32>
    %7 = vector.broadcast %6 : vector<16x1xf32> to vector<16x32xf32>
    %8 = arith.subf %1, %7 : vector<16x32xf32>
    %9 = arith.mulf %8, %8 : vector<16x32xf32>
    %cst_6 = arith.constant dense<0.000000e+00> : vector<16x1xf32>
    %10 = tpu.matmul %9, %0, %cst_6 {dimension_numbers = #tpu.dot_dimension_numbers<[1], [0], [0], [1], [0, 0, 1, 1], [], []>} : vector<16x32xf32>, vector<32x1xf32>, vector<16x1xf32> -> vector<16x1xf32>
    %cst_7 = arith.constant 3.125000e-02 : f32
    %11 = vector.broadcast %cst_7 : f32 to vector<16x1xf32>
    %12 = arith.mulf %10, %11 : vector<16x1xf32>
    %cst_8 = arith.constant 9.99999996E-13 : f32
    %13 = vector.broadcast %cst_8 : f32 to vector<16x1xf32>
    %14 = arith.addf %12, %13 : vector<16x1xf32>
    %15 = math.rsqrt %14 : vector<16x1xf32>
    %16 = vector.broadcast %15 : vector<16x1xf32> to vector<16x32xf32>
    %17 = arith.mulf %8, %16 : vector<16x32xf32>
    %18 = vector.broadcast %2 : vector<1x32xf32> to vector<16x32xf32>
    %19 = arith.mulf %17, %18 : vector<16x32xf32>
    %20 = vector.broadcast %3 : vector<1x32xf32> to vector<16x32xf32>
    %21 = arith.addf %19, %20 : vector<16x32xf32>
    %c0_9 = arith.constant 0 : index
    %c0_10 = arith.constant 0 : index
    %22 = vector.load %arg1[%c0_9, %c0_10] : memref<2x8xf32, #tpu.memory_space<vmem>>, vector<2x8xf32>
    %cst_11 = arith.constant 1.000000e+00 : f32
    %23 = vector.broadcast %cst_11 : f32 to vector<2x8xf32>
    %24 = arith.subf %23, %22 : vector<2x8xf32>
    %cst_12 = arith.constant -1.000000e+09 : f32
    %25 = vector.broadcast %cst_12 : f32 to vector<2x8xf32>
    %26 = arith.mulf %24, %25 : vector<2x8xf32>
    %27 = tpu.concatenate %26, %26 in 0 : vector<2x8xf32>, vector<2x8xf32> -> vector<4x8xf32>
    %28 = vector.shape_cast %27 : vector<4x8xf32> to vector<4x1x8xf32>
    %c0_13 = arith.constant 0 : index
    %c0_14 = arith.constant 0 : index
    %29 = vector.load %arg3[%c0_13, %c0_14] : memref<320x128xf32, #tpu.memory_space<vmem>>, vector<32x96xf32>
    %c32 = arith.constant 32 : index
    %c0_15 = arith.constant 0 : index
    %30 = vector.load %arg3[%c32, %c0_15] : memref<320x128xf32, #tpu.memory_space<vmem>>, vector<32x32xf32>
    %c64 = arith.constant 64 : index
    %c0_16 = arith.constant 0 : index
    %31 = vector.load %arg3[%c64, %c0_16] : memref<320x128xf32, #tpu.memory_space<vmem>>, vector<32x64xf32>
    %c96 = arith.constant 96 : index
    %c0_17 = arith.constant 0 : index
    %32 = vector.load %arg3[%c96, %c0_17] : memref<320x128xf32, #tpu.memory_space<vmem>>, vector<64x32xf32>
    %c2 = arith.constant 2 : index
    %c0_18 = arith.constant 0 : index
    %33 = vector.load %arg2[%c2, %c0_18] : memref<18x128xf32, #tpu.memory_space<vmem>>, vector<1x96xf32>
    %c3 = arith.constant 3 : index
    %c0_19 = arith.constant 0 : index
    %34 = vector.load %arg2[%c3, %c0_19] : memref<18x128xf32, #tpu.memory_space<vmem>>, vector<1x32xf32>
    %c4 = arith.constant 4 : index
    %c0_20 = arith.constant 0 : index
    %35 = vector.load %arg2[%c4, %c0_20] : memref<18x128xf32, #tpu.memory_space<vmem>>, vector<1x32xf32>
    %c5 = arith.constant 5 : index
    %c0_21 = arith.constant 0 : index
    %36 = vector.load %arg2[%c5, %c0_21] : memref<18x128xf32, #tpu.memory_space<vmem>>, vector<1x32xf32>
    %c6 = arith.constant 6 : index
    %c0_22 = arith.constant 0 : index
    %37 = vector.load %arg2[%c6, %c0_22] : memref<18x128xf32, #tpu.memory_space<vmem>>, vector<1x64xf32>
    %c7 = arith.constant 7 : index
    %c0_23 = arith.constant 0 : index
    %38 = vector.load %arg2[%c7, %c0_23] : memref<18x128xf32, #tpu.memory_space<vmem>>, vector<1x32xf32>
    %c8 = arith.constant 8 : index
    %c0_24 = arith.constant 0 : index
    %39 = vector.load %arg2[%c8, %c0_24] : memref<18x128xf32, #tpu.memory_space<vmem>>, vector<1x32xf32>
    %c9 = arith.constant 9 : index
    %c0_25 = arith.constant 0 : index
    %40 = vector.load %arg2[%c9, %c0_25] : memref<18x128xf32, #tpu.memory_space<vmem>>, vector<1x32xf32>
    %cst_26 = arith.constant dense<0.000000e+00> : vector<16x96xf32>
    %41 = tpu.matmul %21, %29, %cst_26 {dimension_numbers = #tpu.dot_dimension_numbers<[1], [0], [0], [1], [0, 0, 1, 1], [], []>} : vector<16x32xf32>, vector<32x96xf32>, vector<16x96xf32> -> vector<16x96xf32>
    %42 = vector.broadcast %33 : vector<1x96xf32> to vector<16x96xf32>
    %43 = arith.addf %41, %42 : vector<16x96xf32>
    %44 = vector.extract_strided_slice %43 {offsets = [0, 0], sizes = [16, 16], strides = [1, 1]} : vector<16x96xf32> to vector<16x16xf32>
    %45 = vector.extract_strided_slice %43 {offsets = [0, 16], sizes = [16, 16], strides = [1, 1]} : vector<16x96xf32> to vector<16x16xf32>
    %46 = tpu.concatenate %44, %45 in 0 : vector<16x16xf32>, vector<16x16xf32> -> vector<32x16xf32>
    %47 = vector.shape_cast %46 : vector<32x16xf32> to vector<4x8x16xf32>
    %48 = vector.extract_strided_slice %43 {offsets = [0, 32], sizes = [16, 16], strides = [1, 1]} : vector<16x96xf32> to vector<16x16xf32>
    %49 = vector.extract_strided_slice %43 {offsets = [0, 48], sizes = [16, 16], strides = [1, 1]} : vector<16x96xf32> to vector<16x16xf32>
    %50 = tpu.concatenate %48, %49 in 0 : vector<16x16xf32>, vector<16x16xf32> -> vector<32x16xf32>
    %51 = vector.shape_cast %50 : vector<32x16xf32> to vector<4x8x16xf32>
    %52 = vector.extract_strided_slice %43 {offsets = [0, 64], sizes = [16, 16], strides = [1, 1]} : vector<16x96xf32> to vector<16x16xf32>
    %53 = vector.extract_strided_slice %43 {offsets = [0, 80], sizes = [16, 16], strides = [1, 1]} : vector<16x96xf32> to vector<16x16xf32>
    %54 = tpu.concatenate %52, %53 in 0 : vector<16x16xf32>, vector<16x16xf32> -> vector<32x16xf32>
    %55 = vector.shape_cast %54 : vector<32x16xf32> to vector<4x8x16xf32>
    "tpu.trace_start"() <{level = 10 : i32, message = "bqd,bkd->bqk"}> : () -> ()
    %cst_27 = arith.constant dense<0.000000e+00> : vector<4x8x8xf32>
    %56 = tpu.matmul %47, %51, %cst_27 {dimension_numbers = #tpu.dot_dimension_numbers<[2], [2], [1], [1], [0, 0, 0, 1, 1, 1], [0], [0]>} : vector<4x8x16xf32>, vector<4x8x16xf32>, vector<4x8x8xf32> -> vector<4x8x8xf32>
    "tpu.trace_stop"() : () -> ()
    %cst_28 = arith.constant 2.500000e-01 : f32
    %57 = vector.broadcast %cst_28 : f32 to vector<4x8x8xf32>
    %58 = arith.mulf %56, %57 : vector<4x8x8xf32>
    %59 = vector.broadcast %28 : vector<4x1x8xf32> to vector<4x8x8xf32>
    %60 = arith.addf %58, %59 : vector<4x8x8xf32>
    %cst_29 = arith.constant dense<0xFF800000> : vector<4x8xf32>
    %61 = vector.multi_reduction <maximumf>, %60, %cst_29 [2] : vector<4x8x8xf32> to vector<4x8xf32>
    %62 = vector.shape_cast %61 : vector<4x8xf32> to vector<4x8x1xf32>
    %63 = vector.broadcast %62 : vector<4x8x1xf32> to vector<4x8x8xf32>
    %64 = arith.subf %60, %63 : vector<4x8x8xf32>
    %65 = math.exp %64 : vector<4x8x8xf32>
    %cst_30 = arith.constant dense<0.000000e+00> : vector<4x8xf32>
    %66 = vector.multi_reduction <add>, %65, %cst_30 [2] : vector<4x8x8xf32> to vector<4x8xf32>
    %67 = vector.shape_cast %66 : vector<4x8xf32> to vector<4x8x1xf32>
    %68 = vector.broadcast %67 : vector<4x8x1xf32> to vector<4x8x8xf32>
    %69 = arith.divf %65, %68 : vector<4x8x8xf32>
    "tpu.trace_start"() <{level = 10 : i32, message = "bqk,bkd->bqd"}> : () -> ()
    %cst_31 = arith.constant dense<0.000000e+00> : vector<4x8x16xf32>
    %70 = tpu.matmul %69, %55, %cst_31 {dimension_numbers = #tpu.dot_dimension_numbers<[2], [1], [1], [2], [0, 0, 0, 1, 1, 2], [0], [0]>} : vector<4x8x8xf32>, vector<4x8x16xf32>, vector<4x8x16xf32> -> vector<4x8x16xf32>
    "tpu.trace_stop"() : () -> ()
    %71 = vector.extract_strided_slice %70 {offsets = [0, 0, 0], sizes = [2, 8, 16], strides = [1, 1, 1]} : vector<4x8x16xf32> to vector<2x8x16xf32>
    %72 = vector.extract_strided_slice %70 {offsets = [2, 0, 0], sizes = [2, 8, 16], strides = [1, 1, 1]} : vector<4x8x16xf32> to vector<2x8x16xf32>
    %73 = tpu.concatenate %71, %72 in 2 : vector<2x8x16xf32>, vector<2x8x16xf32> -> vector<2x8x32xf32>
    %74 = vector.shape_cast %73 : vector<2x8x32xf32> to vector<16x32xf32>
    %cst_32 = arith.constant dense<0.000000e+00> : vector<16x32xf32>
    %75 = tpu.matmul %74, %30, %cst_32 {dimension_numbers = #tpu.dot_dimension_numbers<[1], [0], [0], [1], [0, 0, 1, 1], [], []>} : vector<16x32xf32>, vector<32x32xf32>, vector<16x32xf32> -> vector<16x32xf32>
    %76 = vector.broadcast %34 : vector<1x32xf32> to vector<16x32xf32>
    %77 = arith.addf %75, %76 : vector<16x32xf32>
    %78 = arith.addf %21, %77 : vector<16x32xf32>
    %cst_33 = arith.constant dense<0.000000e+00> : vector<16x1xf32>
    %79 = tpu.matmul %78, %0, %cst_33 {dimension_numbers = #tpu.dot_dimension_numbers<[1], [0], [0], [1], [0, 0, 1, 1], [], []>} : vector<16x32xf32>, vector<32x1xf32>, vector<16x1xf32> -> vector<16x1xf32>
    %cst_34 = arith.constant 3.125000e-02 : f32
    %80 = vector.broadcast %cst_34 : f32 to vector<16x1xf32>
    %81 = arith.mulf %79, %80 : vector<16x1xf32>
    %82 = vector.broadcast %81 : vector<16x1xf32> to vector<16x32xf32>
    %83 = arith.subf %78, %82 : vector<16x32xf32>
    %84 = arith.mulf %83, %83 : vector<16x32xf32>
    %cst_35 = arith.constant dense<0.000000e+00> : vector<16x1xf32>
    %85 = tpu.matmul %84, %0, %cst_35 {dimension_numbers = #tpu.dot_dimension_numbers<[1], [0], [0], [1], [0, 0, 1, 1], [], []>} : vector<16x32xf32>, vector<32x1xf32>, vector<16x1xf32> -> vector<16x1xf32>
    %cst_36 = arith.constant 3.125000e-02 : f32
    %86 = vector.broadcast %cst_36 : f32 to vector<16x1xf32>
    %87 = arith.mulf %85, %86 : vector<16x1xf32>
    %cst_37 = arith.constant 9.99999996E-13 : f32
    %88 = vector.broadcast %cst_37 : f32 to vector<16x1xf32>
    %89 = arith.addf %87, %88 : vector<16x1xf32>
    %90 = math.rsqrt %89 : vector<16x1xf32>
    %91 = vector.broadcast %90 : vector<16x1xf32> to vector<16x32xf32>
    %92 = arith.mulf %83, %91 : vector<16x32xf32>
    %93 = vector.broadcast %35 : vector<1x32xf32> to vector<16x32xf32>
    %94 = arith.mulf %92, %93 : vector<16x32xf32>
    %95 = vector.broadcast %36 : vector<1x32xf32> to vector<16x32xf32>
    %96 = arith.addf %94, %95 : vector<16x32xf32>
    %cst_38 = arith.constant dense<0.000000e+00> : vector<16x64xf32>
    %97 = tpu.matmul %96, %31, %cst_38 {dimension_numbers = #tpu.dot_dimension_numbers<[1], [0], [0], [1], [0, 0, 1, 1], [], []>} : vector<16x32xf32>, vector<32x64xf32>, vector<16x64xf32> -> vector<16x64xf32>
    %98 = vector.broadcast %37 : vector<1x64xf32> to vector<16x64xf32>
    %99 = arith.addf %97, %98 : vector<16x64xf32>
    %100 = arith.mulf %99, %99 : vector<16x64xf32>
    %101 = arith.mulf %99, %100 : vector<16x64xf32>
    %cst_39 = arith.constant 4.471500e-02 : f32
    %102 = vector.broadcast %cst_39 : f32 to vector<16x64xf32>
    %103 = arith.mulf %102, %101 : vector<16x64xf32>
    %104 = arith.addf %99, %103 : vector<16x64xf32>
    %cst_40 = arith.constant 0.797884583 : f32
    %105 = vector.broadcast %cst_40 : f32 to vector<16x64xf32>
    %106 = arith.mulf %105, %104 : vector<16x64xf32>
    %107 = math.tanh %106 : vector<16x64xf32>
    %cst_41 = arith.constant 1.000000e+00 : f32
    %108 = vector.broadcast %cst_41 : f32 to vector<16x64xf32>
    %109 = arith.addf %108, %107 : vector<16x64xf32>
    %cst_42 = arith.constant 5.000000e-01 : f32
    %110 = vector.broadcast %cst_42 : f32 to vector<16x64xf32>
    %111 = arith.mulf %110, %109 : vector<16x64xf32>
    %112 = arith.mulf %99, %111 : vector<16x64xf32>
    %cst_43 = arith.constant dense<0.000000e+00> : vector<16x32xf32>
    %113 = tpu.matmul %112, %32, %cst_43 {dimension_numbers = #tpu.dot_dimension_numbers<[1], [0], [0], [1], [0, 0, 1, 1], [], []>} : vector<16x64xf32>, vector<64x32xf32>, vector<16x32xf32> -> vector<16x32xf32>
    %114 = vector.broadcast %38 : vector<1x32xf32> to vector<16x32xf32>
    %115 = arith.addf %113, %114 : vector<16x32xf32>
    %116 = arith.addf %96, %115 : vector<16x32xf32>
    %cst_44 = arith.constant dense<0.000000e+00> : vector<16x1xf32>
    %117 = tpu.matmul %116, %0, %cst_44 {dimension_numbers = #tpu.dot_dimension_numbers<[1], [0], [0], [1], [0, 0, 1, 1], [], []>} : vector<16x32xf32>, vector<32x1xf32>, vector<16x1xf32> -> vector<16x1xf32>
    %cst_45 = arith.constant 3.125000e-02 : f32
    %118 = vector.broadcast %cst_45 : f32 to vector<16x1xf32>
    %119 = arith.mulf %117, %118 : vector<16x1xf32>
    %120 = vector.broadcast %119 : vector<16x1xf32> to vector<16x32xf32>
    %121 = arith.subf %116, %120 : vector<16x32xf32>
    %122 = arith.mulf %121, %121 : vector<16x32xf32>
    %cst_46 = arith.constant dense<0.000000e+00> : vector<16x1xf32>
    %123 = tpu.matmul %122, %0, %cst_46 {dimension_numbers = #tpu.dot_dimension_numbers<[1], [0], [0], [1], [0, 0, 1, 1], [], []>} : vector<16x32xf32>, vector<32x1xf32>, vector<16x1xf32> -> vector<16x1xf32>
    %cst_47 = arith.constant 3.125000e-02 : f32
    %124 = vector.broadcast %cst_47 : f32 to vector<16x1xf32>
    %125 = arith.mulf %123, %124 : vector<16x1xf32>
    %cst_48 = arith.constant 9.99999996E-13 : f32
    %126 = vector.broadcast %cst_48 : f32 to vector<16x1xf32>
    %127 = arith.addf %125, %126 : vector<16x1xf32>
    %128 = math.rsqrt %127 : vector<16x1xf32>
    %129 = vector.broadcast %128 : vector<16x1xf32> to vector<16x32xf32>
    %130 = arith.mulf %121, %129 : vector<16x32xf32>
    %131 = vector.broadcast %39 : vector<1x32xf32> to vector<16x32xf32>
    %132 = arith.mulf %130, %131 : vector<16x32xf32>
    %133 = vector.broadcast %40 : vector<1x32xf32> to vector<16x32xf32>
    %134 = arith.addf %132, %133 : vector<16x32xf32>
    %c160 = arith.constant 160 : index
    %c0_49 = arith.constant 0 : index
    %135 = vector.load %arg3[%c160, %c0_49] : memref<320x128xf32, #tpu.memory_space<vmem>>, vector<32x96xf32>
    %c192 = arith.constant 192 : index
    %c0_50 = arith.constant 0 : index
    %136 = vector.load %arg3[%c192, %c0_50] : memref<320x128xf32, #tpu.memory_space<vmem>>, vector<32x32xf32>
    %c224 = arith.constant 224 : index
    %c0_51 = arith.constant 0 : index
    %137 = vector.load %arg3[%c224, %c0_51] : memref<320x128xf32, #tpu.memory_space<vmem>>, vector<32x64xf32>
    %c256 = arith.constant 256 : index
    %c0_52 = arith.constant 0 : index
    %138 = vector.load %arg3[%c256, %c0_52] : memref<320x128xf32, #tpu.memory_space<vmem>>, vector<64x32xf32>
    %c10 = arith.constant 10 : index
    %c0_53 = arith.constant 0 : index
    %139 = vector.load %arg2[%c10, %c0_53] : memref<18x128xf32, #tpu.memory_space<vmem>>, vector<1x96xf32>
    %c11 = arith.constant 11 : index
    %c0_54 = arith.constant 0 : index
    %140 = vector.load %arg2[%c11, %c0_54] : memref<18x128xf32, #tpu.memory_space<vmem>>, vector<1x32xf32>
    %c12 = arith.constant 12 : index
    %c0_55 = arith.constant 0 : index
    %141 = vector.load %arg2[%c12, %c0_55] : memref<18x128xf32, #tpu.memory_space<vmem>>, vector<1x32xf32>
    %c13 = arith.constant 13 : index
    %c0_56 = arith.constant 0 : index
    %142 = vector.load %arg2[%c13, %c0_56] : memref<18x128xf32, #tpu.memory_space<vmem>>, vector<1x32xf32>
    %c14 = arith.constant 14 : index
    %c0_57 = arith.constant 0 : index
    %143 = vector.load %arg2[%c14, %c0_57] : memref<18x128xf32, #tpu.memory_space<vmem>>, vector<1x64xf32>
    %c15 = arith.constant 15 : index
    %c0_58 = arith.constant 0 : index
    %144 = vector.load %arg2[%c15, %c0_58] : memref<18x128xf32, #tpu.memory_space<vmem>>, vector<1x32xf32>
    %c16 = arith.constant 16 : index
    %c0_59 = arith.constant 0 : index
    %145 = vector.load %arg2[%c16, %c0_59] : memref<18x128xf32, #tpu.memory_space<vmem>>, vector<1x32xf32>
    %c17 = arith.constant 17 : index
    %c0_60 = arith.constant 0 : index
    %146 = vector.load %arg2[%c17, %c0_60] : memref<18x128xf32, #tpu.memory_space<vmem>>, vector<1x32xf32>
    %cst_61 = arith.constant dense<0.000000e+00> : vector<16x96xf32>
    %147 = tpu.matmul %134, %135, %cst_61 {dimension_numbers = #tpu.dot_dimension_numbers<[1], [0], [0], [1], [0, 0, 1, 1], [], []>} : vector<16x32xf32>, vector<32x96xf32>, vector<16x96xf32> -> vector<16x96xf32>
    %148 = vector.broadcast %139 : vector<1x96xf32> to vector<16x96xf32>
    %149 = arith.addf %147, %148 : vector<16x96xf32>
    %150 = vector.extract_strided_slice %149 {offsets = [0, 0], sizes = [16, 16], strides = [1, 1]} : vector<16x96xf32> to vector<16x16xf32>
    %151 = vector.extract_strided_slice %149 {offsets = [0, 16], sizes = [16, 16], strides = [1, 1]} : vector<16x96xf32> to vector<16x16xf32>
    %152 = tpu.concatenate %150, %151 in 0 : vector<16x16xf32>, vector<16x16xf32> -> vector<32x16xf32>
    %153 = vector.shape_cast %152 : vector<32x16xf32> to vector<4x8x16xf32>
    %154 = vector.extract_strided_slice %149 {offsets = [0, 32], sizes = [16, 16], strides = [1, 1]} : vector<16x96xf32> to vector<16x16xf32>
    %155 = vector.extract_strided_slice %149 {offsets = [0, 48], sizes = [16, 16], strides = [1, 1]} : vector<16x96xf32> to vector<16x16xf32>
    %156 = tpu.concatenate %154, %155 in 0 : vector<16x16xf32>, vector<16x16xf32> -> vector<32x16xf32>
    %157 = vector.shape_cast %156 : vector<32x16xf32> to vector<4x8x16xf32>
    %158 = vector.extract_strided_slice %149 {offsets = [0, 64], sizes = [16, 16], strides = [1, 1]} : vector<16x96xf32> to vector<16x16xf32>
    %159 = vector.extract_strided_slice %149 {offsets = [0, 80], sizes = [16, 16], strides = [1, 1]} : vector<16x96xf32> to vector<16x16xf32>
    %160 = tpu.concatenate %158, %159 in 0 : vector<16x16xf32>, vector<16x16xf32> -> vector<32x16xf32>
    %161 = vector.shape_cast %160 : vector<32x16xf32> to vector<4x8x16xf32>
    "tpu.trace_start"() <{level = 10 : i32, message = "bqd,bkd->bqk"}> : () -> ()
    %cst_62 = arith.constant dense<0.000000e+00> : vector<4x8x8xf32>
    %162 = tpu.matmul %153, %157, %cst_62 {dimension_numbers = #tpu.dot_dimension_numbers<[2], [2], [1], [1], [0, 0, 0, 1, 1, 1], [0], [0]>} : vector<4x8x16xf32>, vector<4x8x16xf32>, vector<4x8x8xf32> -> vector<4x8x8xf32>
    "tpu.trace_stop"() : () -> ()
    %cst_63 = arith.constant 2.500000e-01 : f32
    %163 = vector.broadcast %cst_63 : f32 to vector<4x8x8xf32>
    %164 = arith.mulf %162, %163 : vector<4x8x8xf32>
    %165 = vector.broadcast %28 : vector<4x1x8xf32> to vector<4x8x8xf32>
    %166 = arith.addf %164, %165 : vector<4x8x8xf32>
    %cst_64 = arith.constant dense<0xFF800000> : vector<4x8xf32>
    %167 = vector.multi_reduction <maximumf>, %166, %cst_64 [2] : vector<4x8x8xf32> to vector<4x8xf32>
    %168 = vector.shape_cast %167 : vector<4x8xf32> to vector<4x8x1xf32>
    %169 = vector.broadcast %168 : vector<4x8x1xf32> to vector<4x8x8xf32>
    %170 = arith.subf %166, %169 : vector<4x8x8xf32>
    %171 = math.exp %170 : vector<4x8x8xf32>
    %cst_65 = arith.constant dense<0.000000e+00> : vector<4x8xf32>
    %172 = vector.multi_reduction <add>, %171, %cst_65 [2] : vector<4x8x8xf32> to vector<4x8xf32>
    %173 = vector.shape_cast %172 : vector<4x8xf32> to vector<4x8x1xf32>
    %174 = vector.broadcast %173 : vector<4x8x1xf32> to vector<4x8x8xf32>
    %175 = arith.divf %171, %174 : vector<4x8x8xf32>
    "tpu.trace_start"() <{level = 10 : i32, message = "bqk,bkd->bqd"}> : () -> ()
    %cst_66 = arith.constant dense<0.000000e+00> : vector<4x8x16xf32>
    %176 = tpu.matmul %175, %161, %cst_66 {dimension_numbers = #tpu.dot_dimension_numbers<[2], [1], [1], [2], [0, 0, 0, 1, 1, 2], [0], [0]>} : vector<4x8x8xf32>, vector<4x8x16xf32>, vector<4x8x16xf32> -> vector<4x8x16xf32>
    "tpu.trace_stop"() : () -> ()
    %177 = vector.extract_strided_slice %176 {offsets = [0, 0, 0], sizes = [2, 8, 16], strides = [1, 1, 1]} : vector<4x8x16xf32> to vector<2x8x16xf32>
    %178 = vector.extract_strided_slice %176 {offsets = [2, 0, 0], sizes = [2, 8, 16], strides = [1, 1, 1]} : vector<4x8x16xf32> to vector<2x8x16xf32>
    %179 = tpu.concatenate %177, %178 in 2 : vector<2x8x16xf32>, vector<2x8x16xf32> -> vector<2x8x32xf32>
    %180 = vector.shape_cast %179 : vector<2x8x32xf32> to vector<16x32xf32>
    %cst_67 = arith.constant dense<0.000000e+00> : vector<16x32xf32>
    %181 = tpu.matmul %180, %136, %cst_67 {dimension_numbers = #tpu.dot_dimension_numbers<[1], [0], [0], [1], [0, 0, 1, 1], [], []>} : vector<16x32xf32>, vector<32x32xf32>, vector<16x32xf32> -> vector<16x32xf32>
    %182 = vector.broadcast %140 : vector<1x32xf32> to vector<16x32xf32>
    %183 = arith.addf %181, %182 : vector<16x32xf32>
    %184 = arith.addf %134, %183 : vector<16x32xf32>
    %cst_68 = arith.constant dense<0.000000e+00> : vector<16x1xf32>
    %185 = tpu.matmul %184, %0, %cst_68 {dimension_numbers = #tpu.dot_dimension_numbers<[1], [0], [0], [1], [0, 0, 1, 1], [], []>} : vector<16x32xf32>, vector<32x1xf32>, vector<16x1xf32> -> vector<16x1xf32>
    %cst_69 = arith.constant 3.125000e-02 : f32
    %186 = vector.broadcast %cst_69 : f32 to vector<16x1xf32>
    %187 = arith.mulf %185, %186 : vector<16x1xf32>
    %188 = vector.broadcast %187 : vector<16x1xf32> to vector<16x32xf32>
    %189 = arith.subf %184, %188 : vector<16x32xf32>
    %190 = arith.mulf %189, %189 : vector<16x32xf32>
    %cst_70 = arith.constant dense<0.000000e+00> : vector<16x1xf32>
    %191 = tpu.matmul %190, %0, %cst_70 {dimension_numbers = #tpu.dot_dimension_numbers<[1], [0], [0], [1], [0, 0, 1, 1], [], []>} : vector<16x32xf32>, vector<32x1xf32>, vector<16x1xf32> -> vector<16x1xf32>
    %cst_71 = arith.constant 3.125000e-02 : f32
    %192 = vector.broadcast %cst_71 : f32 to vector<16x1xf32>
    %193 = arith.mulf %191, %192 : vector<16x1xf32>
    %cst_72 = arith.constant 9.99999996E-13 : f32
    %194 = vector.broadcast %cst_72 : f32 to vector<16x1xf32>
    %195 = arith.addf %193, %194 : vector<16x1xf32>
    %196 = math.rsqrt %195 : vector<16x1xf32>
    %197 = vector.broadcast %196 : vector<16x1xf32> to vector<16x32xf32>
    %198 = arith.mulf %189, %197 : vector<16x32xf32>
    %199 = vector.broadcast %141 : vector<1x32xf32> to vector<16x32xf32>
    %200 = arith.mulf %198, %199 : vector<16x32xf32>
    %201 = vector.broadcast %142 : vector<1x32xf32> to vector<16x32xf32>
    %202 = arith.addf %200, %201 : vector<16x32xf32>
    %cst_73 = arith.constant dense<0.000000e+00> : vector<16x64xf32>
    %203 = tpu.matmul %202, %137, %cst_73 {dimension_numbers = #tpu.dot_dimension_numbers<[1], [0], [0], [1], [0, 0, 1, 1], [], []>} : vector<16x32xf32>, vector<32x64xf32>, vector<16x64xf32> -> vector<16x64xf32>
    %204 = vector.broadcast %143 : vector<1x64xf32> to vector<16x64xf32>
    %205 = arith.addf %203, %204 : vector<16x64xf32>
    %206 = arith.mulf %205, %205 : vector<16x64xf32>
    %207 = arith.mulf %205, %206 : vector<16x64xf32>
    %cst_74 = arith.constant 4.471500e-02 : f32
    %208 = vector.broadcast %cst_74 : f32 to vector<16x64xf32>
    %209 = arith.mulf %208, %207 : vector<16x64xf32>
    %210 = arith.addf %205, %209 : vector<16x64xf32>
    %cst_75 = arith.constant 0.797884583 : f32
    %211 = vector.broadcast %cst_75 : f32 to vector<16x64xf32>
    %212 = arith.mulf %211, %210 : vector<16x64xf32>
    %213 = math.tanh %212 : vector<16x64xf32>
    %cst_76 = arith.constant 1.000000e+00 : f32
    %214 = vector.broadcast %cst_76 : f32 to vector<16x64xf32>
    %215 = arith.addf %214, %213 : vector<16x64xf32>
    %cst_77 = arith.constant 5.000000e-01 : f32
    %216 = vector.broadcast %cst_77 : f32 to vector<16x64xf32>
    %217 = arith.mulf %216, %215 : vector<16x64xf32>
    %218 = arith.mulf %205, %217 : vector<16x64xf32>
    %cst_78 = arith.constant dense<0.000000e+00> : vector<16x32xf32>
    %219 = tpu.matmul %218, %138, %cst_78 {dimension_numbers = #tpu.dot_dimension_numbers<[1], [0], [0], [1], [0, 0, 1, 1], [], []>} : vector<16x64xf32>, vector<64x32xf32>, vector<16x32xf32> -> vector<16x32xf32>
    %220 = vector.broadcast %144 : vector<1x32xf32> to vector<16x32xf32>
    %221 = arith.addf %219, %220 : vector<16x32xf32>
    %222 = arith.addf %202, %221 : vector<16x32xf32>
    %cst_79 = arith.constant dense<0.000000e+00> : vector<16x1xf32>
    %223 = tpu.matmul %222, %0, %cst_79 {dimension_numbers = #tpu.dot_dimension_numbers<[1], [0], [0], [1], [0, 0, 1, 1], [], []>} : vector<16x32xf32>, vector<32x1xf32>, vector<16x1xf32> -> vector<16x1xf32>
    %cst_80 = arith.constant 3.125000e-02 : f32
    %224 = vector.broadcast %cst_80 : f32 to vector<16x1xf32>
    %225 = arith.mulf %223, %224 : vector<16x1xf32>
    %226 = vector.broadcast %225 : vector<16x1xf32> to vector<16x32xf32>
    %227 = arith.subf %222, %226 : vector<16x32xf32>
    %228 = arith.mulf %227, %227 : vector<16x32xf32>
    %cst_81 = arith.constant dense<0.000000e+00> : vector<16x1xf32>
    %229 = tpu.matmul %228, %0, %cst_81 {dimension_numbers = #tpu.dot_dimension_numbers<[1], [0], [0], [1], [0, 0, 1, 1], [], []>} : vector<16x32xf32>, vector<32x1xf32>, vector<16x1xf32> -> vector<16x1xf32>
    %cst_82 = arith.constant 3.125000e-02 : f32
    %230 = vector.broadcast %cst_82 : f32 to vector<16x1xf32>
    %231 = arith.mulf %229, %230 : vector<16x1xf32>
    %cst_83 = arith.constant 9.99999996E-13 : f32
    %232 = vector.broadcast %cst_83 : f32 to vector<16x1xf32>
    %233 = arith.addf %231, %232 : vector<16x1xf32>
    %234 = math.rsqrt %233 : vector<16x1xf32>
    %235 = vector.broadcast %234 : vector<16x1xf32> to vector<16x32xf32>
    %236 = arith.mulf %227, %235 : vector<16x32xf32>
    %237 = vector.broadcast %145 : vector<1x32xf32> to vector<16x32xf32>
    %238 = arith.mulf %236, %237 : vector<16x32xf32>
    %239 = vector.broadcast %146 : vector<1x32xf32> to vector<16x32xf32>
    %240 = arith.addf %238, %239 : vector<16x32xf32>
    %241 = vector.shape_cast %240 : vector<16x32xf32> to vector<2x8x32xf32>
    %cst_84 = arith.constant dense<0.000000e+00> : vector<2x32xf32>
    %242 = vector.multi_reduction <add>, %241, %cst_84 [1] : vector<2x8x32xf32> to vector<2x32xf32>
    %cst_85 = arith.constant 8.000000e+00 : f32
    %243 = vector.broadcast %cst_85 : f32 to vector<2x32xf32>
    %244 = arith.divf %242, %243 : vector<2x32xf32>
    %c0_86 = arith.constant 0 : index
    %c0_87 = arith.constant 0 : index
    %245 = vector.load %arg4[%c0_86, %c0_87] : memref<2x32xf32, #tpu.memory_space<vmem>>, vector<2x32xf32>
    tpu.vector_store %arg4[%c0_86, %c0_87], %244 {strides = array<i32>} : memref<2x32xf32, #tpu.memory_space<vmem>>, vector<2x32xf32>,
    return
  }
}

</mosaic_0001>

<llo_original>
// kernel: tpu_custom_call.1
$region0: #{tpu_custom_call.1}
  #allocation0 [shape = 'u32[]', space=smem, size = 0x4, offset = 0x4, fixed_abs, tag = 'smem constant byte address 0x4 - core index']
  #allocation1 [shape = 'u32[144,128]{1,0:T(1,128)}', space=vmem, size = 0x12000, scoped, tag = 'internal scratch']
  %s0 = inlined_call_operand.hbm [shape: f32[16,32], index: 0, kind: input, shape index: {}]
  %s1 = inlined_call_operand.vmem [shape: f32[2,8], index: 1, kind: input, shape index: {}]
  %s2 = inlined_call_operand.hbm [shape: f32[18,128], index: 2, kind: input, shape index: {}]
  %s3 = inlined_call_operand.hbm [shape: f32[320,128], index: 3, kind: input, shape index: {}]
  %s4 = inlined_call_operand.hbm [shape: f32[2,32], index: 4, kind: output, shape index: {}]
  %s5 = sld [smem:[#allocation0]]
  $region38: #{tpu_custom_call.1} parent=0
    _
  %s7 = ssub.s32 1, %s5
  %s8 = scalar_select 0, %s7, %s5
  $region1: #{tpu_custom_call.1} parent=0
    #allocation2 [shape = 'u8[8192]{0}', space=vmem, size = 0x2000, scoped, tag = 'input window, operand 0, single buffered']
    #allocation3 [shape = 's32[1]{0}', space=sflag, size = 0x4, scoped, tag = 'scoped memory for tpu_custom_call.1']
    #allocation4 [shape = 's32[1]{0}', space=sflag, size = 0x4, scoped, tag = 'scoped memory for tpu_custom_call.1']
    #allocation5 [shape = 'u8[12288]{0}', space=vmem, size = 0x3000, scoped, tag = 'input window, operand 2, single buffered']
    #allocation6 [shape = 's32[1]{0}', space=sflag, size = 0x4, scoped, tag = 'scoped memory for tpu_custom_call.1']
    #allocation7 [shape = 'u8[163840]{0}', space=vmem, size = 0x28000, scoped, tag = 'input window, operand 3, single buffered']
    #allocation8 [shape = 'u8[1024]{0}', space=vmem, size = 0x400, scoped, tag = 'output window, operand 0, single buffered']
    %9 = vsyncpa [#allocation3], 0
    %10 = vsyncpa [#allocation6], 0
    %11 = vsyncpa [#allocation4], 0
    // Predicated region
    $region2: #{tpu_custom_call.1} parent=1 // pred_check
      _
    $region3: #{tpu_custom_call.1} parent=1 // pred_check_branch
      %13 = sbr.rel (0) target = $region5
    $region4: #{tpu_custom_call.1} parent=1 // pred_region
      %s15 = ssub.s32 256, 256
      %16 = vsyncadd [#allocation3], %s15
      %s17 = sshll.u32 [#allocation2], 4
      %s18 = int_to_ptr.vmem [resolvable:$true] %s17
      %23 = dma.hbm_to_vmem [thread:$0]  %s0, 256, %s18, [#allocation3], 128, 128, 8
    $region5: #{tpu_custom_call.1} parent=1 // pred_fallthru
      _
    // Predicated region
    $region6: #{tpu_custom_call.1} parent=1 // pred_check
      _
    $region7: #{tpu_custom_call.1} parent=1 // pred_check_branch
      %25 = sbr.rel (0) target = $region9
    $region8: #{tpu_custom_call.1} parent=1 // pred_region
      _
    $region9: #{tpu_custom_call.1} parent=1 // pred_fallthru
      _
    // Predicated region
    $region10: #{tpu_custom_call.1} parent=1 // pred_check
      _
    $region11: #{tpu_custom_call.1} parent=1 // pred_check_branch
      %27 = sbr.rel (0) target = $region13
    $region12: #{tpu_custom_call.1} parent=1 // pred_region
      %s29 = ssub.s32 384, 384
      %30 = vsyncadd [#allocation6], %s29
      %s31 = sshll.u32 [#allocation5], 4
      %s32 = int_to_ptr.vmem [resolvable:$true] %s31
      %37 = dma.hbm_to_vmem [thread:$0]  %s2, 384, %s32, [#allocation6], 128, 128, 8
    $region13: #{tpu_custom_call.1} parent=1 // pred_fallthru
      _
    // Predicated region
    $region14: #{tpu_custom_call.1} parent=1 // pred_check
      _
    $region15: #{tpu_custom_call.1} parent=1 // pred_check_branch
      %39 = sbr.rel (0) target = $region17
    $region16: #{tpu_custom_call.1} parent=1 // pred_region
      %s41 = ssub.s32 5120, 5120
      %42 = vsyncadd [#allocation6], %s41
      %s43 = sshll.u32 [#allocation7], 4
      %s44 = int_to_ptr.vmem [resolvable:$true] %s43
      %49 = dma.hbm_to_vmem [thread:$0]  %s3, 5120, %s44, [#allocation6], 128, 128, 8
    $region17: #{tpu_custom_call.1} parent=1 // pred_fallthru
      _
    // Predicated region
    $region18: #{tpu_custom_call.1} parent=1 // pred_check
      _
    $region19: #{tpu_custom_call.1} parent=1 // pred_check_branch
      %51 = sbr.rel (0) target = $region21
    $region20: #{tpu_custom_call.1} parent=1 // pred_region
      %52 = dma.done [#allocation3], 256
    $region21: #{tpu_custom_call.1} parent=1 // pred_fallthru
      _
    // Predicated region
    $region22: #{tpu_custom_call.1} parent=1 // pred_check
      _
    $region23: #{tpu_custom_call.1} parent=1 // pred_check_branch
      %54 = sbr.rel (0) target = $region25
    $region24: #{tpu_custom_call.1} parent=1 // pred_region
      %55 = dma.done [#allocation6], 384
    $region25: #{tpu_custom_call.1} parent=1 // pred_fallthru
      _
    // Predicated region
    $region26: #{tpu_custom_call.1} parent=1 // pred_check
      _
    $region27: #{tpu_custom_call.1} parent=1 // pred_check_branch
      %57 = sbr.rel (0) target = $region29
    $region28: #{tpu_custom_call.1} parent=1 // pred_region
      %58 = dma.done [#allocation6], 5120
    $region29: #{tpu_custom_call.1} parent=1 // pred_fallthru
      _
    %v59 = vld [vmem:[#allocation2] sm:$0xff]
    %v60 = vld [vmem:[#allocation2 + $0x8] sm:$0xff]
    %v61 = vld [vmem:[#allocation5] sm:$0x1]
    %v62 = vld [vmem:[#allocation5 + $0x1] sm:$0x1]
    %vm63 = vcmask 261120
    %v65 = vsel %vm63, %v59, 0
    %v68 = vsel %vm63, %v60, 0
    %70 = vmatprep.subr.mxu0 0.0
    %71 = vmatpush1.msra.mxu0 1.0
    %72 = vmatprep.subr.mxu0 0.0
    %73 = vmatpush1.msra.mxu0 1.0
    %74 = vmatprep.subr.mxu0 0.0
    %75 = vmatpush1.msra.mxu0 1.0
    %76 = vmatprep.subr.mxu0 0.0
    %77 = vmatpush1.msra.mxu0 1.0
    %78 = vmatprep.subr.mxu0 0.0
    %79 = vmatpush1.msra.mxu0 0.0
    %80 = vmatprep.subr.mxu0 0.0
    %81 = vmatpush1.msra.mxu0 0.0
    %82 = vmatprep.subr.mxu0 0.0
    %83 = vmatpush1.msra.mxu0 0.0
    %84 = vmatprep.subr.mxu0 0.0
    %85 = vmatpush1.msra.mxu0 0.0
    %86 = vmatprep.subr.mxu0 0.0
    %87 = vmatpush1.msra.mxu0 0.0
    %88 = vmatprep.subr.mxu0 0.0
    %89 = vmatpush1.msra.mxu0 0.0
    %90 = vmatprep.subr.mxu0 0.0
    %91 = vmatpush1.msra.mxu0 0.0
    %92 = vmatprep.subr.mxu0 0.0
    %93 = vmatpush1.msra.mxu0 0.0
    %94 = vmatprep.subr.mxu0 0.0
    %95 = vmatpush1.msra.mxu0 0.0
    %96 = vmatprep.subr.mxu0 0.0
    %97 = vmatpush1.msra.mxu0 0.0
    %98 = vmatprep.subr.mxu0 0.0
    %99 = vmatpush1.msra.mxu0 0.0
    %100 = vmatprep.subr.mxu0 0.0
    %101 = vmatpush1.msra.mxu0 0.0
    %102 = vmatprep.subr.mxu0 0.0
    %103 = vmatpush1.msra.mxu0 0.0
    %104 = vmatprep.subr.mxu0 0.0
    %105 = vmatpush1.msra.mxu0 0.0
    %106 = vmatprep.subr.mxu0 0.0
    %107 = vmatpush1.msra.mxu0 0.0
    %108 = vmatprep.subr.mxu0 0.0
    %109 = vmatpush1.msra.mxu0 0.0
    %110 = vmatprep.subr.mxu0 0.0
    %111 = vmatpush1.msra.mxu0 0.0
    %112 = vmatprep.subr.mxu0 0.0
    %113 = vmatpush1.msra.mxu0 0.0
    %114 = vmatprep.subr.mxu0 0.0
    %115 = vmatpush1.msra.mxu0 0.0
    %116 = vmatprep.subr.mxu0 0.0
    %117 = vmatpush1.msra.mxu0 0.0
    %118 = vmatprep.subr.mxu0 0.0
    %119 = vmatpush1.msra.mxu0 0.0
    %120 = vmatprep.subr.mxu0 0.0
    %121 = vmatpush1.msra.mxu0 0.0
    %122 = vmatprep.subr.mxu0 0.0
    %123 = vmatpush1.msra.mxu0 0.0
    %124 = vmatprep.subr.mxu0 0.0
    %125 = vmatpush1.msra.mxu0 0.0
    %126 = vmatprep.subr.mxu0 0.0
    %127 = vmatpush1.msra.mxu0 0.0
    %128 = vmatprep.subr.mxu0 0.0
    %129 = vmatpush1.msra.mxu0 0.0
    %130 = vmatprep.subr.mxu0 0.0
    %131 = vmatpush1.msra.mxu0 0.0
    %132 = vmatprep.subr.mxu0 0.0
    %133 = vmatpush1.msra.mxu0 0.0
    %134 = vmatprep.mubr.f32.mxu0 0.0
    %135 = vmatmul.mubr.f32.gmra.mrb[0].mxu0 %v65
    %v136 = vpop.f32.mrb[0].mxu0
    %v137 = vadd.f32 0.0, %v136
    %v138 = vpop.f32.mrb[0].mxu0
    %139 = vmatprep.mubr.f32.mxu0 0.0
    %140 = vmatmul.mubr.f32.gmra.mrb[0].mxu0 %v68
    %v141 = vpop.f32.mrb[0].mxu0
    %v142 = vadd.f32 0.0, %v141
    %v143 = vpop.f32.mrb[0].mxu0
    %144 = vdwg.mxu0
    %v145 = vmul.f32 %v137, 0.03125
    %v146 = vmul.f32 %v142, 0.03125
    %148 = vset.pattern.permute.xlu0 0
    %149 = vperm.xlu0 %148, %v145
    %v150 = vpop.permute.xlu0 %149
    %153 = vset.pattern.permute.xlu0 0
    %154 = vperm.xlu0 %153, %v146
    %v155 = vpop.permute.xlu0 %154
    %v157 = vsub.f32 %v59, %v150
    %v158 = vsub.f32 %v60, %v155
    %v159 = vmul.f32 %v157, %v157
    %v160 = vmul.f32 %v158, %v158
    %v162 = vsel %vm63, %v159, 0
    %v165 = vsel %vm63, %v160, 0
    %167 = vmatprep.subr.mxu0 0.0
    %168 = vmatpush1.msra.mxu0 1.0
    %169 = vmatprep.subr.mxu0 0.0
    %170 = vmatpush1.msra.mxu0 1.0
    %171 = vmatprep.subr.mxu0 0.0
    %172 = vmatpush1.msra.mxu0 1.0
    %173 = vmatprep.subr.mxu0 0.0
    %174 = vmatpush1.msra.mxu0 1.0
    %175 = vmatprep.subr.mxu0 0.0
    %176 = vmatpush1.msra.mxu0 0.0
    %177 = vmatprep.subr.mxu0 0.0
    %178 = vmatpush1.msra.mxu0 0.0
    %179 = vmatprep.subr.mxu0 0.0
    %180 = vmatpush1.msra.mxu0 0.0
    %181 = vmatprep.subr.mxu0 0.0
    %182 = vmatpush1.msra.mxu0 0.0
    %183 = vmatprep.subr.mxu0 0.0
    %184 = vmatpush1.msra.mxu0 0.0
    %185 = vmatprep.subr.mxu0 0.0
    %186 = vmatpush1.msra.mxu0 0.0
    %187 = vmatprep.subr.mxu0 0.0
    %188 = vmatpush1.msra.mxu0 0.0
    %189 = vmatprep.subr.mxu0 0.0
    %190 = vmatpush1.msra.mxu0 0.0
    %191 = vmatprep.subr.mxu0 0.0
    %192 = vmatpush1.msra.mxu0 0.0
    %193 = vmatprep.subr.mxu0 0.0
    %194 = vmatpush1.msra.mxu0 0.0
    %195 = vmatprep.subr.mxu0 0.0
    %196 = vmatpush1.msra.mxu0 0.0
    %197 = vmatprep.subr.mxu0 0.0
    %198 = vmatpush1.msra.mxu0 0.0
    %199 = vmatprep.subr.mxu0 0.0
    %200 = vmatpush1.msra.mxu0 0.0
    %201 = vmatprep.subr.mxu0 0.0
    %202 = vmatpush1.msra.mxu0 0.0
    %203 = vmatprep.subr.mxu0 0.0
    %204 = vmatpush1.msra.mxu0 0.0
    %205 = vmatprep.subr.mxu0 0.0
    %206 = vmatpush1.msra.mxu0 0.0
    %207 = vmatprep.subr.mxu0 0.0
    %208 = vmatpush1.msra.mxu0 0.0
    %209 = vmatprep.subr.mxu0 0.0
    %210 = vmatpush1.msra.mxu0 0.0
    %211 = vmatprep.subr.mxu0 0.0
    %212 = vmatpush1.msra.mxu0 0.0
    %213 = vmatprep.subr.mxu0 0.0
    %214 = vmatpush1.msra.mxu0 0.0
    %215 = vmatprep.subr.mxu0 0.0
    %216 = vmatpush1.msra.mxu0 0.0
    %217 = vmatprep.subr.mxu0 0.0
    %218 = vmatpush1.msra.mxu0 0.0
    %219 = vmatprep.subr.mxu0 0.0
    %220 = vmatpush1.msra.mxu0 0.0
    %221 = vmatprep.subr.mxu0 0.0
    %222 = vmatpush1.msra.mxu0 0.0
    %223 = vmatprep.subr.mxu0 0.0
    %224 = vmatpush1.msra.mxu0 0.0
    %225 = vmatprep.subr.mxu0 0.0
    %226 = vmatpush1.msra.mxu0 0.0
    %227 = vmatprep.subr.mxu0 0.0
    %228 = vmatpush1.msra.mxu0 0.0
    %229 = vmatprep.subr.mxu0 0.0
    %230 = vmatpush1.msra.mxu0 0.0
    %231 = vmatprep.mubr.f32.mxu0 0.0
    %232 = vmatmul.mubr.f32.gmra.mrb[0].mxu0 %v162
    %v233 = vpop.f32.mrb[0].mxu0
    %v234 = vadd.f32 0.0, %v233
    %v235 = vpop.f32.mrb[0].mxu0
    %236 = vmatprep.mubr.f32.mxu0 0.0
    %237 = vmatmul.mubr.f32.gmra.mrb[0].mxu0 %v165
    %v238 = vpop.f32.mrb[0].mxu0
    %v239 = vadd.f32 0.0, %v238
    %v240 = vpop.f32.mrb[0].mxu0
    %241 = vdwg.mxu0
    %v242 = vmul.f32 %v234, 0.03125
    %v243 = vmul.f32 %v239, 0.03125
    %v244 = vadd.f32 %v242, 1e-12
    %v245 = vadd.f32 %v243, 1e-12
    %v246 = vrsqrt.pop %v244
    %v247 = vrsqrt.pop %v245
    %249 = vset.pattern.permute.xlu0 0
    %250 = vperm.xlu0 %249, %v246
    %v251 = vpop.permute.xlu0 %250
    %254 = vset.pattern.permute.xlu0 0
    %255 = vperm.xlu0 %254, %v247
    %v256 = vpop.permute.xlu0 %255
    %v258 = vmul.f32 %v157, %v251
    %v259 = vmul.f32 %v158, %v256
    %v260 = vlaneseq
    %v261 = vshrl.u32 %v260, 7
    %v262 = vsub.s32 0, %v261
    %v263 = vrot.slane %v61, %v262
    %v264 = vmul.f32 %v258, %v263
    %v265 = vmul.f32 %v259, %v263
    %v266 = vlaneseq
    %v267 = vshrl.u32 %v266, 7
    %v268 = vsub.s32 0, %v267
    %v269 = vrot.slane %v62, %v268
    %v270 = vadd.f32 %v264, %v269
    %v271 = vadd.f32 %v265, %v269
    %v272 = vld [vmem:[%s1] sm:$0x3]
    %v273 = vsub.f32 1.0, %v272
    %v274 = vmul.f32 %v273, -1e+09
    %v276 = vrot.slane %v274, 6
    %vm278 = vcmask 1041408
    %v279 = vsel %vm278, %v274, %v276
    %v282 = vunpack.c.l.s4 1966171168
    %v283 = vunpack.c.0.s8 %v282
    %v284 = vlaneseq
    %v285 = vshrl.u32 %v284, 7
    %v286 = vsub.s32 %v283, %v285
    %v287 = vrot.slane %v279, %v286
    %v288 = vcombine.high %v287, %v287
    %v290 = vunpack.c.l.s4 1966171168
    %v291 = vunpack.c.0.s8 %v290
    %v292 = vlaneseq
    %v293 = vshrl.u32 %v292, 7
    %v294 = vsub.s32 %v291, %v293
    %v295 = vrot.slane %v287, %v294
    %v297 = vunpack.c.l.s4 1966171168
    %v298 = vunpack.c.0.s8 %v297
    %v299 = vlaneseq
    %v300 = vshrl.u32 %v299, 7
    %v301 = vsub.s32 %v298, %v300
    %v302 = vrot.slane %v288, %v301
    %v303 = vcombine.high %v295, %v295
    %v304 = vcombine.high %v302, %v302
    %v305 = vld [vmem:[#allocation7] sm:$0xff]
    %v306 = vld [vmem:[#allocation7 + $0x8] sm:$0xff]
    %v307 = vld [vmem:[#allocation7 + $0x10] sm:$0xff]
    %v308 = vld [vmem:[#allocation7 + $0x18] sm:$0xff]
    %v309 = vld [vmem:[#allocation7 + $0x20] sm:$0xff]
    %v310 = vld [vmem:[#allocation7 + $0x28] sm:$0xff]
    %v311 = vld [vmem:[#allocation7 + $0x30] sm:$0xff]
    %v312 = vld [vmem:[#allocation7 + $0x38] sm:$0xff]
    %v313 = vld [vmem:[#allocation7 + $0x40] sm:$0xff]
    %v314 = vld [vmem:[#allocation7 + $0x48] sm:$0xff]
    %v315 = vld [vmem:[#allocation7 + $0x50] sm:$0xff]
    %v316 = vld [vmem:[#allocation7 + $0x58] sm:$0xff]
    %v317 = vld [vmem:[#allocation7 + $0x60] sm:$0xff]
    %v318 = vld [vmem:[#allocation7 + $0x68] sm:$0xff]
    %v319 = vld [vmem:[#allocation7 + $0x70] sm:$0xff]
    %v320 = vld [vmem:[#allocation7 + $0x78] sm:$0xff]
    %v321 = vld [vmem:[#allocation7 + $0x80] sm:$0xff]
    %v322 = vld [vmem:[#allocation7 + $0x88] sm:$0xff]
    %v323 = vld [vmem:[#allocation7 + $0x90] sm:$0xff]
    %v324 = vld [vmem:[#allocation7 + $0x98] sm:$0xff]
    %v325 = vld [vmem:[#allocation5 + $0x2] sm:$0x1]
    %v326 = vld [vmem:[#allocation5 + $0x3] sm:$0x1]
    %v327 = vld [vmem:[#allocation5 + $0x4] sm:$0x1]
    %v328 = vld [vmem:[#allocation5 + $0x5] sm:$0x1]
    %v329 = vld [vmem:[#allocation5 + $0x6] sm:$0x1]
    %v330 = vld [vmem:[#allocation5 + $0x7] sm:$0x1]
    %v331 = vld [vmem:[#allocation5 + $0x8] sm:$0x1]
    %v332 = vld [vmem:[#allocation5 + $0x9] sm:$0x1]
    %v333 = vlaneseq
    %v334 = vshrl.u32 %v333, 7
    %v335 = vsub.s32 0, %v334
    %v336 = vrot.slane %v325, %v335
    %v338 = vsel %vm63, %v270, 0
    %v341 = vsel %vm63, %v271, 0
    %343 = vmatprep.subr.mxu0 0.0
    %344 = vmatpush1.msra.mxu0 %v305
    %345 = vmatprep.subr.mxu0 0.0
    %346 = vmatpush1.msra.mxu0 %v306
    %347 = vmatprep.subr.mxu0 0.0
    %348 = vmatpush1.msra.mxu0 %v307
    %349 = vmatprep.subr.mxu0 0.0
    %350 = vmatpush1.msra.mxu0 %v308
    %351 = vmatprep.subr.mxu0 0.0
    %352 = vmatpush1.msra.mxu0 0.0
    %353 = vmatprep.subr.mxu0 0.0
    %354 = vmatpush1.msra.mxu0 0.0
    %355 = vmatprep.subr.mxu0 0.0
    %356 = vmatpush1.msra.mxu0 0.0
    %357 = vmatprep.subr.mxu0 0.0
    %358 = vmatpush1.msra.mxu0 0.0
    %359 = vmatprep.subr.mxu0 0.0
    %360 = vmatpush1.msra.mxu0 0.0
    %361 = vmatprep.subr.mxu0 0.0
    %362 = vmatpush1.msra.mxu0 0.0
    %363 = vmatprep.subr.mxu0 0.0
    %364 = vmatpush1.msra.mxu0 0.0
    %365 = vmatprep.subr.mxu0 0.0
    %366 = vmatpush1.msra.mxu0 0.0
    %367 = vmatprep.subr.mxu0 0.0
    %368 = vmatpush1.msra.mxu0 0.0
    %369 = vmatprep.subr.mxu0 0.0
    %370 = vmatpush1.msra.mxu0 0.0
    %371 = vmatprep.subr.mxu0 0.0
    %372 = vmatpush1.msra.mxu0 0.0
    %373 = vmatprep.subr.mxu0 0.0
    %374 = vmatpush1.msra.mxu0 0.0
    %375 = vmatprep.subr.mxu0 0.0
    %376 = vmatpush1.msra.mxu0 0.0
    %377 = vmatprep.subr.mxu0 0.0
    %378 = vmatpush1.msra.mxu0 0.0
    %379 = vmatprep.subr.mxu0 0.0
    %380 = vmatpush1.msra.mxu0 0.0
    %381 = vmatprep.subr.mxu0 0.0
    %382 = vmatpush1.msra.mxu0 0.0
    %383 = vmatprep.subr.mxu0 0.0
    %384 = vmatpush1.msra.mxu0 0.0
    %385 = vmatprep.subr.mxu0 0.0
    %386 = vmatpush1.msra.mxu0 0.0
    %387 = vmatprep.subr.mxu0 0.0
    %388 = vmatpush1.msra.mxu0 0.0
    %389 = vmatprep.subr.mxu0 0.0
    %390 = vmatpush1.msra.mxu0 0.0
    %391 = vmatprep.subr.mxu0 0.0
    %392 = vmatpush1.msra.mxu0 0.0
    %393 = vmatprep.subr.mxu0 0.0
    %394 = vmatpush1.msra.mxu0 0.0
    %395 = vmatprep.subr.mxu0 0.0
    %396 = vmatpush1.msra.mxu0 0.0
    %397 = vmatprep.subr.mxu0 0.0
    %398 = vmatpush1.msra.mxu0 0.0
    %399 = vmatprep.subr.mxu0 0.0
    %400 = vmatpush1.msra.mxu0 0.0
    %401 = vmatprep.subr.mxu0 0.0
    %402 = vmatpush1.msra.mxu0 0.0
    %403 = vmatprep.subr.mxu0 0.0
    %404 = vmatpush1.msra.mxu0 0.0
    %405 = vmatprep.subr.mxu0 0.0
    %406 = vmatpush1.msra.mxu0 0.0
    %407 = vmatprep.mubr.f32.mxu0 0.0
    %408 = vmatmul.mubr.f32.gmra.mrb[0].mxu0 %v338
    %v409 = vpop.f32.mrb[0].mxu0
    %v410 = vadd.f32 %v336, %v409
    %v411 = vpop.f32.mrb[0].mxu0
    %412 = vmatprep.mubr.f32.mxu0 0.0
    %413 = vmatmul.mubr.f32.gmra.mrb[0].mxu0 %v341
    %v414 = vpop.f32.mrb[0].mxu0
    %v415 = vadd.f32 %v336, %v414
    %v416 = vpop.f32.mrb[0].mxu0
    %417 = vdwg.mxu0
    %420 = vrot.lane.b32.xlu0 %v410, 112
    %v421 = vpop.permute.xlu0 %420
    %422 = vrot.lane.b32.xlu0 %v415, 112
    %v423 = vpop.permute.xlu0 %422
    %424 = vrot.lane.b32.xlu0 %v410, 96
    %v425 = vpop.permute.xlu0 %424
    %vm426 = vcmask 130048
    %v427 = vsel %vm426, %v410, 0
    %v429 = vsel %vm426, %v425, 0
    %431 = vmatprep.subr.mxu0 0.0
    %432 = vmatpush1.xpose.msra.mxu0 %v429
    %433 = vmatprep.subr.mxu0 0.0
    %434 = vmatpush1.xpose.msra.mxu0 0.0
    %435 = vmatprep.subr.mxu0 0.0
    %436 = vmatpush1.xpose.msra.mxu0 0.0
    %437 = vmatprep.subr.mxu0 0.0
    %438 = vmatpush1.xpose.msra.mxu0 0.0
    %439 = vmatprep.subr.mxu0 0.0
    %440 = vmatpush1.xpose.msra.mxu0 0.0
    %441 = vmatprep.subr.mxu0 0.0
    %442 = vmatpush1.xpose.msra.mxu0 0.0
    %443 = vmatprep.subr.mxu0 0.0
    %444 = vmatpush1.xpose.msra.mxu0 0.0
    %445 = vmatprep.subr.mxu0 0.0
    %446 = vmatpush1.xpose.msra.mxu0 0.0
    %447 = vmatprep.subr.mxu0 0.0
    %448 = vmatpush1.xpose.msra.mxu0 0.0
    %449 = vmatprep.subr.mxu0 0.0
    %450 = vmatpush1.xpose.msra.mxu0 0.0
    %451 = vmatprep.subr.mxu0 0.0
    %452 = vmatpush1.xpose.msra.mxu0 0.0
    %453 = vmatprep.subr.mxu0 0.0
    %454 = vmatpush1.xpose.msra.mxu0 0.0
    %455 = vmatprep.subr.mxu0 0.0
    %456 = vmatpush1.xpose.msra.mxu0 0.0
    %457 = vmatprep.subr.mxu0 0.0
    %458 = vmatpush1.xpose.msra.mxu0 0.0
    %459 = vmatprep.subr.mxu0 0.0
    %460 = vmatpush1.xpose.msra.mxu0 0.0
    %461 = vmatprep.subr.mxu0 0.0
    %462 = vmatpush1.xpose.msra.mxu0 0.0
    %463 = vmatprep.subr.mxu0 0.0
    %464 = vmatpush1.xpose.msra.mxu0 0.0
    %465 = vmatprep.subr.mxu0 0.0
    %466 = vmatpush1.xpose.msra.mxu0 0.0
    %467 = vmatprep.subr.mxu0 0.0
    %468 = vmatpush1.xpose.msra.mxu0 0.0
    %469 = vmatprep.subr.mxu0 0.0
    %470 = vmatpush1.xpose.msra.mxu0 0.0
    %471 = vmatprep.subr.mxu0 0.0
    %472 = vmatpush1.xpose.msra.mxu0 0.0
    %473 = vmatprep.subr.mxu0 0.0
    %474 = vmatpush1.xpose.msra.mxu0 0.0
    %475 = vmatprep.subr.mxu0 0.0
    %476 = vmatpush1.xpose.msra.mxu0 0.0
    %477 = vmatprep.subr.mxu0 0.0
    %478 = vmatpush1.xpose.msra.mxu0 0.0
    %479 = vmatprep.subr.mxu0 0.0
    %480 = vmatpush1.xpose.msra.mxu0 0.0
    %481 = vmatprep.subr.mxu0 0.0
    %482 = vmatpush1.xpose.msra.mxu0 0.0
    %483 = vmatprep.subr.mxu0 0.0
    %484 = vmatpush1.xpose.msra.mxu0 0.0
    %485 = vmatprep.subr.mxu0 0.0
    %486 = vmatpush1.xpose.msra.mxu0 0.0
    %487 = vmatprep.subr.mxu0 0.0
    %488 = vmatpush1.xpose.msra.mxu0 0.0
    %489 = vmatprep.subr.mxu0 0.0
    %490 = vmatpush1.xpose.msra.mxu0 0.0
    %491 = vmatprep.subr.mxu0 0.0
    %492 = vmatpush1.xpose.msra.mxu0 0.0
    %493 = vmatprep.subr.mxu0 0.0
    %494 = vmatpush1.xpose.msra.mxu0 0.0
    %495 = vmatprep.mubr.f32.mxu0 0.0
    %496 = vmatmul.mubr.f32.gmra.mrb[0].mxu0 %v427
    %v497 = vpop.f32.mrb[0].mxu0
    %v498 = vadd.f32 0.0, %v497
    %v499 = vpop.f32.mrb[0].mxu0
    %500 = vdwg.mxu0
    %501 = vrot.lane.b32.xlu0 %v415, 96
    %v502 = vpop.permute.xlu0 %501
    %v503 = vsel %vm426, %v415, 0
    %v505 = vsel %vm426, %v502, 0
    %507 = vmatprep.subr.mxu0 0.0
    %508 = vmatpush1.xpose.msra.mxu0 %v505
    %509 = vmatprep.subr.mxu0 0.0
    %510 = vmatpush1.xpose.msra.mxu0 0.0
    %511 = vmatprep.subr.mxu0 0.0
    %512 = vmatpush1.xpose.msra.mxu0 0.0
    %513 = vmatprep.subr.mxu0 0.0
    %514 = vmatpush1.xpose.msra.mxu0 0.0
    %515 = vmatprep.subr.mxu0 0.0
    %516 = vmatpush1.xpose.msra.mxu0 0.0
    %517 = vmatprep.subr.mxu0 0.0
    %518 = vmatpush1.xpose.msra.mxu0 0.0
    %519 = vmatprep.subr.mxu0 0.0
    %520 = vmatpush1.xpose.msra.mxu0 0.0
    %521 = vmatprep.subr.mxu0 0.0
    %522 = vmatpush1.xpose.msra.mxu0 0.0
    %523 = vmatprep.subr.mxu0 0.0
    %524 = vmatpush1.xpose.msra.mxu0 0.0
    %525 = vmatprep.subr.mxu0 0.0
    %526 = vmatpush1.xpose.msra.mxu0 0.0
    %527 = vmatprep.subr.mxu0 0.0
    %528 = vmatpush1.xpose.msra.mxu0 0.0
    %529 = vmatprep.subr.mxu0 0.0
    %530 = vmatpush1.xpose.msra.mxu0 0.0
    %531 = vmatprep.subr.mxu0 0.0
    %532 = vmatpush1.xpose.msra.mxu0 0.0
    %533 = vmatprep.subr.mxu0 0.0
    %534 = vmatpush1.xpose.msra.mxu0 0.0
    %535 = vmatprep.subr.mxu0 0.0
    %536 = vmatpush1.xpose.msra.mxu0 0.0
    %537 = vmatprep.subr.mxu0 0.0
    %538 = vmatpush1.xpose.msra.mxu0 0.0
    %539 = vmatprep.subr.mxu0 0.0
    %540 = vmatpush1.xpose.msra.mxu0 0.0
    %541 = vmatprep.subr.mxu0 0.0
    %542 = vmatpush1.xpose.msra.mxu0 0.0
    %543 = vmatprep.subr.mxu0 0.0
    %544 = vmatpush1.xpose.msra.mxu0 0.0
    %545 = vmatprep.subr.mxu0 0.0
    %546 = vmatpush1.xpose.msra.mxu0 0.0
    %547 = vmatprep.subr.mxu0 0.0
    %548 = vmatpush1.xpose.msra.mxu0 0.0
    %549 = vmatprep.subr.mxu0 0.0
    %550 = vmatpush1.xpose.msra.mxu0 0.0
    %551 = vmatprep.subr.mxu0 0.0
    %552 = vmatpush1.xpose.msra.mxu0 0.0
    %553 = vmatprep.subr.mxu0 0.0
    %554 = vmatpush1.xpose.msra.mxu0 0.0
    %555 = vmatprep.subr.mxu0 0.0
    %556 = vmatpush1.xpose.msra.mxu0 0.0
    %557 = vmatprep.subr.mxu0 0.0
    %558 = vmatpush1.xpose.msra.mxu0 0.0
    %559 = vmatprep.subr.mxu0 0.0
    %560 = vmatpush1.xpose.msra.mxu0 0.0
    %561 = vmatprep.subr.mxu0 0.0
    %562 = vmatpush1.xpose.msra.mxu0 0.0
    %563 = vmatprep.subr.mxu0 0.0
    %564 = vmatpush1.xpose.msra.mxu0 0.0
    %565 = vmatprep.subr.mxu0 0.0
    %566 = vmatpush1.xpose.msra.mxu0 0.0
    %567 = vmatprep.subr.mxu0 0.0
    %568 = vmatpush1.xpose.msra.mxu0 0.0
    %569 = vmatprep.subr.mxu0 0.0
    %570 = vmatpush1.xpose.msra.mxu0 0.0
    %571 = vmatprep.mubr.f32.mxu0 0.0
    %572 = vmatmul.mubr.f32.gmra.mrb[0].mxu0 %v503
    %v573 = vpop.f32.mrb[0].mxu0
    %v574 = vadd.f32 0.0, %v573
    %v575 = vpop.f32.mrb[0].mxu0
    %576 = vdwg.mxu0
    %577 = vrot.lane.b32.xlu0 %v421, 96
    %v578 = vpop.permute.xlu0 %577
    %v579 = vsel %vm426, %v421, 0
    %v581 = vsel %vm426, %v578, 0
    %583 = vmatprep.subr.mxu0 0.0
    %584 = vmatpush1.xpose.msra.mxu0 %v581
    %585 = vmatprep.subr.mxu0 0.0
    %586 = vmatpush1.xpose.msra.mxu0 0.0
    %587 = vmatprep.subr.mxu0 0.0
    %588 = vmatpush1.xpose.msra.mxu0 0.0
    %589 = vmatprep.subr.mxu0 0.0
    %590 = vmatpush1.xpose.msra.mxu0 0.0
    %591 = vmatprep.subr.mxu0 0.0
    %592 = vmatpush1.xpose.msra.mxu0 0.0
    %593 = vmatprep.subr.mxu0 0.0
    %594 = vmatpush1.xpose.msra.mxu0 0.0
    %595 = vmatprep.subr.mxu0 0.0
    %596 = vmatpush1.xpose.msra.mxu0 0.0
    %597 = vmatprep.subr.mxu0 0.0
    %598 = vmatpush1.xpose.msra.mxu0 0.0
    %599 = vmatprep.subr.mxu0 0.0
    %600 = vmatpush1.xpose.msra.mxu0 0.0
    %601 = vmatprep.subr.mxu0 0.0
    %602 = vmatpush1.xpose.msra.mxu0 0.0
    %603 = vmatprep.subr.mxu0 0.0
    %604 = vmatpush1.xpose.msra.mxu0 0.0
    %605 = vmatprep.subr.mxu0 0.0
    %606 = vmatpush1.xpose.msra.mxu0 0.0
    %607 = vmatprep.subr.mxu0 0.0
    %608 = vmatpush1.xpose.msra.mxu0 0.0
    %609 = vmatprep.subr.mxu0 0.0
    %610 = vmatpush1.xpose.msra.mxu0 0.0
    %611 = vmatprep.subr.mxu0 0.0
    %612 = vmatpush1.xpose.msra.mxu0 0.0
    %613 = vmatprep.subr.mxu0 0.0
    %614 = vmatpush1.xpose.msra.mxu0 0.0
    %615 = vmatprep.subr.mxu0 0.0
    %616 = vmatpush1.xpose.msra.mxu0 0.0
    %617 = vmatprep.subr.mxu0 0.0
    %618 = vmatpush1.xpose.msra.mxu0 0.0
    %619 = vmatprep.subr.mxu0 0.0
    %620 = vmatpush1.xpose.msra.mxu0 0.0
    %621 = vmatprep.subr.mxu0 0.0
    %622 = vmatpush1.xpose.msra.mxu0 0.0
    %623 = vmatprep.subr.mxu0 0.0
    %624 = vmatpush1.xpose.msra.mxu0 0.0
    %625 = vmatprep.subr.mxu0 0.0
    %626 = vmatpush1.xpose.msra.mxu0 0.0
    %627 = vmatprep.subr.mxu0 0.0
    %628 = vmatpush1.xpose.msra.mxu0 0.0
    %629 = vmatprep.subr.mxu0 0.0
    %630 = vmatpush1.xpose.msra.mxu0 0.0
    %631 = vmatprep.subr.mxu0 0.0
    %632 = vmatpush1.xpose.msra.mxu0 0.0
    %633 = vmatprep.subr.mxu0 0.0
    %634 = vmatpush1.xpose.msra.mxu0 0.0
    %635 = vmatprep.subr.mxu0 0.0
    %636 = vmatpush1.xpose.msra.mxu0 0.0
    %637 = vmatprep.subr.mxu0 0.0
    %638 = vmatpush1.xpose.msra.mxu0 0.0
    %639 = vmatprep.subr.mxu0 0.0
    %640 = vmatpush1.xpose.msra.mxu0 0.0
    %641 = vmatprep.subr.mxu0 0.0
    %642 = vmatpush1.xpose.msra.mxu0 0.0
    %643 = vmatprep.subr.mxu0 0.0
    %644 = vmatpush1.xpose.msra.mxu0 0.0
    %645 = vmatprep.subr.mxu0 0.0
    %646 = vmatpush1.xpose.msra.mxu0 0.0
    %647 = vmatprep.mubr.f32.mxu0 0.0
    %648 = vmatmul.mubr.f32.gmra.mrb[0].mxu0 %v579
    %v649 = vpop.f32.mrb[0].mxu0
    %v650 = vadd.f32 0.0, %v649
    %v651 = vpop.f32.mrb[0].mxu0
    %652 = vdwg.mxu0
    %653 = vrot.lane.b32.xlu0 %v423, 96
    %v654 = vpop.permute.xlu0 %653
    %v655 = vsel %vm426, %v423, 0
    %v657 = vsel %vm426, %v654, 0
    %659 = vmatprep.subr.mxu0 0.0
    %660 = vmatpush1.xpose.msra.mxu0 %v657
    %661 = vmatprep.subr.mxu0 0.0
    %662 = vmatpush1.xpose.msra.mxu0 0.0
    %663 = vmatprep.subr.mxu0 0.0
    %664 = vmatpush1.xpose.msra.mxu0 0.0
    %665 = vmatprep.subr.mxu0 0.0
    %666 = vmatpush1.xpose.msra.mxu0 0.0
    %667 = vmatprep.subr.mxu0 0.0
    %668 = vmatpush1.xpose.msra.mxu0 0.0
    %669 = vmatprep.subr.mxu0 0.0
    %670 = vmatpush1.xpose.msra.mxu0 0.0
    %671 = vmatprep.subr.mxu0 0.0
    %672 = vmatpush1.xpose.msra.mxu0 0.0
    %673 = vmatprep.subr.mxu0 0.0
    %674 = vmatpush1.xpose.msra.mxu0 0.0
    %675 = vmatprep.subr.mxu0 0.0
    %676 = vmatpush1.xpose.msra.mxu0 0.0
    %677 = vmatprep.subr.mxu0 0.0
    %678 = vmatpush1.xpose.msra.mxu0 0.0
    %679 = vmatprep.subr.mxu0 0.0
    %680 = vmatpush1.xpose.msra.mxu0 0.0
    %681 = vmatprep.subr.mxu0 0.0
    %682 = vmatpush1.xpose.msra.mxu0 0.0
    %683 = vmatprep.subr.mxu0 0.0
    %684 = vmatpush1.xpose.msra.mxu0 0.0
    %685 = vmatprep.subr.mxu0 0.0
    %686 = vmatpush1.xpose.msra.mxu0 0.0
    %687 = vmatprep.subr.mxu0 0.0
    %688 = vmatpush1.xpose.msra.mxu0 0.0
    %689 = vmatprep.subr.mxu0 0.0
    %690 = vmatpush1.xpose.msra.mxu0 0.0
    %691 = vmatprep.subr.mxu0 0.0
    %692 = vmatpush1.xpose.msra.mxu0 0.0
    %693 = vmatprep.subr.mxu0 0.0
    %694 = vmatpush1.xpose.msra.mxu0 0.0
    %695 = vmatprep.subr.mxu0 0.0
    %696 = vmatpush1.xpose.msra.mxu0 0.0
    %697 = vmatprep.subr.mxu0 0.0
    %698 = vmatpush1.xpose.msra.mxu0 0.0
    %699 = vmatprep.subr.mxu0 0.0
    %700 = vmatpush1.xpose.msra.mxu0 0.0
    %701 = vmatprep.subr.mxu0 0.0
    %702 = vmatpush1.xpose.msra.mxu0 0.0
    %703 = vmatprep.subr.mxu0 0.0
    %704 = vmatpush1.xpose.msra.mxu0 0.0
    %705 = vmatprep.subr.mxu0 0.0
    %706 = vmatpush1.xpose.msra.mxu0 0.0
    %707 = vmatprep.subr.mxu0 0.0
    %708 = vmatpush1.xpose.msra.mxu0 0.0
    %709 = vmatprep.subr.mxu0 0.0
    %710 = vmatpush1.xpose.msra.mxu0 0.0
    %711 = vmatprep.subr.mxu0 0.0
    %712 = vmatpush1.xpose.msra.mxu0 0.0
    %713 = vmatprep.subr.mxu0 0.0
    %714 = vmatpush1.xpose.msra.mxu0 0.0
    %715 = vmatprep.subr.mxu0 0.0
    %716 = vmatpush1.xpose.msra.mxu0 0.0
    %717 = vmatprep.subr.mxu0 0.0
    %718 = vmatpush1.xpose.msra.mxu0 0.0
    %719 = vmatprep.subr.mxu0 0.0
    %720 = vmatpush1.xpose.msra.mxu0 0.0
    %721 = vmatprep.subr.mxu0 0.0
    %722 = vmatpush1.xpose.msra.mxu0 0.0
    %723 = vmatprep.mubr.f32.mxu0 0.0
    %724 = vmatmul.mubr.f32.gmra.mrb[0].mxu0 %v655
    %v725 = vpop.f32.mrb[0].mxu0
    %v726 = vadd.f32 0.0, %v725
    %v727 = vpop.f32.mrb[0].mxu0
    %728 = vdwg.mxu0
    %v729 = vmul.f32 %v498, 0.25
    %v730 = vmul.f32 %v574, 0.25
    %v731 = vmul.f32 %v650, 0.25
    %v732 = vmul.f32 %v726, 0.25
    %v733 = vlaneseq
    %v734 = vshrl.u32 %v733, 7
    %v735 = vsub.s32 0, %v734
    %v736 = vrot.slane %v295, %v735
    %v737 = vlaneseq
    %v738 = vshrl.u32 %v737, 7
    %v739 = vsub.s32 0, %v738
    %v740 = vrot.slane %v302, %v739
    %v741 = vlaneseq
    %v742 = vshrl.u32 %v741, 7
    %v743 = vsub.s32 0, %v742
    %v744 = vrot.slane %v303, %v743
    %v745 = vlaneseq
    %v746 = vshrl.u32 %v745, 7
    %v747 = vsub.s32 0, %v746
    %v748 = vrot.slane %v304, %v747
    %v753 = vadd.f32 %v729, %v736
    %v754 = vadd.f32 %v730, %v740
    %v755 = vadd.f32 %v731, %v744
    %v756 = vadd.f32 %v732, %v748
    %vm757 = vcmask 64512
    %v758 = vsel %vm757, %v753, -inf
    %759 = vmax.xlane.f32.xlu0 %v758
    %v760 = vpop.xlane.xlu0 %759
    %v761 = vsel %vm757, %v754, -inf
    %762 = vmax.xlane.f32.xlu0 %v761
    %v763 = vpop.xlane.xlu0 %762
    %v764 = vsel %vm757, %v755, -inf
    %765 = vmax.xlane.f32.xlu0 %v764
    %v766 = vpop.xlane.xlu0 %765
    %v767 = vsel %vm757, %v756, -inf
    %768 = vmax.xlane.f32.xlu0 %v767
    %v769 = vpop.xlane.xlu0 %768
    %v770 = vsub.f32 %v753, %v760
    %v771 = vsub.f32 %v754, %v763
    %v772 = vsub.f32 %v755, %v766
    %v773 = vsub.f32 %v756, %v769
    %v774 = vmul.f32 %v770, 1.442695
    %v775 = vpow.pop %v774
    %v776 = vmul.f32 %v771, 1.442695
    %v777 = vpow.pop %v776
    %v778 = vmul.f32 %v772, 1.442695
    %v779 = vpow.pop %v778
    %v780 = vmul.f32 %v773, 1.442695
    %v781 = vpow.pop %v780
    %v782 = vsel %vm757, %v775, 0.0
    %783 = vadd.xlane.f32.xlu0 %v782
    %v784 = vpop.xlane.xlu0 %783
    %v785 = vsel %vm757, %v777, 0.0
    %786 = vadd.xlane.f32.xlu0 %v785
    %v787 = vpop.xlane.xlu0 %786
    %v788 = vsel %vm757, %v779, 0.0
    %789 = vadd.xlane.f32.xlu0 %v788
    %v790 = vpop.xlane.xlu0 %789
    %v791 = vsel %vm757, %v781, 0.0
    %792 = vadd.xlane.f32.xlu0 %v791
    %v793 = vpop.xlane.xlu0 %792
    %v794 = vrcp.pop %v784
    %v795 = vmul.f32 %v775, %v794
    %v796 = vrcp.pop %v787
    %v797 = vmul.f32 %v777, %v796
    %v798 = vrcp.pop %v790
    %v799 = vmul.f32 %v779, %v798
    %v800 = vrcp.pop %v793
    %v801 = vmul.f32 %v781, %v800
    %802 = vrot.lane.b32.xlu0 %v410, 64
    %v803 = vpop.permute.xlu0 %802
    %v806 = vsel %vm757, %v795, 0
    %808 = vmatprep.subr.mxu0 0.0
    %809 = vmatpush1.msra.mxu0 %v803
    %810 = vmatprep.subr.mxu0 0.0
    %811 = vmatpush1.msra.mxu0 0.0
    %812 = vmatprep.subr.mxu0 0.0
    %813 = vmatpush1.msra.mxu0 0.0
    %814 = vmatprep.subr.mxu0 0.0
    %815 = vmatpush1.msra.mxu0 0.0
    %816 = vmatprep.subr.mxu0 0.0
    %817 = vmatpush1.msra.mxu0 0.0
    %818 = vmatprep.subr.mxu0 0.0
    %819 = vmatpush1.msra.mxu0 0.0
    %820 = vmatprep.subr.mxu0 0.0
    %821 = vmatpush1.msra.mxu0 0.0
    %822 = vmatprep.subr.mxu0 0.0
    %823 = vmatpush1.msra.mxu0 0.0
    %824 = vmatprep.subr.mxu0 0.0
    %825 = vmatpush1.msra.mxu0 0.0
    %826 = vmatprep.subr.mxu0 0.0
    %827 = vmatpush1.msra.mxu0 0.0
    %828 = vmatprep.subr.mxu0 0.0
    %829 = vmatpush1.msra.mxu0 0.0
    %830 = vmatprep.subr.mxu0 0.0
    %831 = vmatpush1.msra.mxu0 0.0
    %832 = vmatprep.subr.mxu0 0.0
    %833 = vmatpush1.msra.mxu0 0.0
    %834 = vmatprep.subr.mxu0 0.0
    %835 = vmatpush1.msra.mxu0 0.0
    %836 = vmatprep.subr.mxu0 0.0
    %837 = vmatpush1.msra.mxu0 0.0
    %838 = vmatprep.subr.mxu0 0.0
    %839 = vmatpush1.msra.mxu0 0.0
    %840 = vmatprep.subr.mxu0 0.0
    %841 = vmatpush1.msra.mxu0 0.0
    %842 = vmatprep.subr.mxu0 0.0
    %843 = vmatpush1.msra.mxu0 0.0
    %844 = vmatprep.subr.mxu0 0.0
    %845 = vmatpush1.msra.mxu0 0.0
    %846 = vmatprep.subr.mxu0 0.0
    %847 = vmatpush1.msra.mxu0 0.0
    %848 = vmatprep.subr.mxu0 0.0
    %849 = vmatpush1.msra.mxu0 0.0
    %850 = vmatprep.subr.mxu0 0.0
    %851 = vmatpush1.msra.mxu0 0.0
    %852 = vmatprep.subr.mxu0 0.0
    %853 = vmatpush1.msra.mxu0 0.0
    %854 = vmatprep.subr.mxu0 0.0
    %855 = vmatpush1.msra.mxu0 0.0
    %856 = vmatprep.subr.mxu0 0.0
    %857 = vmatpush1.msra.mxu0 0.0
    %858 = vmatprep.subr.mxu0 0.0
    %859 = vmatpush1.msra.mxu0 0.0
    %860 = vmatprep.subr.mxu0 0.0
    %861 = vmatpush1.msra.mxu0 0.0
    %862 = vmatprep.subr.mxu0 0.0
    %863 = vmatpush1.msra.mxu0 0.0
    %864 = vmatprep.subr.mxu0 0.0
    %865 = vmatpush1.msra.mxu0 0.0
    %866 = vmatprep.subr.mxu0 0.0
    %867 = vmatpush1.msra.mxu0 0.0
    %868 = vmatprep.subr.mxu0 0.0
    %869 = vmatpush1.msra.mxu0 0.0
    %870 = vmatprep.subr.mxu0 0.0
    %871 = vmatpush1.msra.mxu0 0.0
    %872 = vmatprep.mubr.f32.mxu0 0.0
    %873 = vmatmul.mubr.f32.gmra.mrb[0].mxu0 %v806
    %v874 = vpop.f32.mrb[0].mxu0
    %v875 = vadd.f32 0.0, %v874
    %v876 = vpop.f32.mrb[0].mxu0
    %877 = vdwg.mxu0
    %878 = vrot.lane.b32.xlu0 %v415, 64
    %v879 = vpop.permute.xlu0 %878
    %v882 = vsel %vm757, %v797, 0
    %884 = vmatprep.subr.mxu0 0.0
    %885 = vmatpush1.msra.mxu0 %v879
    %886 = vmatprep.subr.mxu0 0.0
    %887 = vmatpush1.msra.mxu0 0.0
    %888 = vmatprep.subr.mxu0 0.0
    %889 = vmatpush1.msra.mxu0 0.0
    %890 = vmatprep.subr.mxu0 0.0
    %891 = vmatpush1.msra.mxu0 0.0
    %892 = vmatprep.subr.mxu0 0.0
    %893 = vmatpush1.msra.mxu0 0.0
    %894 = vmatprep.subr.mxu0 0.0
    %895 = vmatpush1.msra.mxu0 0.0
    %896 = vmatprep.subr.mxu0 0.0
    %897 = vmatpush1.msra.mxu0 0.0
    %898 = vmatprep.subr.mxu0 0.0
    %899 = vmatpush1.msra.mxu0 0.0
    %900 = vmatprep.subr.mxu0 0.0
    %901 = vmatpush1.msra.mxu0 0.0
    %902 = vmatprep.subr.mxu0 0.0
    %903 = vmatpush1.msra.mxu0 0.0
    %904 = vmatprep.subr.mxu0 0.0
    %905 = vmatpush1.msra.mxu0 0.0
    %906 = vmatprep.subr.mxu0 0.0
    %907 = vmatpush1.msra.mxu0 0.0
    %908 = vmatprep.subr.mxu0 0.0
    %909 = vmatpush1.msra.mxu0 0.0
    %910 = vmatprep.subr.mxu0 0.0
    %911 = vmatpush1.msra.mxu0 0.0
    %912 = vmatprep.subr.mxu0 0.0
    %913 = vmatpush1.msra.mxu0 0.0
    %914 = vmatprep.subr.mxu0 0.0
    %915 = vmatpush1.msra.mxu0 0.0
    %916 = vmatprep.subr.mxu0 0.0
    %917 = vmatpush1.msra.mxu0 0.0
    %918 = vmatprep.subr.mxu0 0.0
    %919 = vmatpush1.msra.mxu0 0.0
    %920 = vmatprep.subr.mxu0 0.0
    %921 = vmatpush1.msra.mxu0 0.0
    %922 = vmatprep.subr.mxu0 0.0
    %923 = vmatpush1.msra.mxu0 0.0
    %924 = vmatprep.subr.mxu0 0.0
    %925 = vmatpush1.msra.mxu0 0.0
    %926 = vmatprep.subr.mxu0 0.0
    %927 = vmatpush1.msra.mxu0 0.0
    %928 = vmatprep.subr.mxu0 0.0
    %929 = vmatpush1.msra.mxu0 0.0
    %930 = vmatprep.subr.mxu0 0.0
    %931 = vmatpush1.msra.mxu0 0.0
    %932 = vmatprep.subr.mxu0 0.0
    %933 = vmatpush1.msra.mxu0 0.0
    %934 = vmatprep.subr.mxu0 0.0
    %935 = vmatpush1.msra.mxu0 0.0
    %936 = vmatprep.subr.mxu0 0.0
    %937 = vmatpush1.msra.mxu0 0.0
    %938 = vmatprep.subr.mxu0 0.0
    %939 = vmatpush1.msra.mxu0 0.0
    %940 = vmatprep.subr.mxu0 0.0
    %941 = vmatpush1.msra.mxu0 0.0
    %942 = vmatprep.subr.mxu0 0.0
    %943 = vmatpush1.msra.mxu0 0.0
    %944 = vmatprep.subr.mxu0 0.0
    %945 = vmatpush1.msra.mxu0 0.0
    %946 = vmatprep.subr.mxu0 0.0
    %947 = vmatpush1.msra.mxu0 0.0
    %948 = vmatprep.mubr.f32.mxu0 0.0
    %949 = vmatmul.mubr.f32.gmra.mrb[0].mxu0 %v882
    %v950 = vpop.f32.mrb[0].mxu0
    %v951 = vadd.f32 0.0, %v950
    %v952 = vpop.f32.mrb[0].mxu0
    %953 = vdwg.mxu0
    %954 = vrot.lane.b32.xlu0 %v421, 64
    %v955 = vpop.permute.xlu0 %954
    %v958 = vsel %vm757, %v799, 0
    %960 = vmatprep.subr.mxu0 0.0
    %961 = vmatpush1.msra.mxu0 %v955
    %962 = vmatprep.subr.mxu0 0.0
    %963 = vmatpush1.msra.mxu0 0.0
    %964 = vmatprep.subr.mxu0 0.0
    %965 = vmatpush1.msra.mxu0 0.0
    %966 = vmatprep.subr.mxu0 0.0
    %967 = vmatpush1.msra.mxu0 0.0
    %968 = vmatprep.subr.mxu0 0.0
    %969 = vmatpush1.msra.mxu0 0.0
    %970 = vmatprep.subr.mxu0 0.0
    %971 = vmatpush1.msra.mxu0 0.0
    %972 = vmatprep.subr.mxu0 0.0
    %973 = vmatpush1.msra.mxu0 0.0
    %974 = vmatprep.subr.mxu0 0.0
    %975 = vmatpush1.msra.mxu0 0.0
    %976 = vmatprep.subr.mxu0 0.0
    %977 = vmatpush1.msra.mxu0 0.0
    %978 = vmatprep.subr.mxu0 0.0
    %979 = vmatpush1.msra.mxu0 0.0
    %980 = vmatprep.subr.mxu0 0.0
    %981 = vmatpush1.msra.mxu0 0.0
    %982 = vmatprep.subr.mxu0 0.0
    %983 = vmatpush1.msra.mxu0 0.0
    %984 = vmatprep.subr.mxu0 0.0
    %985 = vmatpush1.msra.mxu0 0.0
    %986 = vmatprep.subr.mxu0 0.0
    %987 = vmatpush1.msra.mxu0 0.0
    %988 = vmatprep.subr.mxu0 0.0
    %989 = vmatpush1.msra.mxu0 0.0
    %990 = vmatprep.subr.mxu0 0.0
    %991 = vmatpush1.msra.mxu0 0.0
    %992 = vmatprep.subr.mxu0 0.0
    %993 = vmatpush1.msra.mxu0 0.0
    %994 = vmatprep.subr.mxu0 0.0
    %995 = vmatpush1.msra.mxu0 0.0
    %996 = vmatprep.subr.mxu0 0.0
    %997 = vmatpush1.msra.mxu0 0.0
    %998 = vmatprep.subr.mxu0 0.0
    %999 = vmatpush1.msra.mxu0 0.0
    %1000 = vmatprep.subr.mxu0 0.0
    %1001 = vmatpush1.msra.mxu0 0.0
    %1002 = vmatprep.subr.mxu0 0.0
    %1003 = vmatpush1.msra.mxu0 0.0
    %1004 = vmatprep.subr.mxu0 0.0
    %1005 = vmatpush1.msra.mxu0 0.0
    %1006 = vmatprep.subr.mxu0 0.0
    %1007 = vmatpush1.msra.mxu0 0.0
    %1008 = vmatprep.subr.mxu0 0.0
    %1009 = vmatpush1.msra.mxu0 0.0
    %1010 = vmatprep.subr.mxu0 0.0
    %1011 = vmatpush1.msra.mxu0 0.0
    %1012 = vmatprep.subr.mxu0 0.0
    %1013 = vmatpush1.msra.mxu0 0.0
    %1014 = vmatprep.subr.mxu0 0.0
    %1015 = vmatpush1.msra.mxu0 0.0
    %1016 = vmatprep.subr.mxu0 0.0
    %1017 = vmatpush1.msra.mxu0 0.0
    %1018 = vmatprep.subr.mxu0 0.0
    %1019 = vmatpush1.msra.mxu0 0.0
    %1020 = vmatprep.subr.mxu0 0.0
    %1021 = vmatpush1.msra.mxu0 0.0
    %1022 = vmatprep.subr.mxu0 0.0
    %1023 = vmatpush1.msra.mxu0 0.0
    %1024 = vmatprep.mubr.f32.mxu0 0.0
    %1025 = vmatmul.mubr.f32.gmra.mrb[0].mxu0 %v958
    %v1026 = vpop.f32.mrb[0].mxu0
    %v1027 = vadd.f32 0.0, %v1026
    %v1028 = vpop.f32.mrb[0].mxu0
    %1029 = vdwg.mxu0
    %1030 = vrot.lane.b32.xlu0 %v423, 64
    %v1031 = vpop.permute.xlu0 %1030
    %v1034 = vsel %vm757, %v801, 0
    %1036 = vmatprep.subr.mxu0 0.0
    %1037 = vmatpush1.msra.mxu0 %v1031
    %1038 = vmatprep.subr.mxu0 0.0
    %1039 = vmatpush1.msra.mxu0 0.0
    %1040 = vmatprep.subr.mxu0 0.0
    %1041 = vmatpush1.msra.mxu0 0.0
    %1042 = vmatprep.subr.mxu0 0.0
    %1043 = vmatpush1.msra.mxu0 0.0
    %1044 = vmatprep.subr.mxu0 0.0
    %1045 = vmatpush1.msra.mxu0 0.0
    %1046 = vmatprep.subr.mxu0 0.0
    %1047 = vmatpush1.msra.mxu0 0.0
    %1048 = vmatprep.subr.mxu0 0.0
    %1049 = vmatpush1.msra.mxu0 0.0
    %1050 = vmatprep.subr.mxu0 0.0
    %1051 = vmatpush1.msra.mxu0 0.0
    %1052 = vmatprep.subr.mxu0 0.0
    %1053 = vmatpush1.msra.mxu0 0.0
    %1054 = vmatprep.subr.mxu0 0.0
    %1055 = vmatpush1.msra.mxu0 0.0
    %1056 = vmatprep.subr.mxu0 0.0
    %1057 = vmatpush1.msra.mxu0 0.0
    %1058 = vmatprep.subr.mxu0 0.0
    %1059 = vmatpush1.msra.mxu0 0.0
    %1060 = vmatprep.subr.mxu0 0.0
    %1061 = vmatpush1.msra.mxu0 0.0
    %1062 = vmatprep.subr.mxu0 0.0
    %1063 = vmatpush1.msra.mxu0 0.0
    %1064 = vmatprep.subr.mxu0 0.0
    %1065 = vmatpush1.msra.mxu0 0.0
    %1066 = vmatprep.subr.mxu0 0.0
    %1067 = vmatpush1.msra.mxu0 0.0
    %1068 = vmatprep.subr.mxu0 0.0
    %1069 = vmatpush1.msra.mxu0 0.0
    %1070 = vmatprep.subr.mxu0 0.0
    %1071 = vmatpush1.msra.mxu0 0.0
    %1072 = vmatprep.subr.mxu0 0.0
    %1073 = vmatpush1.msra.mxu0 0.0
    %1074 = vmatprep.subr.mxu0 0.0
    %1075 = vmatpush1.msra.mxu0 0.0
    %1076 = vmatprep.subr.mxu0 0.0
    %1077 = vmatpush1.msra.mxu0 0.0
    %1078 = vmatprep.subr.mxu0 0.0
    %1079 = vmatpush1.msra.mxu0 0.0
    %1080 = vmatprep.subr.mxu0 0.0
    %1081 = vmatpush1.msra.mxu0 0.0
    %1082 = vmatprep.subr.mxu0 0.0
    %1083 = vmatpush1.msra.mxu0 0.0
    %1084 = vmatprep.subr.mxu0 0.0
    %1085 = vmatpush1.msra.mxu0 0.0
    %1086 = vmatprep.subr.mxu0 0.0
    %1087 = vmatpush1.msra.mxu0 0.0
    %1088 = vmatprep.subr.mxu0 0.0
    %1089 = vmatpush1.msra.mxu0 0.0
    %1090 = vmatprep.subr.mxu0 0.0
    %1091 = vmatpush1.msra.mxu0 0.0
    %1092 = vmatprep.subr.mxu0 0.0
    %1093 = vmatpush1.msra.mxu0 0.0
    %1094 = vmatprep.subr.mxu0 0.0
    %1095 = vmatpush1.msra.mxu0 0.0
    %1096 = vmatprep.subr.mxu0 0.0
    %1097 = vmatpush1.msra.mxu0 0.0
    %1098 = vmatprep.subr.mxu0 0.0
    %1099 = vmatpush1.msra.mxu0 0.0
    %1100 = vmatprep.mubr.f32.mxu0 0.0
    %1101 = vmatmul.mubr.f32.gmra.mrb[0].mxu0 %v1034
    %v1102 = vpop.f32.mrb[0].mxu0
    %v1103 = vadd.f32 0.0, %v1102
    %v1104 = vpop.f32.mrb[0].mxu0
    %1105 = vdwg.mxu0
    %1108 = vrot.lane.b32.xlu0 %v1027, 16
    %v1109 = vpop.permute.xlu0 %1108
    %1110 = vrot.lane.b32.xlu0 %v1103, 16
    %v1111 = vpop.permute.xlu0 %1110
    %v1114 = vsel %vm426, %v875, %v1109
    %v1115 = vsel %vm426, %v951, %v1111
    %v1116 = vlaneseq
    %v1117 = vshrl.u32 %v1116, 7
    %v1118 = vsub.s32 0, %v1117
    %v1119 = vrot.slane %v326, %v1118
    %v1121 = vsel %vm63, %v1114, 0
    %v1124 = vsel %vm63, %v1115, 0
    %1126 = vmatprep.subr.mxu0 0.0
    %1127 = vmatpush1.msra.mxu0 %v309
    %1128 = vmatprep.subr.mxu0 0.0
    %1129 = vmatpush1.msra.mxu0 %v310
    %1130 = vmatprep.subr.mxu0 0.0
    %1131 = vmatpush1.msra.mxu0 %v311
    %1132 = vmatprep.subr.mxu0 0.0
    %1133 = vmatpush1.msra.mxu0 %v312
    %1134 = vmatprep.subr.mxu0 0.0
    %1135 = vmatpush1.msra.mxu0 0.0
    %1136 = vmatprep.subr.mxu0 0.0
    %1137 = vmatpush1.msra.mxu0 0.0
    %1138 = vmatprep.subr.mxu0 0.0
    %1139 = vmatpush1.msra.mxu0 0.0
    %1140 = vmatprep.subr.mxu0 0.0
    %1141 = vmatpush1.msra.mxu0 0.0
    %1142 = vmatprep.subr.mxu0 0.0
    %1143 = vmatpush1.msra.mxu0 0.0
    %1144 = vmatprep.subr.mxu0 0.0
    %1145 = vmatpush1.msra.mxu0 0.0
    %1146 = vmatprep.subr.mxu0 0.0
    %1147 = vmatpush1.msra.mxu0 0.0
    %1148 = vmatprep.subr.mxu0 0.0
    %1149 = vmatpush1.msra.mxu0 0.0
    %1150 = vmatprep.subr.mxu0 0.0
    %1151 = vmatpush1.msra.mxu0 0.0
    %1152 = vmatprep.subr.mxu0 0.0
    %1153 = vmatpush1.msra.mxu0 0.0
    %1154 = vmatprep.subr.mxu0 0.0
    %1155 = vmatpush1.msra.mxu0 0.0
    %1156 = vmatprep.subr.mxu0 0.0
    %1157 = vmatpush1.msra.mxu0 0.0
    %1158 = vmatprep.subr.mxu0 0.0
    %1159 = vmatpush1.msra.mxu0 0.0
    %1160 = vmatprep.subr.mxu0 0.0
    %1161 = vmatpush1.msra.mxu0 0.0
    %1162 = vmatprep.subr.mxu0 0.0
    %1163 = vmatpush1.msra.mxu0 0.0
    %1164 = vmatprep.subr.mxu0 0.0
    %1165 = vmatpush1.msra.mxu0 0.0
    %1166 = vmatprep.subr.mxu0 0.0
    %1167 = vmatpush1.msra.mxu0 0.0
    %1168 = vmatprep.subr.mxu0 0.0
    %1169 = vmatpush1.msra.mxu0 0.0
    %1170 = vmatprep.subr.mxu0 0.0
    %1171 = vmatpush1.msra.mxu0 0.0
    %1172 = vmatprep.subr.mxu0 0.0
    %1173 = vmatpush1.msra.mxu0 0.0
    %1174 = vmatprep.subr.mxu0 0.0
    %1175 = vmatpush1.msra.mxu0 0.0
    %1176 = vmatprep.subr.mxu0 0.0
    %1177 = vmatpush1.msra.mxu0 0.0
    %1178 = vmatprep.subr.mxu0 0.0
    %1179 = vmatpush1.msra.mxu0 0.0
    %1180 = vmatprep.subr.mxu0 0.0
    %1181 = vmatpush1.msra.mxu0 0.0
    %1182 = vmatprep.subr.mxu0 0.0
    %1183 = vmatpush1.msra.mxu0 0.0
    %1184 = vmatprep.subr.mxu0 0.0
    %1185 = vmatpush1.msra.mxu0 0.0
    %1186 = vmatprep.subr.mxu0 0.0
    %1187 = vmatpush1.msra.mxu0 0.0
    %1188 = vmatprep.subr.mxu0 0.0
    %1189 = vmatpush1.msra.mxu0 0.0
    %1190 = vmatprep.mubr.f32.mxu0 0.0
    %1191 = vmatmul.mubr.f32.gmra.mrb[0].mxu0 %v1121
    %v1192 = vpop.f32.mrb[0].mxu0
    %v1193 = vadd.f32 %v1119, %v1192
    %v1194 = vpop.f32.mrb[0].mxu0
    %1195 = vmatprep.mubr.f32.mxu0 0.0
    %1196 = vmatmul.mubr.f32.gmra.mrb[0].mxu0 %v1124
    %v1197 = vpop.f32.mrb[0].mxu0
    %v1198 = vadd.f32 %v1119, %v1197
    %v1199 = vpop.f32.mrb[0].mxu0
    %1200 = vdwg.mxu0
    %v1201 = vadd.f32 %v270, %v1193
    %v1202 = vadd.f32 %v271, %v1198
    %v1204 = vsel %vm63, %v1201, 0
    %v1207 = vsel %vm63, %v1202, 0
    %1209 = vmatprep.subr.mxu0 0.0
    %1210 = vmatpush1.msra.mxu0 1.0
    %1211 = vmatprep.subr.mxu0 0.0
    %1212 = vmatpush1.msra.mxu0 1.0
    %1213 = vmatprep.subr.mxu0 0.0
    %1214 = vmatpush1.msra.mxu0 1.0
    %1215 = vmatprep.subr.mxu0 0.0
    %1216 = vmatpush1.msra.mxu0 1.0
    %1217 = vmatprep.subr.mxu0 0.0
    %1218 = vmatpush1.msra.mxu0 0.0
    %1219 = vmatprep.subr.mxu0 0.0
    %1220 = vmatpush1.msra.mxu0 0.0
    %1221 = vmatprep.subr.mxu0 0.0
    %1222 = vmatpush1.msra.mxu0 0.0
    %1223 = vmatprep.subr.mxu0 0.0
    %1224 = vmatpush1.msra.mxu0 0.0
    %1225 = vmatprep.subr.mxu0 0.0
    %1226 = vmatpush1.msra.mxu0 0.0
    %1227 = vmatprep.subr.mxu0 0.0
    %1228 = vmatpush1.msra.mxu0 0.0
    %1229 = vmatprep.subr.mxu0 0.0
    %1230 = vmatpush1.msra.mxu0 0.0
    %1231 = vmatprep.subr.mxu0 0.0
    %1232 = vmatpush1.msra.mxu0 0.0
    %1233 = vmatprep.subr.mxu0 0.0
    %1234 = vmatpush1.msra.mxu0 0.0
    %1235 = vmatprep.subr.mxu0 0.0
    %1236 = vmatpush1.msra.mxu0 0.0
    %1237 = vmatprep.subr.mxu0 0.0
    %1238 = vmatpush1.msra.mxu0 0.0
    %1239 = vmatprep.subr.mxu0 0.0
    %1240 = vmatpush1.msra.mxu0 0.0
    %1241 = vmatprep.subr.mxu0 0.0
    %1242 = vmatpush1.msra.mxu0 0.0
    %1243 = vmatprep.subr.mxu0 0.0
    %1244 = vmatpush1.msra.mxu0 0.0
    %1245 = vmatprep.subr.mxu0 0.0
    %1246 = vmatpush1.msra.mxu0 0.0
    %1247 = vmatprep.subr.mxu0 0.0
    %1248 = vmatpush1.msra.mxu0 0.0
    %1249 = vmatprep.subr.mxu0 0.0
    %1250 = vmatpush1.msra.mxu0 0.0
    %1251 = vmatprep.subr.mxu0 0.0
    %1252 = vmatpush1.msra.mxu0 0.0
    %1253 = vmatprep.subr.mxu0 0.0
    %1254 = vmatpush1.msra.mxu0 0.0
    %1255 = vmatprep.subr.mxu0 0.0
    %1256 = vmatpush1.msra.mxu0 0.0
    %1257 = vmatprep.subr.mxu0 0.0
    %1258 = vmatpush1.msra.mxu0 0.0
    %1259 = vmatprep.subr.mxu0 0.0
    %1260 = vmatpush1.msra.mxu0 0.0
    %1261 = vmatprep.subr.mxu0 0.0
    %1262 = vmatpush1.msra.mxu0 0.0
    %1263 = vmatprep.subr.mxu0 0.0
    %1264 = vmatpush1.msra.mxu0 0.0
    %1265 = vmatprep.subr.mxu0 0.0
    %1266 = vmatpush1.msra.mxu0 0.0
    %1267 = vmatprep.subr.mxu0 0.0
    %1268 = vmatpush1.msra.mxu0 0.0
    %1269 = vmatprep.subr.mxu0 0.0
    %1270 = vmatpush1.msra.mxu0 0.0
    %1271 = vmatprep.subr.mxu0 0.0
    %1272 = vmatpush1.msra.mxu0 0.0
    %1273 = vmatprep.mubr.f32.mxu0 0.0
    %1274 = vmatmul.mubr.f32.gmra.mrb[0].mxu0 %v1204
    %v1275 = vpop.f32.mrb[0].mxu0
    %v1276 = vadd.f32 0.0, %v1275
    %v1277 = vpop.f32.mrb[0].mxu0
    %1278 = vmatprep.mubr.f32.mxu0 0.0
    %1279 = vmatmul.mubr.f32.gmra.mrb[0].mxu0 %v1207
    %v1280 = vpop.f32.mrb[0].mxu0
    %v1281 = vadd.f32 0.0, %v1280
    %v1282 = vpop.f32.mrb[0].mxu0
    %1283 = vdwg.mxu0
    %v1284 = vmul.f32 %v1276, 0.03125
    %v1285 = vmul.f32 %v1281, 0.03125
    %1287 = vset.pattern.permute.xlu0 0
    %1288 = vperm.xlu0 %1287, %v1284
    %v1289 = vpop.permute.xlu0 %1288
    %1292 = vset.pattern.permute.xlu0 0
    %1293 = vperm.xlu0 %1292, %v1285
    %v1294 = vpop.permute.xlu0 %1293
    %v1296 = vsub.f32 %v1201, %v1289
    %v1297 = vsub.f32 %v1202, %v1294
    %v1298 = vmul.f32 %v1296, %v1296
    %v1299 = vmul.f32 %v1297, %v1297
    %v1301 = vsel %vm63, %v1298, 0
    %v1304 = vsel %vm63, %v1299, 0
    %1306 = vmatprep.subr.mxu0 0.0
    %1307 = vmatpush1.msra.mxu0 1.0
    %1308 = vmatprep.subr.mxu0 0.0
    %1309 = vmatpush1.msra.mxu0 1.0
    %1310 = vmatprep.subr.mxu0 0.0
    %1311 = vmatpush1.msra.mxu0 1.0
    %1312 = vmatprep.subr.mxu0 0.0
    %1313 = vmatpush1.msra.mxu0 1.0
    %1314 = vmatprep.subr.mxu0 0.0
    %1315 = vmatpush1.msra.mxu0 0.0
    %1316 = vmatprep.subr.mxu0 0.0
    %1317 = vmatpush1.msra.mxu0 0.0
    %1318 = vmatprep.subr.mxu0 0.0
    %1319 = vmatpush1.msra.mxu0 0.0
    %1320 = vmatprep.subr.mxu0 0.0
    %1321 = vmatpush1.msra.mxu0 0.0
    %1322 = vmatprep.subr.mxu0 0.0
    %1323 = vmatpush1.msra.mxu0 0.0
    %1324 = vmatprep.subr.mxu0 0.0
    %1325 = vmatpush1.msra.mxu0 0.0
    %1326 = vmatprep.subr.mxu0 0.0
    %1327 = vmatpush1.msra.mxu0 0.0
    %1328 = vmatprep.subr.mxu0 0.0
    %1329 = vmatpush1.msra.mxu0 0.0
    %1330 = vmatprep.subr.mxu0 0.0
    %1331 = vmatpush1.msra.mxu0 0.0
    %1332 = vmatprep.subr.mxu0 0.0
    %1333 = vmatpush1.msra.mxu0 0.0
    %1334 = vmatprep.subr.mxu0 0.0
    %1335 = vmatpush1.msra.mxu0 0.0
    %1336 = vmatprep.subr.mxu0 0.0
    %1337 = vmatpush1.msra.mxu0 0.0
    %1338 = vmatprep.subr.mxu0 0.0
    %1339 = vmatpush1.msra.mxu0 0.0
    %1340 = vmatprep.subr.mxu0 0.0
    %1341 = vmatpush1.msra.mxu0 0.0
    %1342 = vmatprep.subr.mxu0 0.0
    %1343 = vmatpush1.msra.mxu0 0.0
    %1344 = vmatprep.subr.mxu0 0.0
    %1345 = vmatpush1.msra.mxu0 0.0
    %1346 = vmatprep.subr.mxu0 0.0
    %1347 = vmatpush1.msra.mxu0 0.0
    %1348 = vmatprep.subr.mxu0 0.0
    %1349 = vmatpush1.msra.mxu0 0.0
    %1350 = vmatprep.subr.mxu0 0.0
    %1351 = vmatpush1.msra.mxu0 0.0
    %1352 = vmatprep.subr.mxu0 0.0
    %1353 = vmatpush1.msra.mxu0 0.0
    %1354 = vmatprep.subr.mxu0 0.0
    %1355 = vmatpush1.msra.mxu0 0.0
    %1356 = vmatprep.subr.mxu0 0.0
    %1357 = vmatpush1.msra.mxu0 0.0
    %1358 = vmatprep.subr.mxu0 0.0
    %1359 = vmatpush1.msra.mxu0 0.0
    %1360 = vmatprep.subr.mxu0 0.0
    %1361 = vmatpush1.msra.mxu0 0.0
    %1362 = vmatprep.subr.mxu0 0.0
    %1363 = vmatpush1.msra.mxu0 0.0
    %1364 = vmatprep.subr.mxu0 0.0
    %1365 = vmatpush1.msra.mxu0 0.0
    %1366 = vmatprep.subr.mxu0 0.0
    %1367 = vmatpush1.msra.mxu0 0.0
    %1368 = vmatprep.subr.mxu0 0.0
    %1369 = vmatpush1.msra.mxu0 0.0
    %1370 = vmatprep.mubr.f32.mxu0 0.0
    %1371 = vmatmul.mubr.f32.gmra.mrb[0].mxu0 %v1301
    %v1372 = vpop.f32.mrb[0].mxu0
    %v1373 = vadd.f32 0.0, %v1372
    %v1374 = vpop.f32.mrb[0].mxu0
    %1375 = vmatprep.mubr.f32.mxu0 0.0
    %1376 = vmatmul.mubr.f32.gmra.mrb[0].mxu0 %v1304
    %v1377 = vpop.f32.mrb[0].mxu0
    %v1378 = vadd.f32 0.0, %v1377
    %v1379 = vpop.f32.mrb[0].mxu0
    %1380 = vdwg.mxu0
    %v1381 = vmul.f32 %v1373, 0.03125
    %v1382 = vmul.f32 %v1378, 0.03125
    %v1383 = vadd.f32 %v1381, 1e-12
    %v1384 = vadd.f32 %v1382, 1e-12
    %v1385 = vrsqrt.pop %v1383
    %v1386 = vrsqrt.pop %v1384
    %1388 = vset.pattern.permute.xlu0 0
    %1389 = vperm.xlu0 %1388, %v1385
    %v1390 = vpop.permute.xlu0 %1389
    %1393 = vset.pattern.permute.xlu0 0
    %1394 = vperm.xlu0 %1393, %v1386
    %v1395 = vpop.permute.xlu0 %1394
    %v1397 = vmul.f32 %v1296, %v1390
    %v1398 = vmul.f32 %v1297, %v1395
    %v1399 = vlaneseq
    %v1400 = vshrl.u32 %v1399, 7
    %v1401 = vsub.s32 0, %v1400
    %v1402 = vrot.slane %v327, %v1401
    %v1403 = vmul.f32 %v1397, %v1402
    %v1404 = vmul.f32 %v1398, %v1402
    %v1405 = vlaneseq
    %v1406 = vshrl.u32 %v1405, 7
    %v1407 = vsub.s32 0, %v1406
    %v1408 = vrot.slane %v328, %v1407
    %v1409 = vadd.f32 %v1403, %v1408
    %v1410 = vadd.f32 %v1404, %v1408
    %v1411 = vlaneseq
    %v1412 = vshrl.u32 %v1411, 7
    %v1413 = vsub.s32 0, %v1412
    %v1414 = vrot.slane %v329, %v1413
    %v1416 = vsel %vm63, %v1409, 0
    %v1419 = vsel %vm63, %v1410, 0
    %1421 = vmatprep.subr.mxu0 0.0
    %1422 = vmatpush1.msra.mxu0 %v313
    %1423 = vmatprep.subr.mxu0 0.0
    %1424 = vmatpush1.msra.mxu0 %v314
    %1425 = vmatprep.subr.mxu0 0.0
    %1426 = vmatpush1.msra.mxu0 %v315
    %1427 = vmatprep.subr.mxu0 0.0
    %1428 = vmatpush1.msra.mxu0 %v316
    %1429 = vmatprep.subr.mxu0 0.0
    %1430 = vmatpush1.msra.mxu0 0.0
    %1431 = vmatprep.subr.mxu0 0.0
    %1432 = vmatpush1.msra.mxu0 0.0
    %1433 = vmatprep.subr.mxu0 0.0
    %1434 = vmatpush1.msra.mxu0 0.0
    %1435 = vmatprep.subr.mxu0 0.0
    %1436 = vmatpush1.msra.mxu0 0.0
    %1437 = vmatprep.subr.mxu0 0.0
    %1438 = vmatpush1.msra.mxu0 0.0
    %1439 = vmatprep.subr.mxu0 0.0
    %1440 = vmatpush1.msra.mxu0 0.0
    %1441 = vmatprep.subr.mxu0 0.0
    %1442 = vmatpush1.msra.mxu0 0.0
    %1443 = vmatprep.subr.mxu0 0.0
    %1444 = vmatpush1.msra.mxu0 0.0
    %1445 = vmatprep.subr.mxu0 0.0
    %1446 = vmatpush1.msra.mxu0 0.0
    %1447 = vmatprep.subr.mxu0 0.0
    %1448 = vmatpush1.msra.mxu0 0.0
    %1449 = vmatprep.subr.mxu0 0.0
    %1450 = vmatpush1.msra.mxu0 0.0
    %1451 = vmatprep.subr.mxu0 0.0
    %1452 = vmatpush1.msra.mxu0 0.0
    %1453 = vmatprep.subr.mxu0 0.0
    %1454 = vmatpush1.msra.mxu0 0.0
    %1455 = vmatprep.subr.mxu0 0.0
    %1456 = vmatpush1.msra.mxu0 0.0
    %1457 = vmatprep.subr.mxu0 0.0
    %1458 = vmatpush1.msra.mxu0 0.0
    %1459 = vmatprep.subr.mxu0 0.0
    %1460 = vmatpush1.msra.mxu0 0.0
    %1461 = vmatprep.subr.mxu0 0.0
    %1462 = vmatpush1.msra.mxu0 0.0
    %1463 = vmatprep.subr.mxu0 0.0
    %1464 = vmatpush1.msra.mxu0 0.0
    %1465 = vmatprep.subr.mxu0 0.0
    %1466 = vmatpush1.msra.mxu0 0.0
    %1467 = vmatprep.subr.mxu0 0.0
    %1468 = vmatpush1.msra.mxu0 0.0
    %1469 = vmatprep.subr.mxu0 0.0
    %1470 = vmatpush1.msra.mxu0 0.0
    %1471 = vmatprep.subr.mxu0 0.0
    %1472 = vmatpush1.msra.mxu0 0.0
    %1473 = vmatprep.subr.mxu0 0.0
    %1474 = vmatpush1.msra.mxu0 0.0
    %1475 = vmatprep.subr.mxu0 0.0
    %1476 = vmatpush1.msra.mxu0 0.0
    %1477 = vmatprep.subr.mxu0 0.0
    %1478 = vmatpush1.msra.mxu0 0.0
    %1479 = vmatprep.subr.mxu0 0.0
    %1480 = vmatpush1.msra.mxu0 0.0
    %1481 = vmatprep.subr.mxu0 0.0
    %1482 = vmatpush1.msra.mxu0 0.0
    %1483 = vmatprep.subr.mxu0 0.0
    %1484 = vmatpush1.msra.mxu0 0.0
    %1485 = vmatprep.mubr.f32.mxu0 0.0
    %1486 = vmatmul.mubr.f32.gmra.mrb[0].mxu0 %v1416
    %v1487 = vpop.f32.mrb[0].mxu0
    %v1488 = vadd.f32 %v1414, %v1487
    %v1489 = vpop.f32.mrb[0].mxu0
    %1490 = vmatprep.mubr.f32.mxu0 0.0
    %1491 = vmatmul.mubr.f32.gmra.mrb[0].mxu0 %v1419
    %v1492 = vpop.f32.mrb[0].mxu0
    %v1493 = vadd.f32 %v1414, %v1492
    %v1494 = vpop.f32.mrb[0].mxu0
    %1495 = vdwg.mxu0
    %v1496 = vmul.f32 %v1488, %v1488
    %v1497 = vmul.f32 %v1493, %v1493
    %v1498 = vmul.f32 %v1488, %v1496
    %v1499 = vmul.f32 %v1493, %v1497
    %v1500 = vmul.f32 %v1498, 0.044715
    %v1501 = vmul.f32 %v1499, 0.044715
    %v1502 = vadd.f32 %v1488, %v1500
    %v1503 = vadd.f32 %v1493, %v1501
    %v1504 = vmul.f32 %v1502, 0.7978846
    %v1505 = vmul.f32 %v1503, 0.7978846
    %v1506 = vtanh.pop %v1504
    %v1507 = vtanh.pop %v1505
    %v1508 = vadd.f32 %v1506, 1.0
    %v1509 = vadd.f32 %v1507, 1.0
    %v1510 = vmul.f32 %v1508, 0.5
    %v1511 = vmul.f32 %v1509, 0.5
    %v1512 = vmul.f32 %v1488, %v1510
    %v1513 = vmul.f32 %v1493, %v1511
    %v1514 = vlaneseq
    %v1515 = vshrl.u32 %v1514, 7
    %v1516 = vsub.s32 0, %v1515
    %v1517 = vrot.slane %v330, %v1516
    %vm1518 = vcmask 523264
    %v1520 = vsel %vm1518, %v1512, 0
    %v1523 = vsel %vm1518, %v1513, 0
    %1525 = vmatprep.subr.mxu0 0.0
    %1526 = vmatpush1.msra.mxu0 %v317
    %1527 = vmatprep.subr.mxu0 0.0
    %1528 = vmatpush1.msra.mxu0 %v318
    %1529 = vmatprep.subr.mxu0 0.0
    %1530 = vmatpush1.msra.mxu0 %v319
    %1531 = vmatprep.subr.mxu0 0.0
    %1532 = vmatpush1.msra.mxu0 %v320
    %1533 = vmatprep.subr.mxu0 0.0
    %1534 = vmatpush1.msra.mxu0 %v321
    %1535 = vmatprep.subr.mxu0 0.0
    %1536 = vmatpush1.msra.mxu0 %v322
    %1537 = vmatprep.subr.mxu0 0.0
    %1538 = vmatpush1.msra.mxu0 %v323
    %1539 = vmatprep.subr.mxu0 0.0
    %1540 = vmatpush1.msra.mxu0 %v324
    %1541 = vmatprep.subr.mxu0 0.0
    %1542 = vmatpush1.msra.mxu0 0.0
    %1543 = vmatprep.subr.mxu0 0.0
    %1544 = vmatpush1.msra.mxu0 0.0
    %1545 = vmatprep.subr.mxu0 0.0
    %1546 = vmatpush1.msra.mxu0 0.0
    %1547 = vmatprep.subr.mxu0 0.0
    %1548 = vmatpush1.msra.mxu0 0.0
    %1549 = vmatprep.subr.mxu0 0.0
    %1550 = vmatpush1.msra.mxu0 0.0
    %1551 = vmatprep.subr.mxu0 0.0
    %1552 = vmatpush1.msra.mxu0 0.0
    %1553 = vmatprep.subr.mxu0 0.0
    %1554 = vmatpush1.msra.mxu0 0.0
    %1555 = vmatprep.subr.mxu0 0.0
    %1556 = vmatpush1.msra.mxu0 0.0
    %1557 = vmatprep.subr.mxu0 0.0
    %1558 = vmatpush1.msra.mxu0 0.0
    %1559 = vmatprep.subr.mxu0 0.0
    %1560 = vmatpush1.msra.mxu0 0.0
    %1561 = vmatprep.subr.mxu0 0.0
    %1562 = vmatpush1.msra.mxu0 0.0
    %1563 = vmatprep.subr.mxu0 0.0
    %1564 = vmatpush1.msra.mxu0 0.0
    %1565 = vmatprep.subr.mxu0 0.0
    %1566 = vmatpush1.msra.mxu0 0.0
    %1567 = vmatprep.subr.mxu0 0.0
    %1568 = vmatpush1.msra.mxu0 0.0
    %1569 = vmatprep.subr.mxu0 0.0
    %1570 = vmatpush1.msra.mxu0 0.0
    %1571 = vmatprep.subr.mxu0 0.0
    %1572 = vmatpush1.msra.mxu0 0.0
    %1573 = vmatprep.subr.mxu0 0.0
    %1574 = vmatpush1.msra.mxu0 0.0
    %1575 = vmatprep.subr.mxu0 0.0
    %1576 = vmatpush1.msra.mxu0 0.0
    %1577 = vmatprep.subr.mxu0 0.0
    %1578 = vmatpush1.msra.mxu0 0.0
    %1579 = vmatprep.subr.mxu0 0.0
    %1580 = vmatpush1.msra.mxu0 0.0
    %1581 = vmatprep.subr.mxu0 0.0
    %1582 = vmatpush1.msra.mxu0 0.0
    %1583 = vmatprep.subr.mxu0 0.0
    %1584 = vmatpush1.msra.mxu0 0.0
    %1585 = vmatprep.subr.mxu0 0.0
    %1586 = vmatpush1.msra.mxu0 0.0
    %1587 = vmatprep.subr.mxu0 0.0
    %1588 = vmatpush1.msra.mxu0 0.0
    %1589 = vmatprep.mubr.f32.mxu0 0.0
    %1590 = vmatmul.mubr.f32.gmra.mrb[0].mxu0 %v1520
    %v1591 = vpop.f32.mrb[0].mxu0
    %v1592 = vadd.f32 %v1517, %v1591
    %v1593 = vpop.f32.mrb[0].mxu0
    %1594 = vmatprep.mubr.f32.mxu0 0.0
    %1595 = vmatmul.mubr.f32.gmra.mrb[0].mxu0 %v1523
    %v1596 = vpop.f32.mrb[0].mxu0
    %v1597 = vadd.f32 %v1517, %v1596
    %v1598 = vpop.f32.mrb[0].mxu0
    %1599 = vdwg.mxu0
    %v1600 = vadd.f32 %v1409, %v1592
    %v1601 = vadd.f32 %v1410, %v1597
    %v1603 = vsel %vm63, %v1600, 0
    %v1606 = vsel %vm63, %v1601, 0
    %1608 = vmatprep.subr.mxu0 0.0
    %1609 = vmatpush1.msra.mxu0 1.0
    %1610 = vmatprep.subr.mxu0 0.0
    %1611 = vmatpush1.msra.mxu0 1.0
    %1612 = vmatprep.subr.mxu0 0.0
    %1613 = vmatpush1.msra.mxu0 1.0
    %1614 = vmatprep.subr.mxu0 0.0
    %1615 = vmatpush1.msra.mxu0 1.0
    %1616 = vmatprep.subr.mxu0 0.0
    %1617 = vmatpush1.msra.mxu0 0.0
    %1618 = vmatprep.subr.mxu0 0.0
    %1619 = vmatpush1.msra.mxu0 0.0
    %1620 = vmatprep.subr.mxu0 0.0
    %1621 = vmatpush1.msra.mxu0 0.0
    %1622 = vmatprep.subr.mxu0 0.0
    %1623 = vmatpush1.msra.mxu0 0.0
    %1624 = vmatprep.subr.mxu0 0.0
    %1625 = vmatpush1.msra.mxu0 0.0
    %1626 = vmatprep.subr.mxu0 0.0
    %1627 = vmatpush1.msra.mxu0 0.0
    %1628 = vmatprep.subr.mxu0 0.0
    %1629 = vmatpush1.msra.mxu0 0.0
    %1630 = vmatprep.subr.mxu0 0.0
    %1631 = vmatpush1.msra.mxu0 0.0
    %1632 = vmatprep.subr.mxu0 0.0
    %1633 = vmatpush1.msra.mxu0 0.0
    %1634 = vmatprep.subr.mxu0 0.0
    %1635 = vmatpush1.msra.mxu0 0.0
    %1636 = vmatprep.subr.mxu0 0.0
    %1637 = vmatpush1.msra.mxu0 0.0
    %1638 = vmatprep.subr.mxu0 0.0
    %1639 = vmatpush1.msra.mxu0 0.0
    %1640 = vmatprep.subr.mxu0 0.0
    %1641 = vmatpush1.msra.mxu0 0.0
    %1642 = vmatprep.subr.mxu0 0.0
    %1643 = vmatpush1.msra.mxu0 0.0
    %1644 = vmatprep.subr.mxu0 0.0
    %1645 = vmatpush1.msra.mxu0 0.0
    %1646 = vmatprep.subr.mxu0 0.0
    %1647 = vmatpush1.msra.mxu0 0.0
    %1648 = vmatprep.subr.mxu0 0.0
    %1649 = vmatpush1.msra.mxu0 0.0
    %1650 = vmatprep.subr.mxu0 0.0
    %1651 = vmatpush1.msra.mxu0 0.0
    %1652 = vmatprep.subr.mxu0 0.0
    %1653 = vmatpush1.msra.mxu0 0.0
    %1654 = vmatprep.subr.mxu0 0.0
    %1655 = vmatpush1.msra.mxu0 0.0
    %1656 = vmatprep.subr.mxu0 0.0
    %1657 = vmatpush1.msra.mxu0 0.0
    %1658 = vmatprep.subr.mxu0 0.0
    %1659 = vmatpush1.msra.mxu0 0.0
    %1660 = vmatprep.subr.mxu0 0.0
    %1661 = vmatpush1.msra.mxu0 0.0
    %1662 = vmatprep.subr.mxu0 0.0
    %1663 = vmatpush1.msra.mxu0 0.0
    %1664 = vmatprep.subr.mxu0 0.0
    %1665 = vmatpush1.msra.mxu0 0.0
    %1666 = vmatprep.subr.mxu0 0.0
    %1667 = vmatpush1.msra.mxu0 0.0
    %1668 = vmatprep.subr.mxu0 0.0
    %1669 = vmatpush1.msra.mxu0 0.0
    %1670 = vmatprep.subr.mxu0 0.0
    %1671 = vmatpush1.msra.mxu0 0.0
    %1672 = vmatprep.mubr.f32.mxu0 0.0
    %1673 = vmatmul.mubr.f32.gmra.mrb[0].mxu0 %v1603
    %v1674 = vpop.f32.mrb[0].mxu0
    %v1675 = vadd.f32 0.0, %v1674
    %v1676 = vpop.f32.mrb[0].mxu0
    %1677 = vmatprep.mubr.f32.mxu0 0.0
    %1678 = vmatmul.mubr.f32.gmra.mrb[0].mxu0 %v1606
    %v1679 = vpop.f32.mrb[0].mxu0
    %v1680 = vadd.f32 0.0, %v1679
    %v1681 = vpop.f32.mrb[0].mxu0
    %1682 = vdwg.mxu0
    %v1683 = vmul.f32 %v1675, 0.03125
    %v1684 = vmul.f32 %v1680, 0.03125
    %1686 = vset.pattern.permute.xlu0 0
    %1687 = vperm.xlu0 %1686, %v1683
    %v1688 = vpop.permute.xlu0 %1687
    %1691 = vset.pattern.permute.xlu0 0
    %1692 = vperm.xlu0 %1691, %v1684
    %v1693 = vpop.permute.xlu0 %1692
    %v1695 = vsub.f32 %v1600, %v1688
    %v1696 = vsub.f32 %v1601, %v1693
    %v1697 = vmul.f32 %v1695, %v1695
    %v1698 = vmul.f32 %v1696, %v1696
    %v1700 = vsel %vm63, %v1697, 0
    %v1703 = vsel %vm63, %v1698, 0
    %1705 = vmatprep.subr.mxu0 0.0
    %1706 = vmatpush1.msra.mxu0 1.0
    %1707 = vmatprep.subr.mxu0 0.0
    %1708 = vmatpush1.msra.mxu0 1.0
    %1709 = vmatprep.subr.mxu0 0.0
    %1710 = vmatpush1.msra.mxu0 1.0
    %1711 = vmatprep.subr.mxu0 0.0
    %1712 = vmatpush1.msra.mxu0 1.0
    %1713 = vmatprep.subr.mxu0 0.0
    %1714 = vmatpush1.msra.mxu0 0.0
    %1715 = vmatprep.subr.mxu0 0.0
    %1716 = vmatpush1.msra.mxu0 0.0
    %1717 = vmatprep.subr.mxu0 0.0
    %1718 = vmatpush1.msra.mxu0 0.0
    %1719 = vmatprep.subr.mxu0 0.0
    %1720 = vmatpush1.msra.mxu0 0.0
    %1721 = vmatprep.subr.mxu0 0.0
    %1722 = vmatpush1.msra.mxu0 0.0
    %1723 = vmatprep.subr.mxu0 0.0
    %1724 = vmatpush1.msra.mxu0 0.0
    %1725 = vmatprep.subr.mxu0 0.0
    %1726 = vmatpush1.msra.mxu0 0.0
    %1727 = vmatprep.subr.mxu0 0.0
    %1728 = vmatpush1.msra.mxu0 0.0
    %1729 = vmatprep.subr.mxu0 0.0
    %1730 = vmatpush1.msra.mxu0 0.0
    %1731 = vmatprep.subr.mxu0 0.0
    %1732 = vmatpush1.msra.mxu0 0.0
    %1733 = vmatprep.subr.mxu0 0.0
    %1734 = vmatpush1.msra.mxu0 0.0
    %1735 = vmatprep.subr.mxu0 0.0
    %1736 = vmatpush1.msra.mxu0 0.0
    %1737 = vmatprep.subr.mxu0 0.0
    %1738 = vmatpush1.msra.mxu0 0.0
    %1739 = vmatprep.subr.mxu0 0.0
    %1740 = vmatpush1.msra.mxu0 0.0
    %1741 = vmatprep.subr.mxu0 0.0
    %1742 = vmatpush1.msra.mxu0 0.0
    %1743 = vmatprep.subr.mxu0 0.0
    %1744 = vmatpush1.msra.mxu0 0.0
    %1745 = vmatprep.subr.mxu0 0.0
    %1746 = vmatpush1.msra.mxu0 0.0
    %1747 = vmatprep.subr.mxu0 0.0
    %1748 = vmatpush1.msra.mxu0 0.0
    %1749 = vmatprep.subr.mxu0 0.0
    %1750 = vmatpush1.msra.mxu0 0.0
    %1751 = vmatprep.subr.mxu0 0.0
    %1752 = vmatpush1.msra.mxu0 0.0
    %1753 = vmatprep.subr.mxu0 0.0
    %1754 = vmatpush1.msra.mxu0 0.0
    %1755 = vmatprep.subr.mxu0 0.0
    %1756 = vmatpush1.msra.mxu0 0.0
    %1757 = vmatprep.subr.mxu0 0.0
    %1758 = vmatpush1.msra.mxu0 0.0
    %1759 = vmatprep.subr.mxu0 0.0
    %1760 = vmatpush1.msra.mxu0 0.0
    %1761 = vmatprep.subr.mxu0 0.0
    %1762 = vmatpush1.msra.mxu0 0.0
    %1763 = vmatprep.subr.mxu0 0.0
    %1764 = vmatpush1.msra.mxu0 0.0
    %1765 = vmatprep.subr.mxu0 0.0
    %1766 = vmatpush1.msra.mxu0 0.0
    %1767 = vmatprep.subr.mxu0 0.0
    %1768 = vmatpush1.msra.mxu0 0.0
    %1769 = vmatprep.mubr.f32.mxu0 0.0
    %1770 = vmatmul.mubr.f32.gmra.mrb[0].mxu0 %v1700
    %v1771 = vpop.f32.mrb[0].mxu0
    %v1772 = vadd.f32 0.0, %v1771
    %v1773 = vpop.f32.mrb[0].mxu0
    %1774 = vmatprep.mubr.f32.mxu0 0.0
    %1775 = vmatmul.mubr.f32.gmra.mrb[0].mxu0 %v1703
    %v1776 = vpop.f32.mrb[0].mxu0
    %v1777 = vadd.f32 0.0, %v1776
    %v1778 = vpop.f32.mrb[0].mxu0
    %1779 = vdwg.mxu0
    %v1780 = vmul.f32 %v1772, 0.03125
    %v1781 = vmul.f32 %v1777, 0.03125
    %v1782 = vadd.f32 %v1780, 1e-12
    %v1783 = vadd.f32 %v1781, 1e-12
    %v1784 = vrsqrt.pop %v1782
    %v1785 = vrsqrt.pop %v1783
    %1787 = vset.pattern.permute.xlu0 0
    %1788 = vperm.xlu0 %1787, %v1784
    %v1789 = vpop.permute.xlu0 %1788
    %1792 = vset.pattern.permute.xlu0 0
    %1793 = vperm.xlu0 %1792, %v1785
    %v1794 = vpop.permute.xlu0 %1793
    %v1796 = vmul.f32 %v1695, %v1789
    %v1797 = vmul.f32 %v1696, %v1794
    %v1798 = vlaneseq
    %v1799 = vshrl.u32 %v1798, 7
    %v1800 = vsub.s32 0, %v1799
    %v1801 = vrot.slane %v331, %v1800
    %v1802 = vmul.f32 %v1796, %v1801
    %v1803 = vmul.f32 %v1797, %v1801
    %v1804 = vlaneseq
    %v1805 = vshrl.u32 %v1804, 7
    %v1806 = vsub.s32 0, %v1805
    %v1807 = vrot.slane %v332, %v1806
    %v1808 = vadd.f32 %v1802, %v1807
    %v1809 = vadd.f32 %v1803, %v1807
    %v1810 = vld [vmem:[#allocation7 + $0xa0] sm:$0xff]
    %v1811 = vld [vmem:[#allocation7 + $0xa8] sm:$0xff]
    %v1812 = vld [vmem:[#allocation7 + $0xb0] sm:$0xff]
    %v1813 = vld [vmem:[#allocation7 + $0xb8] sm:$0xff]
    %v1814 = vld [vmem:[#allocation7 + $0xc0] sm:$0xff]
    %v1815 = vld [vmem:[#allocation7 + $0xc8] sm:$0xff]
    %v1816 = vld [vmem:[#allocation7 + $0xd0] sm:$0xff]
    %v1817 = vld [vmem:[#allocation7 + $0xd8] sm:$0xff]
    %v1818 = vld [vmem:[#allocation7 + $0xe0] sm:$0xff]
    %v1819 = vld [vmem:[#allocation7 + $0xe8] sm:$0xff]
    %v1820 = vld [vmem:[#allocation7 + $0xf0] sm:$0xff]
    %v1821 = vld [vmem:[#allocation7 + $0xf8] sm:$0xff]
    %v1822 = vld [vmem:[#allocation7 + $0x100] sm:$0xff]
    %v1823 = vld [vmem:[#allocation7 + $0x108] sm:$0xff]
    %v1824 = vld [vmem:[#allocation7 + $0x110] sm:$0xff]
    %v1825 = vld [vmem:[#allocation7 + $0x118] sm:$0xff]
    %v1826 = vld [vmem:[#allocation7 + $0x120] sm:$0xff]
    %v1827 = vld [vmem:[#allocation7 + $0x128] sm:$0xff]
    %v1828 = vld [vmem:[#allocation7 + $0x130] sm:$0xff]
    %v1829 = vld [vmem:[#allocation7 + $0x138] sm:$0xff]
    %v1830 = vld [vmem:[#allocation5 + $0xa] sm:$0x1]
    %v1831 = vld [vmem:[#allocation5 + $0xb] sm:$0x1]
    %v1832 = vld [vmem:[#allocation5 + $0xc] sm:$0x1]
    %v1833 = vld [vmem:[#allocation5 + $0xd] sm:$0x1]
    %v1834 = vld [vmem:[#allocation5 + $0xe] sm:$0x1]
    %v1835 = vld [vmem:[#allocation5 + $0xf] sm:$0x1]
    %v1836 = vld [vmem:[#allocation5 + $0x10] sm:$0x1]
    %v1837 = vld [vmem:[#allocation5 + $0x11] sm:$0x1]
    %v1838 = vlaneseq
    %v1839 = vshrl.u32 %v1838, 7
    %v1840 = vsub.s32 0, %v1839
    %v1841 = vrot.slane %v1830, %v1840
    %v1843 = vsel %vm63, %v1808, 0
    %v1846 = vsel %vm63, %v1809, 0
    %1848 = vmatprep.subr.mxu0 0.0
    %1849 = vmatpush1.msra.mxu0 %v1810
    %1850 = vmatprep.subr.mxu0 0.0
    %1851 = vmatpush1.msra.mxu0 %v1811
    %1852 = vmatprep.subr.mxu0 0.0
    %1853 = vmatpush1.msra.mxu0 %v1812
    %1854 = vmatprep.subr.mxu0 0.0
    %1855 = vmatpush1.msra.mxu0 %v1813
    %1856 = vmatprep.subr.mxu0 0.0
    %1857 = vmatpush1.msra.mxu0 0.0
    %1858 = vmatprep.subr.mxu0 0.0
    %1859 = vmatpush1.msra.mxu0 0.0
    %1860 = vmatprep.subr.mxu0 0.0
    %1861 = vmatpush1.msra.mxu0 0.0
    %1862 = vmatprep.subr.mxu0 0.0
    %1863 = vmatpush1.msra.mxu0 0.0
    %1864 = vmatprep.subr.mxu0 0.0
    %1865 = vmatpush1.msra.mxu0 0.0
    %1866 = vmatprep.subr.mxu0 0.0
    %1867 = vmatpush1.msra.mxu0 0.0
    %1868 = vmatprep.subr.mxu0 0.0
    %1869 = vmatpush1.msra.mxu0 0.0
    %1870 = vmatprep.subr.mxu0 0.0
    %1871 = vmatpush1.msra.mxu0 0.0
    %1872 = vmatprep.subr.mxu0 0.0
    %1873 = vmatpush1.msra.mxu0 0.0
    %1874 = vmatprep.subr.mxu0 0.0
    %1875 = vmatpush1.msra.mxu0 0.0
    %1876 = vmatprep.subr.mxu0 0.0
    %1877 = vmatpush1.msra.mxu0 0.0
    %1878 = vmatprep.subr.mxu0 0.0
    %1879 = vmatpush1.msra.mxu0 0.0
    %1880 = vmatprep.subr.mxu0 0.0
    %1881 = vmatpush1.msra.mxu0 0.0
    %1882 = vmatprep.subr.mxu0 0.0
    %1883 = vmatpush1.msra.mxu0 0.0
    %1884 = vmatprep.subr.mxu0 0.0
    %1885 = vmatpush1.msra.mxu0 0.0
    %1886 = vmatprep.subr.mxu0 0.0
    %1887 = vmatpush1.msra.mxu0 0.0
    %1888 = vmatprep.subr.mxu0 0.0
    %1889 = vmatpush1.msra.mxu0 0.0
    %1890 = vmatprep.subr.mxu0 0.0
    %1891 = vmatpush1.msra.mxu0 0.0
    %1892 = vmatprep.subr.mxu0 0.0
    %1893 = vmatpush1.msra.mxu0 0.0
    %1894 = vmatprep.subr.mxu0 0.0
    %1895 = vmatpush1.msra.mxu0 0.0
    %1896 = vmatprep.subr.mxu0 0.0
    %1897 = vmatpush1.msra.mxu0 0.0
    %1898 = vmatprep.subr.mxu0 0.0
    %1899 = vmatpush1.msra.mxu0 0.0
    %1900 = vmatprep.subr.mxu0 0.0
    %1901 = vmatpush1.msra.mxu0 0.0
    %1902 = vmatprep.subr.mxu0 0.0
    %1903 = vmatpush1.msra.mxu0 0.0
    %1904 = vmatprep.subr.mxu0 0.0
    %1905 = vmatpush1.msra.mxu0 0.0
    %1906 = vmatprep.subr.mxu0 0.0
    %1907 = vmatpush1.msra.mxu0 0.0
    %1908 = vmatprep.subr.mxu0 0.0
    %1909 = vmatpush1.msra.mxu0 0.0
    %1910 = vmatprep.subr.mxu0 0.0
    %1911 = vmatpush1.msra.mxu0 0.0
    %1912 = vmatprep.mubr.f32.mxu0 0.0
    %1913 = vmatmul.mubr.f32.gmra.mrb[0].mxu0 %v1843
    %v1914 = vpop.f32.mrb[0].mxu0
    %v1915 = vadd.f32 %v1841, %v1914
    %v1916 = vpop.f32.mrb[0].mxu0
    %1917 = vmatprep.mubr.f32.mxu0 0.0
    %1918 = vmatmul.mubr.f32.gmra.mrb[0].mxu0 %v1846
    %v1919 = vpop.f32.mrb[0].mxu0
    %v1920 = vadd.f32 %v1841, %v1919
    %v1921 = vpop.f32.mrb[0].mxu0
    %1922 = vdwg.mxu0
    %1925 = vrot.lane.b32.xlu0 %v1915, 112
    %v1926 = vpop.permute.xlu0 %1925
    %1927 = vrot.lane.b32.xlu0 %v1920, 112
    %v1928 = vpop.permute.xlu0 %1927
    %1929 = vrot.lane.b32.xlu0 %v1915, 96
    %v1930 = vpop.permute.xlu0 %1929
    %v1931 = vsel %vm426, %v1915, 0
    %v1933 = vsel %vm426, %v1930, 0
    %1935 = vmatprep.subr.mxu0 0.0
    %1936 = vmatpush1.xpose.msra.mxu0 %v1933
    %1937 = vmatprep.subr.mxu0 0.0
    %1938 = vmatpush1.xpose.msra.mxu0 0.0
    %1939 = vmatprep.subr.mxu0 0.0
    %1940 = vmatpush1.xpose.msra.mxu0 0.0
    %1941 = vmatprep.subr.mxu0 0.0
    %1942 = vmatpush1.xpose.msra.mxu0 0.0
    %1943 = vmatprep.subr.mxu0 0.0
    %1944 = vmatpush1.xpose.msra.mxu0 0.0
    %1945 = vmatprep.subr.mxu0 0.0
    %1946 = vmatpush1.xpose.msra.mxu0 0.0
    %1947 = vmatprep.subr.mxu0 0.0
    %1948 = vmatpush1.xpose.msra.mxu0 0.0
    %1949 = vmatprep.subr.mxu0 0.0
    %1950 = vmatpush1.xpose.msra.mxu0 0.0
    %1951 = vmatprep.subr.mxu0 0.0
    %1952 = vmatpush1.xpose.msra.mxu0 0.0
    %1953 = vmatprep.subr.mxu0 0.0
    %1954 = vmatpush1.xpose.msra.mxu0 0.0
    %1955 = vmatprep.subr.mxu0 0.0
    %1956 = vmatpush1.xpose.msra.mxu0 0.0
    %1957 = vmatprep.subr.mxu0 0.0
    %1958 = vmatpush1.xpose.msra.mxu0 0.0
    %1959 = vmatprep.subr.mxu0 0.0
    %1960 = vmatpush1.xpose.msra.mxu0 0.0
    %1961 = vmatprep.subr.mxu0 0.0
    %1962 = vmatpush1.xpose.msra.mxu0 0.0
    %1963 = vmatprep.subr.mxu0 0.0
    %1964 = vmatpush1.xpose.msra.mxu0 0.0
    %1965 = vmatprep.subr.mxu0 0.0
    %1966 = vmatpush1.xpose.msra.mxu0 0.0
    %1967 = vmatprep.subr.mxu0 0.0
    %1968 = vmatpush1.xpose.msra.mxu0 0.0
    %1969 = vmatprep.subr.mxu0 0.0
    %1970 = vmatpush1.xpose.msra.mxu0 0.0
    %1971 = vmatprep.subr.mxu0 0.0
    %1972 = vmatpush1.xpose.msra.mxu0 0.0
    %1973 = vmatprep.subr.mxu0 0.0
    %1974 = vmatpush1.xpose.msra.mxu0 0.0
    %1975 = vmatprep.subr.mxu0 0.0
    %1976 = vmatpush1.xpose.msra.mxu0 0.0
    %1977 = vmatprep.subr.mxu0 0.0
    %1978 = vmatpush1.xpose.msra.mxu0 0.0
    %1979 = vmatprep.subr.mxu0 0.0
    %1980 = vmatpush1.xpose.msra.mxu0 0.0
    %1981 = vmatprep.subr.mxu0 0.0
    %1982 = vmatpush1.xpose.msra.mxu0 0.0
    %1983 = vmatprep.subr.mxu0 0.0
    %1984 = vmatpush1.xpose.msra.mxu0 0.0
    %1985 = vmatprep.subr.mxu0 0.0
    %1986 = vmatpush1.xpose.msra.mxu0 0.0
    %1987 = vmatprep.subr.mxu0 0.0
    %1988 = vmatpush1.xpose.msra.mxu0 0.0
    %1989 = vmatprep.subr.mxu0 0.0
    %1990 = vmatpush1.xpose.msra.mxu0 0.0
    %1991 = vmatprep.subr.mxu0 0.0
    %1992 = vmatpush1.xpose.msra.mxu0 0.0
    %1993 = vmatprep.subr.mxu0 0.0
    %1994 = vmatpush1.xpose.msra.mxu0 0.0
    %1995 = vmatprep.subr.mxu0 0.0
    %1996 = vmatpush1.xpose.msra.mxu0 0.0
    %1997 = vmatprep.subr.mxu0 0.0
    %1998 = vmatpush1.xpose.msra.mxu0 0.0
    %1999 = vmatprep.mubr.f32.mxu0 0.0
    %2000 = vmatmul.mubr.f32.gmra.mrb[0].mxu0 %v1931
    %v2001 = vpop.f32.mrb[0].mxu0
    %v2002 = vadd.f32 0.0, %v2001
    %v2003 = vpop.f32.mrb[0].mxu0
    %2004 = vdwg.mxu0
    %2005 = vrot.lane.b32.xlu0 %v1920, 96
    %v2006 = vpop.permute.xlu0 %2005
    %v2007 = vsel %vm426, %v1920, 0
    %v2009 = vsel %vm426, %v2006, 0
    %2011 = vmatprep.subr.mxu0 0.0
    %2012 = vmatpush1.xpose.msra.mxu0 %v2009
    %2013 = vmatprep.subr.mxu0 0.0
    %2014 = vmatpush1.xpose.msra.mxu0 0.0
    %2015 = vmatprep.subr.mxu0 0.0
    %2016 = vmatpush1.xpose.msra.mxu0 0.0
    %2017 = vmatprep.subr.mxu0 0.0
    %2018 = vmatpush1.xpose.msra.mxu0 0.0
    %2019 = vmatprep.subr.mxu0 0.0
    %2020 = vmatpush1.xpose.msra.mxu0 0.0
    %2021 = vmatprep.subr.mxu0 0.0
    %2022 = vmatpush1.xpose.msra.mxu0 0.0
    %2023 = vmatprep.subr.mxu0 0.0
    %2024 = vmatpush1.xpose.msra.mxu0 0.0
    %2025 = vmatprep.subr.mxu0 0.0
    %2026 = vmatpush1.xpose.msra.mxu0 0.0
    %2027 = vmatprep.subr.mxu0 0.0
    %2028 = vmatpush1.xpose.msra.mxu0 0.0
    %2029 = vmatprep.subr.mxu0 0.0
    %2030 = vmatpush1.xpose.msra.mxu0 0.0
    %2031 = vmatprep.subr.mxu0 0.0
    %2032 = vmatpush1.xpose.msra.mxu0 0.0
    %2033 = vmatprep.subr.mxu0 0.0
    %2034 = vmatpush1.xpose.msra.mxu0 0.0
    %2035 = vmatprep.subr.mxu0 0.0
    %2036 = vmatpush1.xpose.msra.mxu0 0.0
    %2037 = vmatprep.subr.mxu0 0.0
    %2038 = vmatpush1.xpose.msra.mxu0 0.0
    %2039 = vmatprep.subr.mxu0 0.0
    %2040 = vmatpush1.xpose.msra.mxu0 0.0
    %2041 = vmatprep.subr.mxu0 0.0
    %2042 = vmatpush1.xpose.msra.mxu0 0.0
    %2043 = vmatprep.subr.mxu0 0.0
    %2044 = vmatpush1.xpose.msra.mxu0 0.0
    %2045 = vmatprep.subr.mxu0 0.0
    %2046 = vmatpush1.xpose.msra.mxu0 0.0
    %2047 = vmatprep.subr.mxu0 0.0
    %2048 = vmatpush1.xpose.msra.mxu0 0.0
    %2049 = vmatprep.subr.mxu0 0.0
    %2050 = vmatpush1.xpose.msra.mxu0 0.0
    %2051 = vmatprep.subr.mxu0 0.0
    %2052 = vmatpush1.xpose.msra.mxu0 0.0
    %2053 = vmatprep.subr.mxu0 0.0
    %2054 = vmatpush1.xpose.msra.mxu0 0.0
    %2055 = vmatprep.subr.mxu0 0.0
    %2056 = vmatpush1.xpose.msra.mxu0 0.0
    %2057 = vmatprep.subr.mxu0 0.0
    %2058 = vmatpush1.xpose.msra.mxu0 0.0
    %2059 = vmatprep.subr.mxu0 0.0
    %2060 = vmatpush1.xpose.msra.mxu0 0.0
    %2061 = vmatprep.subr.mxu0 0.0
    %2062 = vmatpush1.xpose.msra.mxu0 0.0
    %2063 = vmatprep.subr.mxu0 0.0
    %2064 = vmatpush1.xpose.msra.mxu0 0.0
    %2065 = vmatprep.subr.mxu0 0.0
    %2066 = vmatpush1.xpose.msra.mxu0 0.0
    %2067 = vmatprep.subr.mxu0 0.0
    %2068 = vmatpush1.xpose.msra.mxu0 0.0
    %2069 = vmatprep.subr.mxu0 0.0
    %2070 = vmatpush1.xpose.msra.mxu0 0.0
    %2071 = vmatprep.subr.mxu0 0.0
    %2072 = vmatpush1.xpose.msra.mxu0 0.0
    %2073 = vmatprep.subr.mxu0 0.0
    %2074 = vmatpush1.xpose.msra.mxu0 0.0
    %2075 = vmatprep.mubr.f32.mxu0 0.0
    %2076 = vmatmul.mubr.f32.gmra.mrb[0].mxu0 %v2007
    %v2077 = vpop.f32.mrb[0].mxu0
    %v2078 = vadd.f32 0.0, %v2077
    %v2079 = vpop.f32.mrb[0].mxu0
    %2080 = vdwg.mxu0
    %2081 = vrot.lane.b32.xlu0 %v1926, 96
    %v2082 = vpop.permute.xlu0 %2081
    %v2083 = vsel %vm426, %v1926, 0
    %v2085 = vsel %vm426, %v2082, 0
    %2087 = vmatprep.subr.mxu0 0.0
    %2088 = vmatpush1.xpose.msra.mxu0 %v2085
    %2089 = vmatprep.subr.mxu0 0.0
    %2090 = vmatpush1.xpose.msra.mxu0 0.0
    %2091 = vmatprep.subr.mxu0 0.0
    %2092 = vmatpush1.xpose.msra.mxu0 0.0
    %2093 = vmatprep.subr.mxu0 0.0
    %2094 = vmatpush1.xpose.msra.mxu0 0.0
    %2095 = vmatprep.subr.mxu0 0.0
    %2096 = vmatpush1.xpose.msra.mxu0 0.0
    %2097 = vmatprep.subr.mxu0 0.0
    %2098 = vmatpush1.xpose.msra.mxu0 0.0
    %2099 = vmatprep.subr.mxu0 0.0
    %2100 = vmatpush1.xpose.msra.mxu0 0.0
    %2101 = vmatprep.subr.mxu0 0.0
    %2102 = vmatpush1.xpose.msra.mxu0 0.0
    %2103 = vmatprep.subr.mxu0 0.0
    %2104 = vmatpush1.xpose.msra.mxu0 0.0
    %2105 = vmatprep.subr.mxu0 0.0
    %2106 = vmatpush1.xpose.msra.mxu0 0.0
    %2107 = vmatprep.subr.mxu0 0.0
    %2108 = vmatpush1.xpose.msra.mxu0 0.0
    %2109 = vmatprep.subr.mxu0 0.0
    %2110 = vmatpush1.xpose.msra.mxu0 0.0
    %2111 = vmatprep.subr.mxu0 0.0
    %2112 = vmatpush1.xpose.msra.mxu0 0.0
    %2113 = vmatprep.subr.mxu0 0.0
    %2114 = vmatpush1.xpose.msra.mxu0 0.0
    %2115 = vmatprep.subr.mxu0 0.0
    %2116 = vmatpush1.xpose.msra.mxu0 0.0
    %2117 = vmatprep.subr.mxu0 0.0
    %2118 = vmatpush1.xpose.msra.mxu0 0.0
    %2119 = vmatprep.subr.mxu0 0.0
    %2120 = vmatpush1.xpose.msra.mxu0 0.0
    %2121 = vmatprep.subr.mxu0 0.0
    %2122 = vmatpush1.xpose.msra.mxu0 0.0
    %2123 = vmatprep.subr.mxu0 0.0
    %2124 = vmatpush1.xpose.msra.mxu0 0.0
    %2125 = vmatprep.subr.mxu0 0.0
    %2126 = vmatpush1.xpose.msra.mxu0 0.0
    %2127 = vmatprep.subr.mxu0 0.0
    %2128 = vmatpush1.xpose.msra.mxu0 0.0
    %2129 = vmatprep.subr.mxu0 0.0
    %2130 = vmatpush1.xpose.msra.mxu0 0.0
    %2131 = vmatprep.subr.mxu0 0.0
    %2132 = vmatpush1.xpose.msra.mxu0 0.0
    %2133 = vmatprep.subr.mxu0 0.0
    %2134 = vmatpush1.xpose.msra.mxu0 0.0
    %2135 = vmatprep.subr.mxu0 0.0
    %2136 = vmatpush1.xpose.msra.mxu0 0.0
    %2137 = vmatprep.subr.mxu0 0.0
    %2138 = vmatpush1.xpose.msra.mxu0 0.0
    %2139 = vmatprep.subr.mxu0 0.0
    %2140 = vmatpush1.xpose.msra.mxu0 0.0
    %2141 = vmatprep.subr.mxu0 0.0
    %2142 = vmatpush1.xpose.msra.mxu0 0.0
    %2143 = vmatprep.subr.mxu0 0.0
    %2144 = vmatpush1.xpose.msra.mxu0 0.0
    %2145 = vmatprep.subr.mxu0 0.0
    %2146 = vmatpush1.xpose.msra.mxu0 0.0
    %2147 = vmatprep.subr.mxu0 0.0
    %2148 = vmatpush1.xpose.msra.mxu0 0.0
    %2149 = vmatprep.subr.mxu0 0.0
    %2150 = vmatpush1.xpose.msra.mxu0 0.0
    %2151 = vmatprep.mubr.f32.mxu0 0.0
    %2152 = vmatmul.mubr.f32.gmra.mrb[0].mxu0 %v2083
    %v2153 = vpop.f32.mrb[0].mxu0
    %v2154 = vadd.f32 0.0, %v2153
    %v2155 = vpop.f32.mrb[0].mxu0
    %2156 = vdwg.mxu0
    %2157 = vrot.lane.b32.xlu0 %v1928, 96
    %v2158 = vpop.permute.xlu0 %2157
    %v2159 = vsel %vm426, %v1928, 0
    %v2161 = vsel %vm426, %v2158, 0
    %2163 = vmatprep.subr.mxu0 0.0
    %2164 = vmatpush1.xpose.msra.mxu0 %v2161
    %2165 = vmatprep.subr.mxu0 0.0
    %2166 = vmatpush1.xpose.msra.mxu0 0.0
    %2167 = vmatprep.subr.mxu0 0.0
    %2168 = vmatpush1.xpose.msra.mxu0 0.0
    %2169 = vmatprep.subr.mxu0 0.0
    %2170 = vmatpush1.xpose.msra.mxu0 0.0
    %2171 = vmatprep.subr.mxu0 0.0
    %2172 = vmatpush1.xpose.msra.mxu0 0.0
    %2173 = vmatprep.subr.mxu0 0.0
    %2174 = vmatpush1.xpose.msra.mxu0 0.0
    %2175 = vmatprep.subr.mxu0 0.0
    %2176 = vmatpush1.xpose.msra.mxu0 0.0
    %2177 = vmatprep.subr.mxu0 0.0
    %2178 = vmatpush1.xpose.msra.mxu0 0.0
    %2179 = vmatprep.subr.mxu0 0.0
    %2180 = vmatpush1.xpose.msra.mxu0 0.0
    %2181 = vmatprep.subr.mxu0 0.0
    %2182 = vmatpush1.xpose.msra.mxu0 0.0
    %2183 = vmatprep.subr.mxu0 0.0
    %2184 = vmatpush1.xpose.msra.mxu0 0.0
    %2185 = vmatprep.subr.mxu0 0.0
    %2186 = vmatpush1.xpose.msra.mxu0 0.0
    %2187 = vmatprep.subr.mxu0 0.0
    %2188 = vmatpush1.xpose.msra.mxu0 0.0
    %2189 = vmatprep.subr.mxu0 0.0
    %2190 = vmatpush1.xpose.msra.mxu0 0.0
    %2191 = vmatprep.subr.mxu0 0.0
    %2192 = vmatpush1.xpose.msra.mxu0 0.0
    %2193 = vmatprep.subr.mxu0 0.0
    %2194 = vmatpush1.xpose.msra.mxu0 0.0
    %2195 = vmatprep.subr.mxu0 0.0
    %2196 = vmatpush1.xpose.msra.mxu0 0.0
    %2197 = vmatprep.subr.mxu0 0.0
    %2198 = vmatpush1.xpose.msra.mxu0 0.0
    %2199 = vmatprep.subr.mxu0 0.0
    %2200 = vmatpush1.xpose.msra.mxu0 0.0
    %2201 = vmatprep.subr.mxu0 0.0
    %2202 = vmatpush1.xpose.msra.mxu0 0.0
    %2203 = vmatprep.subr.mxu0 0.0
    %2204 = vmatpush1.xpose.msra.mxu0 0.0
    %2205 = vmatprep.subr.mxu0 0.0
    %2206 = vmatpush1.xpose.msra.mxu0 0.0
    %2207 = vmatprep.subr.mxu0 0.0
    %2208 = vmatpush1.xpose.msra.mxu0 0.0
    %2209 = vmatprep.subr.mxu0 0.0
    %2210 = vmatpush1.xpose.msra.mxu0 0.0
    %2211 = vmatprep.subr.mxu0 0.0
    %2212 = vmatpush1.xpose.msra.mxu0 0.0
    %2213 = vmatprep.subr.mxu0 0.0
    %2214 = vmatpush1.xpose.msra.mxu0 0.0
    %2215 = vmatprep.subr.mxu0 0.0
    %2216 = vmatpush1.xpose.msra.mxu0 0.0
    %2217 = vmatprep.subr.mxu0 0.0
    %2218 = vmatpush1.xpose.msra.mxu0 0.0
    %2219 = vmatprep.subr.mxu0 0.0
    %2220 = vmatpush1.xpose.msra.mxu0 0.0
    %2221 = vmatprep.subr.mxu0 0.0
    %2222 = vmatpush1.xpose.msra.mxu0 0.0
    %2223 = vmatprep.subr.mxu0 0.0
    %2224 = vmatpush1.xpose.msra.mxu0 0.0
    %2225 = vmatprep.subr.mxu0 0.0
    %2226 = vmatpush1.xpose.msra.mxu0 0.0
    %2227 = vmatprep.mubr.f32.mxu0 0.0
    %2228 = vmatmul.mubr.f32.gmra.mrb[0].mxu0 %v2159
    %v2229 = vpop.f32.mrb[0].mxu0
    %v2230 = vadd.f32 0.0, %v2229
    %v2231 = vpop.f32.mrb[0].mxu0
    %2232 = vdwg.mxu0
    %v2233 = vmul.f32 %v2002, 0.25
    %v2234 = vmul.f32 %v2078, 0.25
    %v2235 = vmul.f32 %v2154, 0.25
    %v2236 = vmul.f32 %v2230, 0.25
    %v2237 = vadd.f32 %v2233, %v736
    %v2238 = vadd.f32 %v2234, %v740
    %v2239 = vadd.f32 %v2235, %v744
    %v2240 = vadd.f32 %v2236, %v748
    %v2241 = vsel %vm757, %v2237, -inf
    %2242 = vmax.xlane.f32.xlu0 %v2241
    %v2243 = vpop.xlane.xlu0 %2242
    %v2244 = vsel %vm757, %v2238, -inf
    %2245 = vmax.xlane.f32.xlu0 %v2244
    %v2246 = vpop.xlane.xlu0 %2245
    %v2247 = vsel %vm757, %v2239, -inf
    %2248 = vmax.xlane.f32.xlu0 %v2247
    %v2249 = vpop.xlane.xlu0 %2248
    %v2250 = vsel %vm757, %v2240, -inf
    %2251 = vmax.xlane.f32.xlu0 %v2250
    %v2252 = vpop.xlane.xlu0 %2251
    %v2253 = vsub.f32 %v2237, %v2243
    %v2254 = vsub.f32 %v2238, %v2246
    %v2255 = vsub.f32 %v2239, %v2249
    %v2256 = vsub.f32 %v2240, %v2252
    %v2257 = vmul.f32 %v2253, 1.442695
    %v2258 = vpow.pop %v2257
    %v2259 = vmul.f32 %v2254, 1.442695
    %v2260 = vpow.pop %v2259
    %v2261 = vmul.f32 %v2255, 1.442695
    %v2262 = vpow.pop %v2261
    %v2263 = vmul.f32 %v2256, 1.442695
    %v2264 = vpow.pop %v2263
    %v2265 = vsel %vm757, %v2258, 0.0
    %2266 = vadd.xlane.f32.xlu0 %v2265
    %v2267 = vpop.xlane.xlu0 %2266
    %v2268 = vsel %vm757, %v2260, 0.0
    %2269 = vadd.xlane.f32.xlu0 %v2268
    %v2270 = vpop.xlane.xlu0 %2269
    %v2271 = vsel %vm757, %v2262, 0.0
    %2272 = vadd.xlane.f32.xlu0 %v2271
    %v2273 = vpop.xlane.xlu0 %2272
    %v2274 = vsel %vm757, %v2264, 0.0
    %2275 = vadd.xlane.f32.xlu0 %v2274
    %v2276 = vpop.xlane.xlu0 %2275
    %v2277 = vrcp.pop %v2267
    %v2278 = vmul.f32 %v2258, %v2277
    %v2279 = vrcp.pop %v2270
    %v2280 = vmul.f32 %v2260, %v2279
    %v2281 = vrcp.pop %v2273
    %v2282 = vmul.f32 %v2262, %v2281
    %v2283 = vrcp.pop %v2276
    %v2284 = vmul.f32 %v2264, %v2283
    %2285 = vrot.lane.b32.xlu0 %v1915, 64
    %v2286 = vpop.permute.xlu0 %2285
    %v2289 = vsel %vm757, %v2278, 0
    %2291 = vmatprep.subr.mxu0 0.0
    %2292 = vmatpush1.msra.mxu0 %v2286
    %2293 = vmatprep.subr.mxu0 0.0
    %2294 = vmatpush1.msra.mxu0 0.0
    %2295 = vmatprep.subr.mxu0 0.0
    %2296 = vmatpush1.msra.mxu0 0.0
    %2297 = vmatprep.subr.mxu0 0.0
    %2298 = vmatpush1.msra.mxu0 0.0
    %2299 = vmatprep.subr.mxu0 0.0
    %2300 = vmatpush1.msra.mxu0 0.0
    %2301 = vmatprep.subr.mxu0 0.0
    %2302 = vmatpush1.msra.mxu0 0.0
    %2303 = vmatprep.subr.mxu0 0.0
    %2304 = vmatpush1.msra.mxu0 0.0
    %2305 = vmatprep.subr.mxu0 0.0
    %2306 = vmatpush1.msra.mxu0 0.0
    %2307 = vmatprep.subr.mxu0 0.0
    %2308 = vmatpush1.msra.mxu0 0.0
    %2309 = vmatprep.subr.mxu0 0.0
    %2310 = vmatpush1.msra.mxu0 0.0
    %2311 = vmatprep.subr.mxu0 0.0
    %2312 = vmatpush1.msra.mxu0 0.0
    %2313 = vmatprep.subr.mxu0 0.0
    %2314 = vmatpush1.msra.mxu0 0.0
    %2315 = vmatprep.subr.mxu0 0.0
    %2316 = vmatpush1.msra.mxu0 0.0
    %2317 = vmatprep.subr.mxu0 0.0
    %2318 = vmatpush1.msra.mxu0 0.0
    %2319 = vmatprep.subr.mxu0 0.0
    %2320 = vmatpush1.msra.mxu0 0.0
    %2321 = vmatprep.subr.mxu0 0.0
    %2322 = vmatpush1.msra.mxu0 0.0
    %2323 = vmatprep.subr.mxu0 0.0
    %2324 = vmatpush1.msra.mxu0 0.0
    %2325 = vmatprep.subr.mxu0 0.0
    %2326 = vmatpush1.msra.mxu0 0.0
    %2327 = vmatprep.subr.mxu0 0.0
    %2328 = vmatpush1.msra.mxu0 0.0
    %2329 = vmatprep.subr.mxu0 0.0
    %2330 = vmatpush1.msra.mxu0 0.0
    %2331 = vmatprep.subr.mxu0 0.0
    %2332 = vmatpush1.msra.mxu0 0.0
    %2333 = vmatprep.subr.mxu0 0.0
    %2334 = vmatpush1.msra.mxu0 0.0
    %2335 = vmatprep.subr.mxu0 0.0
    %2336 = vmatpush1.msra.mxu0 0.0
    %2337 = vmatprep.subr.mxu0 0.0
    %2338 = vmatpush1.msra.mxu0 0.0
    %2339 = vmatprep.subr.mxu0 0.0
    %2340 = vmatpush1.msra.mxu0 0.0
    %2341 = vmatprep.subr.mxu0 0.0
    %2342 = vmatpush1.msra.mxu0 0.0
    %2343 = vmatprep.subr.mxu0 0.0
    %2344 = vmatpush1.msra.mxu0 0.0
    %2345 = vmatprep.subr.mxu0 0.0
    %2346 = vmatpush1.msra.mxu0 0.0
    %2347 = vmatprep.subr.mxu0 0.0
    %2348 = vmatpush1.msra.mxu0 0.0
    %2349 = vmatprep.subr.mxu0 0.0
    %2350 = vmatpush1.msra.mxu0 0.0
    %2351 = vmatprep.subr.mxu0 0.0
    %2352 = vmatpush1.msra.mxu0 0.0
    %2353 = vmatprep.subr.mxu0 0.0
    %2354 = vmatpush1.msra.mxu0 0.0
    %2355 = vmatprep.mubr.f32.mxu0 0.0
    %2356 = vmatmul.mubr.f32.gmra.mrb[0].mxu0 %v2289
    %v2357 = vpop.f32.mrb[0].mxu0
    %v2358 = vadd.f32 0.0, %v2357
    %v2359 = vpop.f32.mrb[0].mxu0
    %2360 = vdwg.mxu0
    %2361 = vrot.lane.b32.xlu0 %v1920, 64
    %v2362 = vpop.permute.xlu0 %2361
    %v2365 = vsel %vm757, %v2280, 0
    %2367 = vmatprep.subr.mxu0 0.0
    %2368 = vmatpush1.msra.mxu0 %v2362
    %2369 = vmatprep.subr.mxu0 0.0
    %2370 = vmatpush1.msra.mxu0 0.0
    %2371 = vmatprep.subr.mxu0 0.0
    %2372 = vmatpush1.msra.mxu0 0.0
    %2373 = vmatprep.subr.mxu0 0.0
    %2374 = vmatpush1.msra.mxu0 0.0
    %2375 = vmatprep.subr.mxu0 0.0
    %2376 = vmatpush1.msra.mxu0 0.0
    %2377 = vmatprep.subr.mxu0 0.0
    %2378 = vmatpush1.msra.mxu0 0.0
    %2379 = vmatprep.subr.mxu0 0.0
    %2380 = vmatpush1.msra.mxu0 0.0
    %2381 = vmatprep.subr.mxu0 0.0
    %2382 = vmatpush1.msra.mxu0 0.0
    %2383 = vmatprep.subr.mxu0 0.0
    %2384 = vmatpush1.msra.mxu0 0.0
    %2385 = vmatprep.subr.mxu0 0.0
    %2386 = vmatpush1.msra.mxu0 0.0
    %2387 = vmatprep.subr.mxu0 0.0
    %2388 = vmatpush1.msra.mxu0 0.0
    %2389 = vmatprep.subr.mxu0 0.0
    %2390 = vmatpush1.msra.mxu0 0.0
    %2391 = vmatprep.subr.mxu0 0.0
    %2392 = vmatpush1.msra.mxu0 0.0
    %2393 = vmatprep.subr.mxu0 0.0
    %2394 = vmatpush1.msra.mxu0 0.0
    %2395 = vmatprep.subr.mxu0 0.0
    %2396 = vmatpush1.msra.mxu0 0.0
    %2397 = vmatprep.subr.mxu0 0.0
    %2398 = vmatpush1.msra.mxu0 0.0
    %2399 = vmatprep.subr.mxu0 0.0
    %2400 = vmatpush1.msra.mxu0 0.0
    %2401 = vmatprep.subr.mxu0 0.0
    %2402 = vmatpush1.msra.mxu0 0.0
    %2403 = vmatprep.subr.mxu0 0.0
    %2404 = vmatpush1.msra.mxu0 0.0
    %2405 = vmatprep.subr.mxu0 0.0
    %2406 = vmatpush1.msra.mxu0 0.0
    %2407 = vmatprep.subr.mxu0 0.0
    %2408 = vmatpush1.msra.mxu0 0.0
    %2409 = vmatprep.subr.mxu0 0.0
    %2410 = vmatpush1.msra.mxu0 0.0
    %2411 = vmatprep.subr.mxu0 0.0
    %2412 = vmatpush1.msra.mxu0 0.0
    %2413 = vmatprep.subr.mxu0 0.0
    %2414 = vmatpush1.msra.mxu0 0.0
    %2415 = vmatprep.subr.mxu0 0.0
    %2416 = vmatpush1.msra.mxu0 0.0
    %2417 = vmatprep.subr.mxu0 0.0
    %2418 = vmatpush1.msra.mxu0 0.0
    %2419 = vmatprep.subr.mxu0 0.0
    %2420 = vmatpush1.msra.mxu0 0.0
    %2421 = vmatprep.subr.mxu0 0.0
    %2422 = vmatpush1.msra.mxu0 0.0
    %2423 = vmatprep.subr.mxu0 0.0
    %2424 = vmatpush1.msra.mxu0 0.0
    %2425 = vmatprep.subr.mxu0 0.0
    %2426 = vmatpush1.msra.mxu0 0.0
    %2427 = vmatprep.subr.mxu0 0.0
    %2428 = vmatpush1.msra.mxu0 0.0
    %2429 = vmatprep.subr.mxu0 0.0
    %2430 = vmatpush1.msra.mxu0 0.0
    %2431 = vmatprep.mubr.f32.mxu0 0.0
    %2432 = vmatmul.mubr.f32.gmra.mrb[0].mxu0 %v2365
    %v2433 = vpop.f32.mrb[0].mxu0
    %v2434 = vadd.f32 0.0, %v2433
    %v2435 = vpop.f32.mrb[0].mxu0
    %2436 = vdwg.mxu0
    %2437 = vrot.lane.b32.xlu0 %v1926, 64
    %v2438 = vpop.permute.xlu0 %2437
    %v2441 = vsel %vm757, %v2282, 0
    %2443 = vmatprep.subr.mxu0 0.0
    %2444 = vmatpush1.msra.mxu0 %v2438
    %2445 = vmatprep.subr.mxu0 0.0
    %2446 = vmatpush1.msra.mxu0 0.0
    %2447 = vmatprep.subr.mxu0 0.0
    %2448 = vmatpush1.msra.mxu0 0.0
    %2449 = vmatprep.subr.mxu0 0.0
    %2450 = vmatpush1.msra.mxu0 0.0
    %2451 = vmatprep.subr.mxu0 0.0
    %2452 = vmatpush1.msra.mxu0 0.0
    %2453 = vmatprep.subr.mxu0 0.0
    %2454 = vmatpush1.msra.mxu0 0.0
    %2455 = vmatprep.subr.mxu0 0.0
    %2456 = vmatpush1.msra.mxu0 0.0
    %2457 = vmatprep.subr.mxu0 0.0
    %2458 = vmatpush1.msra.mxu0 0.0
    %2459 = vmatprep.subr.mxu0 0.0
    %2460 = vmatpush1.msra.mxu0 0.0
    %2461 = vmatprep.subr.mxu0 0.0
    %2462 = vmatpush1.msra.mxu0 0.0
    %2463 = vmatprep.subr.mxu0 0.0
    %2464 = vmatpush1.msra.mxu0 0.0
    %2465 = vmatprep.subr.mxu0 0.0
    %2466 = vmatpush1.msra.mxu0 0.0
    %2467 = vmatprep.subr.mxu0 0.0
    %2468 = vmatpush1.msra.mxu0 0.0
    %2469 = vmatprep.subr.mxu0 0.0
    %2470 = vmatpush1.msra.mxu0 0.0
    %2471 = vmatprep.subr.mxu0 0.0
    %2472 = vmatpush1.msra.mxu0 0.0
    %2473 = vmatprep.subr.mxu0 0.0
    %2474 = vmatpush1.msra.mxu0 0.0
    %2475 = vmatprep.subr.mxu0 0.0
    %2476 = vmatpush1.msra.mxu0 0.0
    %2477 = vmatprep.subr.mxu0 0.0
    %2478 = vmatpush1.msra.mxu0 0.0
    %2479 = vmatprep.subr.mxu0 0.0
    %2480 = vmatpush1.msra.mxu0 0.0
    %2481 = vmatprep.subr.mxu0 0.0
    %2482 = vmatpush1.msra.mxu0 0.0
    %2483 = vmatprep.subr.mxu0 0.0
    %2484 = vmatpush1.msra.mxu0 0.0
    %2485 = vmatprep.subr.mxu0 0.0
    %2486 = vmatpush1.msra.mxu0 0.0
    %2487 = vmatprep.subr.mxu0 0.0
    %2488 = vmatpush1.msra.mxu0 0.0
    %2489 = vmatprep.subr.mxu0 0.0
    %2490 = vmatpush1.msra.mxu0 0.0
    %2491 = vmatprep.subr.mxu0 0.0
    %2492 = vmatpush1.msra.mxu0 0.0
    %2493 = vmatprep.subr.mxu0 0.0
    %2494 = vmatpush1.msra.mxu0 0.0
    %2495 = vmatprep.subr.mxu0 0.0
    %2496 = vmatpush1.msra.mxu0 0.0
    %2497 = vmatprep.subr.mxu0 0.0
    %2498 = vmatpush1.msra.mxu0 0.0
    %2499 = vmatprep.subr.mxu0 0.0
    %2500 = vmatpush1.msra.mxu0 0.0
    %2501 = vmatprep.subr.mxu0 0.0
    %2502 = vmatpush1.msra.mxu0 0.0
    %2503 = vmatprep.subr.mxu0 0.0
    %2504 = vmatpush1.msra.mxu0 0.0
    %2505 = vmatprep.subr.mxu0 0.0
    %2506 = vmatpush1.msra.mxu0 0.0
    %2507 = vmatprep.mubr.f32.mxu0 0.0
    %2508 = vmatmul.mubr.f32.gmra.mrb[0].mxu0 %v2441
    %v2509 = vpop.f32.mrb[0].mxu0
    %v2510 = vadd.f32 0.0, %v2509
    %v2511 = vpop.f32.mrb[0].mxu0
    %2512 = vdwg.mxu0
    %2513 = vrot.lane.b32.xlu0 %v1928, 64
    %v2514 = vpop.permute.xlu0 %2513
    %v2517 = vsel %vm757, %v2284, 0
    %2519 = vmatprep.subr.mxu0 0.0
    %2520 = vmatpush1.msra.mxu0 %v2514
    %2521 = vmatprep.subr.mxu0 0.0
    %2522 = vmatpush1.msra.mxu0 0.0
    %2523 = vmatprep.subr.mxu0 0.0
    %2524 = vmatpush1.msra.mxu0 0.0
    %2525 = vmatprep.subr.mxu0 0.0
    %2526 = vmatpush1.msra.mxu0 0.0
    %2527 = vmatprep.subr.mxu0 0.0
    %2528 = vmatpush1.msra.mxu0 0.0
    %2529 = vmatprep.subr.mxu0 0.0
    %2530 = vmatpush1.msra.mxu0 0.0
    %2531 = vmatprep.subr.mxu0 0.0
    %2532 = vmatpush1.msra.mxu0 0.0
    %2533 = vmatprep.subr.mxu0 0.0
    %2534 = vmatpush1.msra.mxu0 0.0
    %2535 = vmatprep.subr.mxu0 0.0
    %2536 = vmatpush1.msra.mxu0 0.0
    %2537 = vmatprep.subr.mxu0 0.0
    %2538 = vmatpush1.msra.mxu0 0.0
    %2539 = vmatprep.subr.mxu0 0.0
    %2540 = vmatpush1.msra.mxu0 0.0
    %2541 = vmatprep.subr.mxu0 0.0
    %2542 = vmatpush1.msra.mxu0 0.0
    %2543 = vmatprep.subr.mxu0 0.0
    %2544 = vmatpush1.msra.mxu0 0.0
    %2545 = vmatprep.subr.mxu0 0.0
    %2546 = vmatpush1.msra.mxu0 0.0
    %2547 = vmatprep.subr.mxu0 0.0
    %2548 = vmatpush1.msra.mxu0 0.0
    %2549 = vmatprep.subr.mxu0 0.0
    %2550 = vmatpush1.msra.mxu0 0.0
    %2551 = vmatprep.subr.mxu0 0.0
    %2552 = vmatpush1.msra.mxu0 0.0
    %2553 = vmatprep.subr.mxu0 0.0
    %2554 = vmatpush1.msra.mxu0 0.0
    %2555 = vmatprep.subr.mxu0 0.0
    %2556 = vmatpush1.msra.mxu0 0.0
    %2557 = vmatprep.subr.mxu0 0.0
    %2558 = vmatpush1.msra.mxu0 0.0
    %2559 = vmatprep.subr.mxu0 0.0
    %2560 = vmatpush1.msra.mxu0 0.0
    %2561 = vmatprep.subr.mxu0 0.0
    %2562 = vmatpush1.msra.mxu0 0.0
    %2563 = vmatprep.subr.mxu0 0.0
    %2564 = vmatpush1.msra.mxu0 0.0
    %2565 = vmatprep.subr.mxu0 0.0
    %2566 = vmatpush1.msra.mxu0 0.0
    %2567 = vmatprep.subr.mxu0 0.0
    %2568 = vmatpush1.msra.mxu0 0.0
    %2569 = vmatprep.subr.mxu0 0.0
    %2570 = vmatpush1.msra.mxu0 0.0
    %2571 = vmatprep.subr.mxu0 0.0
    %2572 = vmatpush1.msra.mxu0 0.0
    %2573 = vmatprep.subr.mxu0 0.0
    %2574 = vmatpush1.msra.mxu0 0.0
    %2575 = vmatprep.subr.mxu0 0.0
    %2576 = vmatpush1.msra.mxu0 0.0
    %2577 = vmatprep.subr.mxu0 0.0
    %2578 = vmatpush1.msra.mxu0 0.0
    %2579 = vmatprep.subr.mxu0 0.0
    %2580 = vmatpush1.msra.mxu0 0.0
    %2581 = vmatprep.subr.mxu0 0.0
    %2582 = vmatpush1.msra.mxu0 0.0
    %2583 = vmatprep.mubr.f32.mxu0 0.0
    %2584 = vmatmul.mubr.f32.gmra.mrb[0].mxu0 %v2517
    %v2585 = vpop.f32.mrb[0].mxu0
    %v2586 = vadd.f32 0.0, %v2585
    %v2587 = vpop.f32.mrb[0].mxu0
    %2588 = vdwg.mxu0
    %2591 = vrot.lane.b32.xlu0 %v2510, 16
    %v2592 = vpop.permute.xlu0 %2591
    %2593 = vrot.lane.b32.xlu0 %v2586, 16
    %v2594 = vpop.permute.xlu0 %2593
    %v2597 = vsel %vm426, %v2358, %v2592
    %v2598 = vsel %vm426, %v2434, %v2594
    %v2599 = vlaneseq
    %v2600 = vshrl.u32 %v2599, 7
    %v2601 = vsub.s32 0, %v2600
    %v2602 = vrot.slane %v1831, %v2601
    %v2604 = vsel %vm63, %v2597, 0
    %v2607 = vsel %vm63, %v2598, 0
    %2609 = vmatprep.subr.mxu0 0.0
    %2610 = vmatpush1.msra.mxu0 %v1814
    %2611 = vmatprep.subr.mxu0 0.0
    %2612 = vmatpush1.msra.mxu0 %v1815
    %2613 = vmatprep.subr.mxu0 0.0
    %2614 = vmatpush1.msra.mxu0 %v1816
    %2615 = vmatprep.subr.mxu0 0.0
    %2616 = vmatpush1.msra.mxu0 %v1817
    %2617 = vmatprep.subr.mxu0 0.0
    %2618 = vmatpush1.msra.mxu0 0.0
    %2619 = vmatprep.subr.mxu0 0.0
    %2620 = vmatpush1.msra.mxu0 0.0
    %2621 = vmatprep.subr.mxu0 0.0
    %2622 = vmatpush1.msra.mxu0 0.0
    %2623 = vmatprep.subr.mxu0 0.0
    %2624 = vmatpush1.msra.mxu0 0.0
    %2625 = vmatprep.subr.mxu0 0.0
    %2626 = vmatpush1.msra.mxu0 0.0
    %2627 = vmatprep.subr.mxu0 0.0
    %2628 = vmatpush1.msra.mxu0 0.0
    %2629 = vmatprep.subr.mxu0 0.0
    %2630 = vmatpush1.msra.mxu0 0.0
    %2631 = vmatprep.subr.mxu0 0.0
    %2632 = vmatpush1.msra.mxu0 0.0
    %2633 = vmatprep.subr.mxu0 0.0
    %2634 = vmatpush1.msra.mxu0 0.0
    %2635 = vmatprep.subr.mxu0 0.0
    %2636 = vmatpush1.msra.mxu0 0.0
    %2637 = vmatprep.subr.mxu0 0.0
    %2638 = vmatpush1.msra.mxu0 0.0
    %2639 = vmatprep.subr.mxu0 0.0
    %2640 = vmatpush1.msra.mxu0 0.0
    %2641 = vmatprep.subr.mxu0 0.0
    %2642 = vmatpush1.msra.mxu0 0.0
    %2643 = vmatprep.subr.mxu0 0.0
    %2644 = vmatpush1.msra.mxu0 0.0
    %2645 = vmatprep.subr.mxu0 0.0
    %2646 = vmatpush1.msra.mxu0 0.0
    %2647 = vmatprep.subr.mxu0 0.0
    %2648 = vmatpush1.msra.mxu0 0.0
    %2649 = vmatprep.subr.mxu0 0.0
    %2650 = vmatpush1.msra.mxu0 0.0
    %2651 = vmatprep.subr.mxu0 0.0
    %2652 = vmatpush1.msra.mxu0 0.0
    %2653 = vmatprep.subr.mxu0 0.0
    %2654 = vmatpush1.msra.mxu0 0.0
    %2655 = vmatprep.subr.mxu0 0.0
    %2656 = vmatpush1.msra.mxu0 0.0
    %2657 = vmatprep.subr.mxu0 0.0
    %2658 = vmatpush1.msra.mxu0 0.0
    %2659 = vmatprep.subr.mxu0 0.0
    %2660 = vmatpush1.msra.mxu0 0.0
    %2661 = vmatprep.subr.mxu0 0.0
    %2662 = vmatpush1.msra.mxu0 0.0
    %2663 = vmatprep.subr.mxu0 0.0
    %2664 = vmatpush1.msra.mxu0 0.0
    %2665 = vmatprep.subr.mxu0 0.0
    %2666 = vmatpush1.msra.mxu0 0.0
    %2667 = vmatprep.subr.mxu0 0.0
    %2668 = vmatpush1.msra.mxu0 0.0
    %2669 = vmatprep.subr.mxu0 0.0
    %2670 = vmatpush1.msra.mxu0 0.0
    %2671 = vmatprep.subr.mxu0 0.0
    %2672 = vmatpush1.msra.mxu0 0.0
    %2673 = vmatprep.mubr.f32.mxu0 0.0
    %2674 = vmatmul.mubr.f32.gmra.mrb[0].mxu0 %v2604
    %v2675 = vpop.f32.mrb[0].mxu0
    %v2676 = vadd.f32 %v2602, %v2675
    %v2677 = vpop.f32.mrb[0].mxu0
    %2678 = vmatprep.mubr.f32.mxu0 0.0
    %2679 = vmatmul.mubr.f32.gmra.mrb[0].mxu0 %v2607
    %v2680 = vpop.f32.mrb[0].mxu0
    %v2681 = vadd.f32 %v2602, %v2680
    %v2682 = vpop.f32.mrb[0].mxu0
    %2683 = vdwg.mxu0
    %v2684 = vadd.f32 %v1808, %v2676
    %v2685 = vadd.f32 %v1809, %v2681
    %v2687 = vsel %vm63, %v2684, 0
    %v2690 = vsel %vm63, %v2685, 0
    %2692 = vmatprep.subr.mxu0 0.0
    %2693 = vmatpush1.msra.mxu0 1.0
    %2694 = vmatprep.subr.mxu0 0.0
    %2695 = vmatpush1.msra.mxu0 1.0
    %2696 = vmatprep.subr.mxu0 0.0
    %2697 = vmatpush1.msra.mxu0 1.0
    %2698 = vmatprep.subr.mxu0 0.0
    %2699 = vmatpush1.msra.mxu0 1.0
    %2700 = vmatprep.subr.mxu0 0.0
    %2701 = vmatpush1.msra.mxu0 0.0
    %2702 = vmatprep.subr.mxu0 0.0
    %2703 = vmatpush1.msra.mxu0 0.0
    %2704 = vmatprep.subr.mxu0 0.0
    %2705 = vmatpush1.msra.mxu0 0.0
    %2706 = vmatprep.subr.mxu0 0.0
    %2707 = vmatpush1.msra.mxu0 0.0
    %2708 = vmatprep.subr.mxu0 0.0
    %2709 = vmatpush1.msra.mxu0 0.0
    %2710 = vmatprep.subr.mxu0 0.0
    %2711 = vmatpush1.msra.mxu0 0.0
    %2712 = vmatprep.subr.mxu0 0.0
    %2713 = vmatpush1.msra.mxu0 0.0
    %2714 = vmatprep.subr.mxu0 0.0
    %2715 = vmatpush1.msra.mxu0 0.0
    %2716 = vmatprep.subr.mxu0 0.0
    %2717 = vmatpush1.msra.mxu0 0.0
    %2718 = vmatprep.subr.mxu0 0.0
    %2719 = vmatpush1.msra.mxu0 0.0
    %2720 = vmatprep.subr.mxu0 0.0
    %2721 = vmatpush1.msra.mxu0 0.0
    %2722 = vmatprep.subr.mxu0 0.0
    %2723 = vmatpush1.msra.mxu0 0.0
    %2724 = vmatprep.subr.mxu0 0.0
    %2725 = vmatpush1.msra.mxu0 0.0
    %2726 = vmatprep.subr.mxu0 0.0
    %2727 = vmatpush1.msra.mxu0 0.0
    %2728 = vmatprep.subr.mxu0 0.0
    %2729 = vmatpush1.msra.mxu0 0.0
    %2730 = vmatprep.subr.mxu0 0.0
    %2731 = vmatpush1.msra.mxu0 0.0
    %2732 = vmatprep.subr.mxu0 0.0
    %2733 = vmatpush1.msra.mxu0 0.0
    %2734 = vmatprep.subr.mxu0 0.0
    %2735 = vmatpush1.msra.mxu0 0.0
    %2736 = vmatprep.subr.mxu0 0.0
    %2737 = vmatpush1.msra.mxu0 0.0
    %2738 = vmatprep.subr.mxu0 0.0
    %2739 = vmatpush1.msra.mxu0 0.0
    %2740 = vmatprep.subr.mxu0 0.0
    %2741 = vmatpush1.msra.mxu0 0.0
    %2742 = vmatprep.subr.mxu0 0.0
    %2743 = vmatpush1.msra.mxu0 0.0
    %2744 = vmatprep.subr.mxu0 0.0
    %2745 = vmatpush1.msra.mxu0 0.0
    %2746 = vmatprep.subr.mxu0 0.0
    %2747 = vmatpush1.msra.mxu0 0.0
    %2748 = vmatprep.subr.mxu0 0.0
    %2749 = vmatpush1.msra.mxu0 0.0
    %2750 = vmatprep.subr.mxu0 0.0
    %2751 = vmatpush1.msra.mxu0 0.0
    %2752 = vmatprep.subr.mxu0 0.0
    %2753 = vmatpush1.msra.mxu0 0.0
    %2754 = vmatprep.subr.mxu0 0.0
    %2755 = vmatpush1.msra.mxu0 0.0
    %2756 = vmatprep.mubr.f32.mxu0 0.0
    %2757 = vmatmul.mubr.f32.gmra.mrb[0].mxu0 %v2687
    %v2758 = vpop.f32.mrb[0].mxu0
    %v2759 = vadd.f32 0.0, %v2758
    %v2760 = vpop.f32.mrb[0].mxu0
    %2761 = vmatprep.mubr.f32.mxu0 0.0
    %2762 = vmatmul.mubr.f32.gmra.mrb[0].mxu0 %v2690
    %v2763 = vpop.f32.mrb[0].mxu0
    %v2764 = vadd.f32 0.0, %v2763
    %v2765 = vpop.f32.mrb[0].mxu0
    %2766 = vdwg.mxu0
    %v2767 = vmul.f32 %v2759, 0.03125
    %v2768 = vmul.f32 %v2764, 0.03125
    %2770 = vset.pattern.permute.xlu0 0
    %2771 = vperm.xlu0 %2770, %v2767
    %v2772 = vpop.permute.xlu0 %2771
    %2775 = vset.pattern.permute.xlu0 0
    %2776 = vperm.xlu0 %2775, %v2768
    %v2777 = vpop.permute.xlu0 %2776
    %v2779 = vsub.f32 %v2684, %v2772
    %v2780 = vsub.f32 %v2685, %v2777
    %v2781 = vmul.f32 %v2779, %v2779
    %v2782 = vmul.f32 %v2780, %v2780
    %v2784 = vsel %vm63, %v2781, 0
    %v2787 = vsel %vm63, %v2782, 0
    %2789 = vmatprep.subr.mxu0 0.0
    %2790 = vmatpush1.msra.mxu0 1.0
    %2791 = vmatprep.subr.mxu0 0.0
    %2792 = vmatpush1.msra.mxu0 1.0
    %2793 = vmatprep.subr.mxu0 0.0
    %2794 = vmatpush1.msra.mxu0 1.0
    %2795 = vmatprep.subr.mxu0 0.0
    %2796 = vmatpush1.msra.mxu0 1.0
    %2797 = vmatprep.subr.mxu0 0.0
    %2798 = vmatpush1.msra.mxu0 0.0
    %2799 = vmatprep.subr.mxu0 0.0
    %2800 = vmatpush1.msra.mxu0 0.0
    %2801 = vmatprep.subr.mxu0 0.0
    %2802 = vmatpush1.msra.mxu0 0.0
    %2803 = vmatprep.subr.mxu0 0.0
    %2804 = vmatpush1.msra.mxu0 0.0
    %2805 = vmatprep.subr.mxu0 0.0
    %2806 = vmatpush1.msra.mxu0 0.0
    %2807 = vmatprep.subr.mxu0 0.0
    %2808 = vmatpush1.msra.mxu0 0.0
    %2809 = vmatprep.subr.mxu0 0.0
    %2810 = vmatpush1.msra.mxu0 0.0
    %2811 = vmatprep.subr.mxu0 0.0
    %2812 = vmatpush1.msra.mxu0 0.0
    %2813 = vmatprep.subr.mxu0 0.0
    %2814 = vmatpush1.msra.mxu0 0.0
    %2815 = vmatprep.subr.mxu0 0.0
    %2816 = vmatpush1.msra.mxu0 0.0
    %2817 = vmatprep.subr.mxu0 0.0
    %2818 = vmatpush1.msra.mxu0 0.0
    %2819 = vmatprep.subr.mxu0 0.0
    %2820 = vmatpush1.msra.mxu0 0.0
    %2821 = vmatprep.subr.mxu0 0.0
    %2822 = vmatpush1.msra.mxu0 0.0
    %2823 = vmatprep.subr.mxu0 0.0
    %2824 = vmatpush1.msra.mxu0 0.0
    %2825 = vmatprep.subr.mxu0 0.0
    %2826 = vmatpush1.msra.mxu0 0.0
    %2827 = vmatprep.subr.mxu0 0.0
    %2828 = vmatpush1.msra.mxu0 0.0
    %2829 = vmatprep.subr.mxu0 0.0
    %2830 = vmatpush1.msra.mxu0 0.0
    %2831 = vmatprep.subr.mxu0 0.0
    %2832 = vmatpush1.msra.mxu0 0.0
    %2833 = vmatprep.subr.mxu0 0.0
    %2834 = vmatpush1.msra.mxu0 0.0
    %2835 = vmatprep.subr.mxu0 0.0
    %2836 = vmatpush1.msra.mxu0 0.0
    %2837 = vmatprep.subr.mxu0 0.0
    %2838 = vmatpush1.msra.mxu0 0.0
    %2839 = vmatprep.subr.mxu0 0.0
    %2840 = vmatpush1.msra.mxu0 0.0
    %2841 = vmatprep.subr.mxu0 0.0
    %2842 = vmatpush1.msra.mxu0 0.0
    %2843 = vmatprep.subr.mxu0 0.0
    %2844 = vmatpush1.msra.mxu0 0.0
    %2845 = vmatprep.subr.mxu0 0.0
    %2846 = vmatpush1.msra.mxu0 0.0
    %2847 = vmatprep.subr.mxu0 0.0
    %2848 = vmatpush1.msra.mxu0 0.0
    %2849 = vmatprep.subr.mxu0 0.0
    %2850 = vmatpush1.msra.mxu0 0.0
    %2851 = vmatprep.subr.mxu0 0.0
    %2852 = vmatpush1.msra.mxu0 0.0
    %2853 = vmatprep.mubr.f32.mxu0 0.0
    %2854 = vmatmul.mubr.f32.gmra.mrb[0].mxu0 %v2784
    %v2855 = vpop.f32.mrb[0].mxu0
    %v2856 = vadd.f32 0.0, %v2855
    %v2857 = vpop.f32.mrb[0].mxu0
    %2858 = vmatprep.mubr.f32.mxu0 0.0
    %2859 = vmatmul.mubr.f32.gmra.mrb[0].mxu0 %v2787
    %v2860 = vpop.f32.mrb[0].mxu0
    %v2861 = vadd.f32 0.0, %v2860
    %v2862 = vpop.f32.mrb[0].mxu0
    %2863 = vdwg.mxu0
    %v2864 = vmul.f32 %v2856, 0.03125
    %v2865 = vmul.f32 %v2861, 0.03125
    %v2866 = vadd.f32 %v2864, 1e-12
    %v2867 = vadd.f32 %v2865, 1e-12
    %v2868 = vrsqrt.pop %v2866
    %v2869 = vrsqrt.pop %v2867
    %2871 = vset.pattern.permute.xlu0 0
    %2872 = vperm.xlu0 %2871, %v2868
    %v2873 = vpop.permute.xlu0 %2872
    %2876 = vset.pattern.permute.xlu0 0
    %2877 = vperm.xlu0 %2876, %v2869
    %v2878 = vpop.permute.xlu0 %2877
    %v2880 = vmul.f32 %v2779, %v2873
    %v2881 = vmul.f32 %v2780, %v2878
    %v2882 = vlaneseq
    %v2883 = vshrl.u32 %v2882, 7
    %v2884 = vsub.s32 0, %v2883
    %v2885 = vrot.slane %v1832, %v2884
    %v2886 = vmul.f32 %v2880, %v2885
    %v2887 = vmul.f32 %v2881, %v2885
    %v2888 = vlaneseq
    %v2889 = vshrl.u32 %v2888, 7
    %v2890 = vsub.s32 0, %v2889
    %v2891 = vrot.slane %v1833, %v2890
    %v2892 = vadd.f32 %v2886, %v2891
    %v2893 = vadd.f32 %v2887, %v2891
    %v2894 = vlaneseq
    %v2895 = vshrl.u32 %v2894, 7
    %v2896 = vsub.s32 0, %v2895
    %v2897 = vrot.slane %v1834, %v2896
    %v2899 = vsel %vm63, %v2892, 0
    %v2902 = vsel %vm63, %v2893, 0
    %2904 = vmatprep.subr.mxu0 0.0
    %2905 = vmatpush1.msra.mxu0 %v1818
    %2906 = vmatprep.subr.mxu0 0.0
    %2907 = vmatpush1.msra.mxu0 %v1819
    %2908 = vmatprep.subr.mxu0 0.0
    %2909 = vmatpush1.msra.mxu0 %v1820
    %2910 = vmatprep.subr.mxu0 0.0
    %2911 = vmatpush1.msra.mxu0 %v1821
    %2912 = vmatprep.subr.mxu0 0.0
    %2913 = vmatpush1.msra.mxu0 0.0
    %2914 = vmatprep.subr.mxu0 0.0
    %2915 = vmatpush1.msra.mxu0 0.0
    %2916 = vmatprep.subr.mxu0 0.0
    %2917 = vmatpush1.msra.mxu0 0.0
    %2918 = vmatprep.subr.mxu0 0.0
    %2919 = vmatpush1.msra.mxu0 0.0
    %2920 = vmatprep.subr.mxu0 0.0
    %2921 = vmatpush1.msra.mxu0 0.0
    %2922 = vmatprep.subr.mxu0 0.0
    %2923 = vmatpush1.msra.mxu0 0.0
    %2924 = vmatprep.subr.mxu0 0.0
    %2925 = vmatpush1.msra.mxu0 0.0
    %2926 = vmatprep.subr.mxu0 0.0
    %2927 = vmatpush1.msra.mxu0 0.0
    %2928 = vmatprep.subr.mxu0 0.0
    %2929 = vmatpush1.msra.mxu0 0.0
    %2930 = vmatprep.subr.mxu0 0.0
    %2931 = vmatpush1.msra.mxu0 0.0
    %2932 = vmatprep.subr.mxu0 0.0
    %2933 = vmatpush1.msra.mxu0 0.0
    %2934 = vmatprep.subr.mxu0 0.0
    %2935 = vmatpush1.msra.mxu0 0.0
    %2936 = vmatprep.subr.mxu0 0.0
    %2937 = vmatpush1.msra.mxu0 0.0
    %2938 = vmatprep.subr.mxu0 0.0
    %2939 = vmatpush1.msra.mxu0 0.0
    %2940 = vmatprep.subr.mxu0 0.0
    %2941 = vmatpush1.msra.mxu0 0.0
    %2942 = vmatprep.subr.mxu0 0.0
    %2943 = vmatpush1.msra.mxu0 0.0
    %2944 = vmatprep.subr.mxu0 0.0
    %2945 = vmatpush1.msra.mxu0 0.0
    %2946 = vmatprep.subr.mxu0 0.0
    %2947 = vmatpush1.msra.mxu0 0.0
    %2948 = vmatprep.subr.mxu0 0.0
    %2949 = vmatpush1.msra.mxu0 0.0
    %2950 = vmatprep.subr.mxu0 0.0
    %2951 = vmatpush1.msra.mxu0 0.0
    %2952 = vmatprep.subr.mxu0 0.0
    %2953 = vmatpush1.msra.mxu0 0.0
    %2954 = vmatprep.subr.mxu0 0.0
    %2955 = vmatpush1.msra.mxu0 0.0
    %2956 = vmatprep.subr.mxu0 0.0
    %2957 = vmatpush1.msra.mxu0 0.0
    %2958 = vmatprep.subr.mxu0 0.0
    %2959 = vmatpush1.msra.mxu0 0.0
    %2960 = vmatprep.subr.mxu0 0.0
    %2961 = vmatpush1.msra.mxu0 0.0
    %2962 = vmatprep.subr.mxu0 0.0
    %2963 = vmatpush1.msra.mxu0 0.0
    %2964 = vmatprep.subr.mxu0 0.0
    %2965 = vmatpush1.msra.mxu0 0.0
    %2966 = vmatprep.subr.mxu0 0.0
    %2967 = vmatpush1.msra.mxu0 0.0
    %2968 = vmatprep.mubr.f32.mxu0 0.0
    %2969 = vmatmul.mubr.f32.gmra.mrb[0].mxu0 %v2899
    %v2970 = vpop.f32.mrb[0].mxu0
    %v2971 = vadd.f32 %v2897, %v2970
    %v2972 = vpop.f32.mrb[0].mxu0
    %2973 = vmatprep.mubr.f32.mxu0 0.0
    %2974 = vmatmul.mubr.f32.gmra.mrb[0].mxu0 %v2902
    %v2975 = vpop.f32.mrb[0].mxu0
    %v2976 = vadd.f32 %v2897, %v2975
    %v2977 = vpop.f32.mrb[0].mxu0
    %2978 = vdwg.mxu0
    %v2979 = vmul.f32 %v2971, %v2971
    %v2980 = vmul.f32 %v2976, %v2976
    %v2981 = vmul.f32 %v2971, %v2979
    %v2982 = vmul.f32 %v2976, %v2980
    %v2983 = vmul.f32 %v2981, 0.044715
    %v2984 = vmul.f32 %v2982, 0.044715
    %v2985 = vadd.f32 %v2971, %v2983
    %v2986 = vadd.f32 %v2976, %v2984
    %v2987 = vmul.f32 %v2985, 0.7978846
    %v2988 = vmul.f32 %v2986, 0.7978846
    %v2989 = vtanh.pop %v2987
    %v2990 = vtanh.pop %v2988
    %v2991 = vadd.f32 %v2989, 1.0
    %v2992 = vadd.f32 %v2990, 1.0
    %v2993 = vmul.f32 %v2991, 0.5
    %v2994 = vmul.f32 %v2992, 0.5
    %v2995 = vmul.f32 %v2971, %v2993
    %v2996 = vmul.f32 %v2976, %v2994
    %v2997 = vlaneseq
    %v2998 = vshrl.u32 %v2997, 7
    %v2999 = vsub.s32 0, %v2998
    %v3000 = vrot.slane %v1835, %v2999
    %v3002 = vsel %vm1518, %v2995, 0
    %v3005 = vsel %vm1518, %v2996, 0
    %3007 = vmatprep.subr.mxu0 0.0
    %3008 = vmatpush1.msra.mxu0 %v1822
    %3009 = vmatprep.subr.mxu0 0.0
    %3010 = vmatpush1.msra.mxu0 %v1823
    %3011 = vmatprep.subr.mxu0 0.0
    %3012 = vmatpush1.msra.mxu0 %v1824
    %3013 = vmatprep.subr.mxu0 0.0
    %3014 = vmatpush1.msra.mxu0 %v1825
    %3015 = vmatprep.subr.mxu0 0.0
    %3016 = vmatpush1.msra.mxu0 %v1826
    %3017 = vmatprep.subr.mxu0 0.0
    %3018 = vmatpush1.msra.mxu0 %v1827
    %3019 = vmatprep.subr.mxu0 0.0
    %3020 = vmatpush1.msra.mxu0 %v1828
    %3021 = vmatprep.subr.mxu0 0.0
    %3022 = vmatpush1.msra.mxu0 %v1829
    %3023 = vmatprep.subr.mxu0 0.0
    %3024 = vmatpush1.msra.mxu0 0.0
    %3025 = vmatprep.subr.mxu0 0.0
    %3026 = vmatpush1.msra.mxu0 0.0
    %3027 = vmatprep.subr.mxu0 0.0
    %3028 = vmatpush1.msra.mxu0 0.0
    %3029 = vmatprep.subr.mxu0 0.0
    %3030 = vmatpush1.msra.mxu0 0.0
    %3031 = vmatprep.subr.mxu0 0.0
    %3032 = vmatpush1.msra.mxu0 0.0
    %3033 = vmatprep.subr.mxu0 0.0
    %3034 = vmatpush1.msra.mxu0 0.0
    %3035 = vmatprep.subr.mxu0 0.0
    %3036 = vmatpush1.msra.mxu0 0.0
    %3037 = vmatprep.subr.mxu0 0.0
    %3038 = vmatpush1.msra.mxu0 0.0
    %3039 = vmatprep.subr.mxu0 0.0
    %3040 = vmatpush1.msra.mxu0 0.0
    %3041 = vmatprep.subr.mxu0 0.0
    %3042 = vmatpush1.msra.mxu0 0.0
    %3043 = vmatprep.subr.mxu0 0.0
    %3044 = vmatpush1.msra.mxu0 0.0
    %3045 = vmatprep.subr.mxu0 0.0
    %3046 = vmatpush1.msra.mxu0 0.0
    %3047 = vmatprep.subr.mxu0 0.0
    %3048 = vmatpush1.msra.mxu0 0.0
    %3049 = vmatprep.subr.mxu0 0.0
    %3050 = vmatpush1.msra.mxu0 0.0
    %3051 = vmatprep.subr.mxu0 0.0
    %3052 = vmatpush1.msra.mxu0 0.0
    %3053 = vmatprep.subr.mxu0 0.0
    %3054 = vmatpush1.msra.mxu0 0.0
    %3055 = vmatprep.subr.mxu0 0.0
    %3056 = vmatpush1.msra.mxu0 0.0
    %3057 = vmatprep.subr.mxu0 0.0
    %3058 = vmatpush1.msra.mxu0 0.0
    %3059 = vmatprep.subr.mxu0 0.0
    %3060 = vmatpush1.msra.mxu0 0.0
    %3061 = vmatprep.subr.mxu0 0.0
    %3062 = vmatpush1.msra.mxu0 0.0
    %3063 = vmatprep.subr.mxu0 0.0
    %3064 = vmatpush1.msra.mxu0 0.0
    %3065 = vmatprep.subr.mxu0 0.0
    %3066 = vmatpush1.msra.mxu0 0.0
    %3067 = vmatprep.subr.mxu0 0.0
    %3068 = vmatpush1.msra.mxu0 0.0
    %3069 = vmatprep.subr.mxu0 0.0
    %3070 = vmatpush1.msra.mxu0 0.0
    %3071 = vmatprep.mubr.f32.mxu0 0.0
    %3072 = vmatmul.mubr.f32.gmra.mrb[0].mxu0 %v3002
    %v3073 = vpop.f32.mrb[0].mxu0
    %v3074 = vadd.f32 %v3000, %v3073
    %v3075 = vpop.f32.mrb[0].mxu0
    %3076 = vmatprep.mubr.f32.mxu0 0.0
    %3077 = vmatmul.mubr.f32.gmra.mrb[0].mxu0 %v3005
    %v3078 = vpop.f32.mrb[0].mxu0
    %v3079 = vadd.f32 %v3000, %v3078
    %v3080 = vpop.f32.mrb[0].mxu0
    %3081 = vdwg.mxu0
    %v3082 = vadd.f32 %v2892, %v3074
    %v3083 = vadd.f32 %v2893, %v3079
    %v3085 = vsel %vm63, %v3082, 0
    %v3088 = vsel %vm63, %v3083, 0
    %3090 = vmatprep.subr.mxu0 0.0
    %3091 = vmatpush1.msra.mxu0 1.0
    %3092 = vmatprep.subr.mxu0 0.0
    %3093 = vmatpush1.msra.mxu0 1.0
    %3094 = vmatprep.subr.mxu0 0.0
    %3095 = vmatpush1.msra.mxu0 1.0
    %3096 = vmatprep.subr.mxu0 0.0
    %3097 = vmatpush1.msra.mxu0 1.0
    %3098 = vmatprep.subr.mxu0 0.0
    %3099 = vmatpush1.msra.mxu0 0.0
    %3100 = vmatprep.subr.mxu0 0.0
    %3101 = vmatpush1.msra.mxu0 0.0
    %3102 = vmatprep.subr.mxu0 0.0
    %3103 = vmatpush1.msra.mxu0 0.0
    %3104 = vmatprep.subr.mxu0 0.0
    %3105 = vmatpush1.msra.mxu0 0.0
    %3106 = vmatprep.subr.mxu0 0.0
    %3107 = vmatpush1.msra.mxu0 0.0
    %3108 = vmatprep.subr.mxu0 0.0
    %3109 = vmatpush1.msra.mxu0 0.0
    %3110 = vmatprep.subr.mxu0 0.0
    %3111 = vmatpush1.msra.mxu0 0.0
    %3112 = vmatprep.subr.mxu0 0.0
    %3113 = vmatpush1.msra.mxu0 0.0
    %3114 = vmatprep.subr.mxu0 0.0
    %3115 = vmatpush1.msra.mxu0 0.0
    %3116 = vmatprep.subr.mxu0 0.0
    %3117 = vmatpush1.msra.mxu0 0.0
    %3118 = vmatprep.subr.mxu0 0.0
    %3119 = vmatpush1.msra.mxu0 0.0
    %3120 = vmatprep.subr.mxu0 0.0
    %3121 = vmatpush1.msra.mxu0 0.0
    %3122 = vmatprep.subr.mxu0 0.0
    %3123 = vmatpush1.msra.mxu0 0.0
    %3124 = vmatprep.subr.mxu0 0.0
    %3125 = vmatpush1.msra.mxu0 0.0
    %3126 = vmatprep.subr.mxu0 0.0
    %3127 = vmatpush1.msra.mxu0 0.0
    %3128 = vmatprep.subr.mxu0 0.0
    %3129 = vmatpush1.msra.mxu0 0.0
    %3130 = vmatprep.subr.mxu0 0.0
    %3131 = vmatpush1.msra.mxu0 0.0
    %3132 = vmatprep.subr.mxu0 0.0
    %3133 = vmatpush1.msra.mxu0 0.0
    %3134 = vmatprep.subr.mxu0 0.0
    %3135 = vmatpush1.msra.mxu0 0.0
    %3136 = vmatprep.subr.mxu0 0.0
    %3137 = vmatpush1.msra.mxu0 0.0
    %3138 = vmatprep.subr.mxu0 0.0
    %3139 = vmatpush1.msra.mxu0 0.0
    %3140 = vmatprep.subr.mxu0 0.0
    %3141 = vmatpush1.msra.mxu0 0.0
    %3142 = vmatprep.subr.mxu0 0.0
    %3143 = vmatpush1.msra.mxu0 0.0
    %3144 = vmatprep.subr.mxu0 0.0
    %3145 = vmatpush1.msra.mxu0 0.0
    %3146 = vmatprep.subr.mxu0 0.0
    %3147 = vmatpush1.msra.mxu0 0.0
    %3148 = vmatprep.subr.mxu0 0.0
    %3149 = vmatpush1.msra.mxu0 0.0
    %3150 = vmatprep.subr.mxu0 0.0
    %3151 = vmatpush1.msra.mxu0 0.0
    %3152 = vmatprep.subr.mxu0 0.0
    %3153 = vmatpush1.msra.mxu0 0.0
    %3154 = vmatprep.mubr.f32.mxu0 0.0
    %3155 = vmatmul.mubr.f32.gmra.mrb[0].mxu0 %v3085
    %v3156 = vpop.f32.mrb[0].mxu0
    %v3157 = vadd.f32 0.0, %v3156
    %v3158 = vpop.f32.mrb[0].mxu0
    %3159 = vmatprep.mubr.f32.mxu0 0.0
    %3160 = vmatmul.mubr.f32.gmra.mrb[0].mxu0 %v3088
    %v3161 = vpop.f32.mrb[0].mxu0
    %v3162 = vadd.f32 0.0, %v3161
    %v3163 = vpop.f32.mrb[0].mxu0
    %3164 = vdwg.mxu0
    %v3165 = vmul.f32 %v3157, 0.03125
    %v3166 = vmul.f32 %v3162, 0.03125
    %3168 = vset.pattern.permute.xlu0 0
    %3169 = vperm.xlu0 %3168, %v3165
    %v3170 = vpop.permute.xlu0 %3169
    %3173 = vset.pattern.permute.xlu0 0
    %3174 = vperm.xlu0 %3173, %v3166
    %v3175 = vpop.permute.xlu0 %3174
    %v3177 = vsub.f32 %v3082, %v3170
    %v3178 = vsub.f32 %v3083, %v3175
    %v3179 = vmul.f32 %v3177, %v3177
    %v3180 = vmul.f32 %v3178, %v3178
    %v3182 = vsel %vm63, %v3179, 0
    %v3185 = vsel %vm63, %v3180, 0
    %3187 = vmatprep.subr.mxu0 0.0
    %3188 = vmatpush1.msra.mxu0 1.0
    %3189 = vmatprep.subr.mxu0 0.0
    %3190 = vmatpush1.msra.mxu0 1.0
    %3191 = vmatprep.subr.mxu0 0.0
    %3192 = vmatpush1.msra.mxu0 1.0
    %3193 = vmatprep.subr.mxu0 0.0
    %3194 = vmatpush1.msra.mxu0 1.0
    %3195 = vmatprep.subr.mxu0 0.0
    %3196 = vmatpush1.msra.mxu0 0.0
    %3197 = vmatprep.subr.mxu0 0.0
    %3198 = vmatpush1.msra.mxu0 0.0
    %3199 = vmatprep.subr.mxu0 0.0
    %3200 = vmatpush1.msra.mxu0 0.0
    %3201 = vmatprep.subr.mxu0 0.0
    %3202 = vmatpush1.msra.mxu0 0.0
    %3203 = vmatprep.subr.mxu0 0.0
    %3204 = vmatpush1.msra.mxu0 0.0
    %3205 = vmatprep.subr.mxu0 0.0
    %3206 = vmatpush1.msra.mxu0 0.0
    %3207 = vmatprep.subr.mxu0 0.0
    %3208 = vmatpush1.msra.mxu0 0.0
    %3209 = vmatprep.subr.mxu0 0.0
    %3210 = vmatpush1.msra.mxu0 0.0
    %3211 = vmatprep.subr.mxu0 0.0
    %3212 = vmatpush1.msra.mxu0 0.0
    %3213 = vmatprep.subr.mxu0 0.0
    %3214 = vmatpush1.msra.mxu0 0.0
    %3215 = vmatprep.subr.mxu0 0.0
    %3216 = vmatpush1.msra.mxu0 0.0
    %3217 = vmatprep.subr.mxu0 0.0
    %3218 = vmatpush1.msra.mxu0 0.0
    %3219 = vmatprep.subr.mxu0 0.0
    %3220 = vmatpush1.msra.mxu0 0.0
    %3221 = vmatprep.subr.mxu0 0.0
    %3222 = vmatpush1.msra.mxu0 0.0
    %3223 = vmatprep.subr.mxu0 0.0
    %3224 = vmatpush1.msra.mxu0 0.0
    %3225 = vmatprep.subr.mxu0 0.0
    %3226 = vmatpush1.msra.mxu0 0.0
    %3227 = vmatprep.subr.mxu0 0.0
    %3228 = vmatpush1.msra.mxu0 0.0
    %3229 = vmatprep.subr.mxu0 0.0
    %3230 = vmatpush1.msra.mxu0 0.0
    %3231 = vmatprep.subr.mxu0 0.0
    %3232 = vmatpush1.msra.mxu0 0.0
    %3233 = vmatprep.subr.mxu0 0.0
    %3234 = vmatpush1.msra.mxu0 0.0
    %3235 = vmatprep.subr.mxu0 0.0
    %3236 = vmatpush1.msra.mxu0 0.0
    %3237 = vmatprep.subr.mxu0 0.0
    %3238 = vmatpush1.msra.mxu0 0.0
    %3239 = vmatprep.subr.mxu0 0.0
    %3240 = vmatpush1.msra.mxu0 0.0
    %3241 = vmatprep.subr.mxu0 0.0
    %3242 = vmatpush1.msra.mxu0 0.0
    %3243 = vmatprep.subr.mxu0 0.0
    %3244 = vmatpush1.msra.mxu0 0.0
    %3245 = vmatprep.subr.mxu0 0.0
    %3246 = vmatpush1.msra.mxu0 0.0
    %3247 = vmatprep.subr.mxu0 0.0
    %3248 = vmatpush1.msra.mxu0 0.0
    %3249 = vmatprep.subr.mxu0 0.0
    %3250 = vmatpush1.msra.mxu0 0.0
    %3251 = vmatprep.mubr.f32.mxu0 0.0
    %3252 = vmatmul.mubr.f32.gmra.mrb[0].mxu0 %v3182
    %v3253 = vpop.f32.mrb[0].mxu0
    %v3254 = vadd.f32 0.0, %v3253
    %v3255 = vpop.f32.mrb[0].mxu0
    %3256 = vmatprep.mubr.f32.mxu0 0.0
    %3257 = vmatmul.mubr.f32.gmra.mrb[0].mxu0 %v3185
    %v3258 = vpop.f32.mrb[0].mxu0
    %v3259 = vadd.f32 0.0, %v3258
    %v3260 = vpop.f32.mrb[0].mxu0
    %3261 = vdwg.mxu0
    %v3262 = vmul.f32 %v3254, 0.03125
    %v3263 = vmul.f32 %v3259, 0.03125
    %v3264 = vadd.f32 %v3262, 1e-12
    %v3265 = vadd.f32 %v3263, 1e-12
    %v3266 = vrsqrt.pop %v3264
    %v3267 = vrsqrt.pop %v3265
    %3269 = vset.pattern.permute.xlu0 0
    %3270 = vperm.xlu0 %3269, %v3266
    %v3271 = vpop.permute.xlu0 %3270
    %3274 = vset.pattern.permute.xlu0 0
    %3275 = vperm.xlu0 %3274, %v3267
    %v3276 = vpop.permute.xlu0 %3275
    %v3278 = vmul.f32 %v3177, %v3271
    %v3279 = vmul.f32 %v3178, %v3276
    %v3280 = vlaneseq
    %v3281 = vshrl.u32 %v3280, 7
    %v3282 = vsub.s32 0, %v3281
    %v3283 = vrot.slane %v1836, %v3282
    %v3284 = vmul.f32 %v3278, %v3283
    %v3285 = vmul.f32 %v3279, %v3283
    %v3286 = vlaneseq
    %v3287 = vshrl.u32 %v3286, 7
    %v3288 = vsub.s32 0, %v3287
    %v3289 = vrot.slane %v1837, %v3288
    %v3290 = vadd.f32 %v3284, %v3289
    %v3291 = vadd.f32 %v3285, %v3289
    %v3292 = vsel %vm63, %v3290, 0.0
    %v3293 = vrot.slane %v3292, 4
    %v3294 = vadd.f32 %v3292, %v3293
    %v3295 = vrot.slane %v3294, 2
    %v3296 = vadd.f32 %v3294, %v3295
    %v3297 = vrot.slane %v3296, 1
    %v3298 = vadd.f32 %v3296, %v3297
    %v3299 = vsel %vm63, %v3291, 0.0
    %v3300 = vrot.slane %v3299, 4
    %v3301 = vadd.f32 %v3299, %v3300
    %v3302 = vrot.slane %v3301, 2
    %v3303 = vadd.f32 %v3301, %v3302
    %v3304 = vrot.slane %v3303, 1
    %v3305 = vadd.f32 %v3303, %v3304
    %v3306 = vrcp.pop 8.0
    %v3307 = vmul.f32 %v3298, %v3306
    %v3308 = vmul.f32 %v3305, %v3306
    %vm3311 = vcmask 1041409
    %v3312 = vsel %vm3311, %v3308, %v3307
    %vm3314 = vcmask 254976
    %3315 = vst.msk [vmem:[#allocation8] sm:$0x3] %vm3314, %v3312
    // Predicated region
    $region30: #{tpu_custom_call.1} parent=1 // pred_check
      _
    $region31: #{tpu_custom_call.1} parent=1 // pred_check_branch
      %3317 = sbr.rel (0) target = $region33
    $region32: #{tpu_custom_call.1} parent=1 // pred_region
      %s3319 = ssub.s32 32, 32
      %3320 = vsyncadd [#allocation4], %s3319
      %s3322 = sshll.u32 [#allocation8], 4
      %s3323 = int_to_ptr.vmem [resolvable:$true] %s3322
      %3325 = dma.vmem_to_hbm [thread:$0]  %s3323, 32, %s4, [#allocation4]
    $region33: #{tpu_custom_call.1} parent=1 // pred_fallthru
      _
    // Predicated region
    $region34: #{tpu_custom_call.1} parent=1 // pred_check
      _
    $region35: #{tpu_custom_call.1} parent=1 // pred_check_branch
      %3327 = sbr.rel (0) target = $region37
    $region36: #{tpu_custom_call.1} parent=1 // pred_region
      %3328 = dma.done [#allocation4], 32
    $region37: #{tpu_custom_call.1} parent=1 // pred_fallthru
      _
    %3329 = vsyncpa [#allocation3], 1
    %3330 = vsyncpa [#allocation6], 1
    %3331 = vsyncpa [#allocation4], 1

</llo_original>
